<compile_context>
chip_gen: v6e
topology: v6e:2x2x1
jax: 0.10.0
libtpu: 0.0.40
codegen_flags: <defaults>
</compile_context>

<pallas_src>
import math
from functools import partial

import numpy as np
import jax
import jax.numpy as jnp
from jax import lax
from jax.experimental import pallas as pl
from jax.experimental.pallas import tpu as pltpu


# ----------------------------------------------------------------------------- kernel

def _wca_kernel(x_ref, ctx_ref, wq_ref, qb_ref, wkv_ref, kvb_ref,
                qg_ref, kg_ref, rpb_ref, mask_ref, wp_ref, pb_ref, o_ref,
                *, num_heads, head_dim, windows_per_image, tokens_per_window, eps):
    """One grid step = Bt windows (a multiple of nW, i.e. whole images).

    x_ref/ctx_ref : (Bt*N, C) bf16          wq_ref : (C, C) bf16   wkv_ref : (C, 2C) bf16
    qb_ref        : (1, C) f32              kvb_ref: (1, 2C) f32
    qg_ref/kg_ref : (nH, hd) f32            (RMS gamma * sqrt(C) [* logit_scale] per head-chan)
    rpb_ref       : (nH, N, N) f32          mask_ref: (nW, N, N) f32
    wp_ref        : (nH, hd, C) bf16        pb_ref : (1, C) f32
    o_ref         : (Bt*N, C) f32
    """
    nH, hd, nW, N = num_heads, head_dim, windows_per_image, tokens_per_window
    T, C = x_ref.shape
    Bt = T // N
    m = Bt // nW
    z = nH * Bt

    # ---- q / kv projections: tall 2-D matmuls (bf16 MXU, f32 accumulate) ----
    q2 = jnp.dot(x_ref[...], wq_ref[...], preferred_element_type=jnp.float32) + qb_ref[...]
    kv2 = jnp.dot(ctx_ref[...], wkv_ref[...], preferred_element_type=jnp.float32) + kvb_ref[...]

    # ---- split heads once: lane slices stacked on a new leading axis -> (nH, T, hd) ----
    qs = jnp.stack([q2[:, h * hd:(h + 1) * hd] for h in range(nH)], axis=0)
    ks = jnp.stack([kv2[:, h * hd:(h + 1) * hd] for h in range(nH)], axis=0)
    vs = jnp.stack([kv2[:, C + h * hd: C + (h + 1) * hd] for h in range(nH)],
                   axis=0).astype(jnp.bfloat16)

    # ---- per-head RMS norm over head_dim (gammas carry sqrt(C), q side also logit_scale) ----
    qg = qg_ref[...][:, None, :]                       # (nH, 1, hd)
    kg = kg_ref[...][:, None, :]
    qs = qs * lax.rsqrt(jnp.mean(qs * qs, axis=-1, keepdims=True) + eps) * qg
    ks = ks * lax.rsqrt(jnp.mean(ks * ks, axis=-1, keepdims=True) + eps) * kg

    # ---- attention scores: one batched dot_general over all (head, window) pairs ----
    s = jnp.einsum('znd,zmd->znm',
                   qs.reshape(z, N, hd), ks.reshape(z, N, hd),
                   preferred_element_type=jnp.float32)          # (z, N, N) f32
    s = s.reshape(nH, Bt, N, N) + rpb_ref[...][:, None]          # + rel-pos bias
    if m == 1:                                                   # + shifted-window mask
        s = s + mask_ref[...][None]
    else:
        s = (s.reshape(nH, m, nW, N, N) + mask_ref[...][None, None]).reshape(nH, Bt, N, N)

    # ---- softmax (EUP exp + approx reciprocal) ----
    s = s - jnp.max(s, axis=-1, keepdims=True)
    p = jnp.exp(s)
    p = p * pl.reciprocal(jnp.sum(p, axis=-1, keepdims=True), approx=True)

    # ---- attn @ v, batched over (head, window) ----
    o = jnp.einsum('znm,zmd->znd',
                   p.reshape(z, N, N).astype(jnp.bfloat16),
                   vs.reshape(z, N, hd),
                   preferred_element_type=jnp.float32)           # (z, N, hd) f32
    o3 = o.reshape(nH, T, hd)

    # ---- output projection: y = sum_h o_h @ Wp[h]  (no concat; channel order = h*hd + d) ----
    acc = jnp.dot(o3[0].astype(jnp.bfloat16), wp_ref[0],
                  preferred_element_type=jnp.float32)
    for h in range(1, nH):
        acc = acc + jnp.dot(o3[h].astype(jnp.bfloat16), wp_ref[h],
                            preferred_element_type=jnp.float32)
    o_ref[...] = acc + pb_ref[...]


# ----------------------------------------------------------------------------- wrapper

def window_context_attention(x, context, mask, params, *, num_heads,
                             rel_table, rel_index, windows_per_block=None):
    """x, context: (B_, N, C) ; mask: (nW, N, N) f32 or None."""
    B_, N, C = x.shape
    hd = C // num_heads

    # ---- tiny precompute in plain XLA (cpb MLP, gather, sigmoid, logit-scale fold) ----
    h1 = jnp.maximum(rel_table @ params['cpb_w1'] + params['cpb_b1'], 0.0)       # (T, 512)
    tbl = h1 @ params['cpb_w2']                                                  # (T, nH)
    rpb = tbl[rel_index.reshape(-1)].reshape(N, N, num_heads).transpose(2, 0, 1)
    rpb = (16.0 * jax.nn.sigmoid(rpb)).astype(jnp.float32)                       # (nH, N, N)

    if mask is not None:
        msk = mask.astype(jnp.float32)                                           # (nW, N, N)
    else:
        msk = jnp.zeros((1, N, N), jnp.float32)
    nW = msk.shape[0]

    Bt = windows_per_block if windows_per_block is not None else nW
    assert B_ % Bt == 0 and Bt % nW == 0, (B_, Bt, nW)
    n_blocks = B_ // Bt
    T = Bt * N

    ls = jnp.exp(jnp.minimum(params['logit_scale'].reshape(num_heads), math.log(1.0 / 0.01)))
    scale = math.sqrt(C)                                                         # RMSNorm.scale
    qg = (params['q_norm_w'].reshape(num_heads, hd) * scale * ls[:, None]).astype(jnp.float32)
    kg = (params['k_norm_w'].reshape(num_heads, hd) * scale).astype(jnp.float32)

    q_bias = params['q_bias'].reshape(1, C).astype(jnp.float32)
    kv_bias = jnp.concatenate([jnp.zeros((C,), jnp.float32),
                               params['v_bias'].astype(jnp.float32)]).reshape(1, 2 * C)
    wq = params['wq'].astype(jnp.bfloat16)
    wkv = params['wkv'].astype(jnp.bfloat16)
    wp3 = params['wproj'].astype(jnp.bfloat16).reshape(num_heads, hd, C)         # rows h-major
    pb = params['proj_b'].reshape(1, C).astype(jnp.float32)

    x2 = x.reshape(B_ * N, C).astype(jnp.bfloat16)
    c2 = context.reshape(B_ * N, C).astype(jnp.bfloat16)

    in_specs = [
        pl.BlockSpec((T, C), lambda i: (i, 0)),                    # x block
        pl.BlockSpec((T, C), lambda i: (i, 0)),                    # context block
        pl.BlockSpec((C, C), lambda i: (0, 0)),                    # wq     (resident)
        pl.BlockSpec((1, C), lambda i: (0, 0)),                    # q bias (resident)
        pl.BlockSpec((C, 2 * C), lambda i: (0, 0)),                # wkv    (resident)
        pl.BlockSpec((1, 2 * C), lambda i: (0, 0)),                # kv bias
        pl.BlockSpec((num_heads, hd), lambda i: (0, 0)),           # q gamma
        pl.BlockSpec((num_heads, hd), lambda i: (0, 0)),           # k gamma
        pl.BlockSpec((num_heads, N, N), lambda i: (0, 0, 0)),      # rel-pos bias
        pl.BlockSpec((nW, N, N), lambda i: (0, 0, 0)),             # window mask
        pl.BlockSpec((num_heads, hd, C), lambda i: (0, 0, 0)),     # wproj (head-major rows)
        pl.BlockSpec((1, C), lambda i: (0, 0)),                    # proj bias
    ]
    out_spec = pl.BlockSpec((T, C), lambda i: (i, 0))

    # advisory cost estimate for the full call
    flops = 2 * B_ * N * C * (4 * C) + 4 * B_ * num_heads * N * N * hd
    transcendentals = B_ * num_heads * N * N + 2 * B_ * N * num_heads + B_ * num_heads * N
    bytes_accessed = 2 * (B_ * N * C) * 2 + B_ * N * C * 4 + 4 * C * C * 2 \
        + (num_heads + nW) * N * N * 4

    # per-step working set (double-buffered activation blocks + resident weights + f32 scratch)
    est = (4 * T * C * 2                               # x + ctx blocks, double-buffered, bf16
           + 2 * T * C * 4                             # out block, double-buffered, f32
           + 4 * C * C * 2                             # wq + wkv + wproj, bf16 resident
           + (num_heads + nW) * N * N * 4              # rpb + mask resident
           + 10 * T * C * 4                            # f32 intermediates (q, kv, stacks, o, y)
           + 2 * num_heads * Bt * N * N * 4)           # scores + probs, f32
    vmem_limit = int(min(max(2 * est, 16 << 20), 48 << 20))

    out2 = pl.pallas_call(
        partial(_wca_kernel, num_heads=num_heads, head_dim=hd,
                windows_per_image=nW, tokens_per_window=N, eps=1e-8),
        out_shape=jax.ShapeDtypeStruct((B_ * N, C), jnp.float32),
        grid=(n_blocks,),
        in_specs=in_specs,
        out_specs=out_spec,
        compiler_params=pltpu.CompilerParams(
            dimension_semantics=("parallel",),
            vmem_limit_bytes=vmem_limit),
        cost_estimate=pl.CostEstimate(flops=flops, transcendentals=transcendentals,
                                      bytes_accessed=bytes_accessed),
    )(x2, c2, wq, q_bias, wkv, kv_bias, qg, kg, rpb, msk, wp3, pb)
    return out2.reshape(B_, N, C)


# ----------------------------------------------------------------------------- static tables

def make_relative_tables(window_size):
    Wh, Ww = window_size
    rh = np.arange(-(Wh - 1), Wh, dtype=np.float32)
    rw = np.arange(-(Ww - 1), Ww, dtype=np.float32)
    table = np.stack(np.meshgrid(rh, rw, indexing='ij'), axis=0).transpose(1, 2, 0)
    table[..., 0] /= max(Wh - 1, 1)
    table[..., 1] /= max(Ww - 1, 1)
    table *= 8.0
    table = np.sign(table) * np.log2(np.abs(table) + 1.0) / np.log2(8.0)
    table = table.reshape(-1, 2).astype(np.float32)                               # (T, 2)
    coords = np.stack(np.meshgrid(np.arange(Wh), np.arange(Ww), indexing='ij'))
    cf = coords.reshape(2, -1)
    rel = cf[:, :, None] - cf[:, None, :]
    rel = rel.transpose(1, 2, 0)
    rel[..., 0] += Wh - 1
    rel[..., 1] += Ww - 1
    rel[..., 0] *= 2 * Ww - 1
    rel_index = rel.sum(-1).astype(np.int32)                                      # (N, N)
    return jnp.asarray(table), jnp.asarray(rel_index)


def make_attn_mask(input_resolution, window_size, shift_size):
    H, W = input_resolution
    img_mask = np.zeros((1, H, W, 1), dtype=np.float32)
    sls = (slice(0, -window_size), slice(-window_size, -shift_size), slice(-shift_size, None))
    cnt = 0
    for hs in sls:
        for ws_ in sls:
            img_mask[:, hs, ws_, :] = cnt
            cnt += 1
    mw = img_mask.reshape(1, H // window_size, window_size, W // window_size, window_size, 1)
    mw = mw.transpose(0, 1, 3, 2, 4, 5).reshape(-1, window_size * window_size)
    am = mw[:, None, :] - mw[:, :, None]
    am = np.where(am != 0, -100.0, 0.0).astype(np.float32)
    return jnp.asarray(am)                                                        # (nW, N, N)


# ----------------------------------------------------------------------------- params

def init_params(key, dim, num_heads, cpb_hidden=512):
    ks = jax.random.split(key, 8)
    r = lambda k, s: 0.02 * jax.random.normal(k, s, jnp.float32)
    return {
        'wq': r(ks[0], (dim, dim)),             # == torch q.weight.T
        'q_bias': r(ks[1], (dim,)),
        'wkv': r(ks[2], (dim, 2 * dim)),        # == torch kv.weight.T, columns [k | v]
        'v_bias': r(ks[3], (dim,)),
        'logit_scale': jnp.full((num_heads, 1, 1), math.log(10.0), jnp.float32),
        'q_norm_w': jnp.ones((dim,), jnp.float32),   # RMSNorm weight init = 1
        'k_norm_w': jnp.ones((dim,), jnp.float32),
        'cpb_w1': r(ks[4], (2, cpb_hidden)),
        'cpb_b1': r(ks[5], (cpb_hidden,)),
        'cpb_w2': r(ks[6], (cpb_hidden, num_heads)),   # cpb second linear has no bias
        'wproj': r(ks[7], (dim, dim)),
        'proj_b': jnp.zeros((dim,), jnp.float32),
    }


# ----------------------------------------------------------------------------- main

if __name__ == "__main__":
    B = 2
    dim = 32
    num_heads = 4
    H = W = 8
    window_size = (4, 4)
    shift_size = 2
    N = window_size[0] * window_size[1]                      # 16 tokens / window
    nW = (H // window_size[0]) * (W // window_size[1])       # 4 windows / image
    B_ = B * nW                                              # 8 windowed "batches"

    key = jax.random.PRNGKey(0)
    kp, kx, kc = jax.random.split(key, 3)
    params = init_params(kp, dim, num_heads)
    x = jax.random.normal(kx, (B_, N, dim), jnp.float32)
    context = jax.random.normal(kc, (B_, N, dim), jnp.float32)

    rel_table, rel_index = make_relative_tables(window_size)
    mask = make_attn_mask((H, W), window_size[0], shift_size)    # (nW, N, N)

    fwd = jax.jit(partial(window_context_attention,
                          num_heads=num_heads, rel_table=rel_table, rel_index=rel_index))
    out = fwd(x, context, mask, params)
    out = jax.block_until_ready(out)

    assert out.shape == (B_, N, dim), out.shape
    assert bool(jnp.all(jnp.isfinite(out)))
    print("KERNEL_OK")
</pallas_src>

<mosaic_0001>
module attributes {stable_mosaic.version = 11 : i64} {
  func.func @_wca_kernel(%arg0: i32, %arg1: memref<64x32xbf16, #tpu.memory_space<vmem>>, %arg2: memref<64x32xbf16, #tpu.memory_space<vmem>>, %arg3: memref<32x32xbf16, #tpu.memory_space<vmem>>, %arg4: memref<1x32xf32, #tpu.memory_space<vmem>>, %arg5: memref<32x64xbf16, #tpu.memory_space<vmem>>, %arg6: memref<1x64xf32, #tpu.memory_space<vmem>>, %arg7: memref<4x8xf32, #tpu.memory_space<vmem>>, %arg8: memref<4x8xf32, #tpu.memory_space<vmem>>, %arg9: memref<4x16x16xf32, #tpu.memory_space<vmem>>, %arg10: memref<4x16x16xf32, #tpu.memory_space<vmem>>, %arg11: memref<4x8x32xbf16, #tpu.memory_space<vmem>>, %arg12: memref<1x32xf32, #tpu.memory_space<vmem>>, %arg13: memref<64x32xf32, #tpu.memory_space<vmem>>) attributes {dimension_semantics = [#tpu.dimension_semantics<parallel>], iteration_bounds = array<i64: 2>, scalar_prefetch = 0 : i64, scratch_operands = 0 : i64, tpu.core_type = #tpu.core_type<tc>, window_params = [{transform_indices = @transform_0, window_bounds = array<i64: 64, 32>}, {transform_indices = @transform_1, window_bounds = array<i64: 64, 32>}, {pipeline_mode = #tpu.pipeline_mode<synchronous>, transform_indices = @transform_2, window_bounds = array<i64: 32, 32>}, {pipeline_mode = #tpu.pipeline_mode<synchronous>, transform_indices = @transform_3, window_bounds = array<i64: 1, 32>}, {pipeline_mode = #tpu.pipeline_mode<synchronous>, transform_indices = @transform_4, window_bounds = array<i64: 32, 64>}, {pipeline_mode = #tpu.pipeline_mode<synchronous>, transform_indices = @transform_5, window_bounds = array<i64: 1, 64>}, {pipeline_mode = #tpu.pipeline_mode<synchronous>, transform_indices = @transform_6, window_bounds = array<i64: 4, 8>}, {pipeline_mode = #tpu.pipeline_mode<synchronous>, transform_indices = @transform_7, window_bounds = array<i64: 4, 8>}, {pipeline_mode = #tpu.pipeline_mode<synchronous>, transform_indices = @transform_8, window_bounds = array<i64: 4, 16, 16>}, {pipeline_mode = #tpu.pipeline_mode<synchronous>, transform_indices = @transform_9, window_bounds = array<i64: 4, 16, 16>}, {pipeline_mode = #tpu.pipeline_mode<synchronous>, transform_indices = @transform_10, window_bounds = array<i64: 4, 8, 32>}, {pipeline_mode = #tpu.pipeline_mode<synchronous>, transform_indices = @transform_11, window_bounds = array<i64: 1, 32>}, {transform_indices = @transform_12, window_bounds = array<i64: 64, 32>}]} {
    %c0 = arith.constant 0 : index
    %c0_0 = arith.constant 0 : index
    %0 = vector.load %arg1[%c0, %c0_0] : memref<64x32xbf16, #tpu.memory_space<vmem>>, vector<64x32xbf16>
    %c0_1 = arith.constant 0 : index
    %c0_2 = arith.constant 0 : index
    %1 = vector.load %arg3[%c0_1, %c0_2] : memref<32x32xbf16, #tpu.memory_space<vmem>>, vector<32x32xbf16>
    %cst = arith.constant dense<0.000000e+00> : vector<64x32xf32>
    %2 = tpu.matmul %0, %1, %cst {dimension_numbers = #tpu.dot_dimension_numbers<[1], [0], [0], [1], [0, 0, 1, 1], [], []>} : vector<64x32xbf16>, vector<32x32xbf16>, vector<64x32xf32> -> vector<64x32xf32>
    %c0_3 = arith.constant 0 : index
    %c0_4 = arith.constant 0 : index
    %3 = vector.load %arg4[%c0_3, %c0_4] : memref<1x32xf32, #tpu.memory_space<vmem>>, vector<1x32xf32>
    %4 = vector.broadcast %3 : vector<1x32xf32> to vector<64x32xf32>
    %5 = arith.addf %2, %4 : vector<64x32xf32>
    %c0_5 = arith.constant 0 : index
    %c0_6 = arith.constant 0 : index
    %6 = vector.load %arg2[%c0_5, %c0_6] : memref<64x32xbf16, #tpu.memory_space<vmem>>, vector<64x32xbf16>
    %c0_7 = arith.constant 0 : index
    %c0_8 = arith.constant 0 : index
    %7 = vector.load %arg5[%c0_7, %c0_8] : memref<32x64xbf16, #tpu.memory_space<vmem>>, vector<32x64xbf16>
    %cst_9 = arith.constant dense<0.000000e+00> : vector<64x64xf32>
    %8 = tpu.matmul %6, %7, %cst_9 {dimension_numbers = #tpu.dot_dimension_numbers<[1], [0], [0], [1], [0, 0, 1, 1], [], []>} : vector<64x32xbf16>, vector<32x64xbf16>, vector<64x64xf32> -> vector<64x64xf32>
    %c0_10 = arith.constant 0 : index
    %c0_11 = arith.constant 0 : index
    %9 = vector.load %arg6[%c0_10, %c0_11] : memref<1x64xf32, #tpu.memory_space<vmem>>, vector<1x64xf32>
    %10 = vector.broadcast %9 : vector<1x64xf32> to vector<64x64xf32>
    %11 = arith.addf %8, %10 : vector<64x64xf32>
    %12 = vector.extract_strided_slice %5 {offsets = [0, 0], sizes = [64, 8], strides = [1, 1]} : vector<64x32xf32> to vector<64x8xf32>
    %13 = vector.extract_strided_slice %5 {offsets = [0, 8], sizes = [64, 8], strides = [1, 1]} : vector<64x32xf32> to vector<64x8xf32>
    %14 = vector.extract_strided_slice %5 {offsets = [0, 16], sizes = [64, 8], strides = [1, 1]} : vector<64x32xf32> to vector<64x8xf32>
    %15 = vector.extract_strided_slice %5 {offsets = [0, 24], sizes = [64, 8], strides = [1, 1]} : vector<64x32xf32> to vector<64x8xf32>
    %16 = vector.shape_cast %12 : vector<64x8xf32> to vector<1x64x8xf32>
    %17 = vector.shape_cast %13 : vector<64x8xf32> to vector<1x64x8xf32>
    %18 = vector.shape_cast %14 : vector<64x8xf32> to vector<1x64x8xf32>
    %19 = vector.shape_cast %15 : vector<64x8xf32> to vector<1x64x8xf32>
    %20 = tpu.concatenate %16, %17, %18, %19 in 0 : vector<1x64x8xf32>, vector<1x64x8xf32>, vector<1x64x8xf32>, vector<1x64x8xf32> -> vector<4x64x8xf32>
    %21 = vector.extract_strided_slice %11 {offsets = [0, 0], sizes = [64, 8], strides = [1, 1]} : vector<64x64xf32> to vector<64x8xf32>
    %22 = vector.extract_strided_slice %11 {offsets = [0, 8], sizes = [64, 8], strides = [1, 1]} : vector<64x64xf32> to vector<64x8xf32>
    %23 = vector.extract_strided_slice %11 {offsets = [0, 16], sizes = [64, 8], strides = [1, 1]} : vector<64x64xf32> to vector<64x8xf32>
    %24 = vector.extract_strided_slice %11 {offsets = [0, 24], sizes = [64, 8], strides = [1, 1]} : vector<64x64xf32> to vector<64x8xf32>
    %25 = vector.shape_cast %21 : vector<64x8xf32> to vector<1x64x8xf32>
    %26 = vector.shape_cast %22 : vector<64x8xf32> to vector<1x64x8xf32>
    %27 = vector.shape_cast %23 : vector<64x8xf32> to vector<1x64x8xf32>
    %28 = vector.shape_cast %24 : vector<64x8xf32> to vector<1x64x8xf32>
    %29 = tpu.concatenate %25, %26, %27, %28 in 0 : vector<1x64x8xf32>, vector<1x64x8xf32>, vector<1x64x8xf32>, vector<1x64x8xf32> -> vector<4x64x8xf32>
    %30 = vector.extract_strided_slice %11 {offsets = [0, 32], sizes = [64, 8], strides = [1, 1]} : vector<64x64xf32> to vector<64x8xf32>
    %31 = vector.extract_strided_slice %11 {offsets = [0, 40], sizes = [64, 8], strides = [1, 1]} : vector<64x64xf32> to vector<64x8xf32>
    %32 = vector.extract_strided_slice %11 {offsets = [0, 48], sizes = [64, 8], strides = [1, 1]} : vector<64x64xf32> to vector<64x8xf32>
    %33 = vector.extract_strided_slice %11 {offsets = [0, 56], sizes = [64, 8], strides = [1, 1]} : vector<64x64xf32> to vector<64x8xf32>
    %34 = vector.shape_cast %30 : vector<64x8xf32> to vector<1x64x8xf32>
    %35 = vector.shape_cast %31 : vector<64x8xf32> to vector<1x64x8xf32>
    %36 = vector.shape_cast %32 : vector<64x8xf32> to vector<1x64x8xf32>
    %37 = vector.shape_cast %33 : vector<64x8xf32> to vector<1x64x8xf32>
    %38 = tpu.concatenate %34, %35, %36, %37 in 0 : vector<1x64x8xf32>, vector<1x64x8xf32>, vector<1x64x8xf32>, vector<1x64x8xf32> -> vector<4x64x8xf32>
    %39 = arith.truncf %38 : vector<4x64x8xf32> to vector<4x64x8xbf16>
    %c0_12 = arith.constant 0 : index
    %c0_13 = arith.constant 0 : index
    %40 = vector.load %arg7[%c0_12, %c0_13] : memref<4x8xf32, #tpu.memory_space<vmem>>, vector<4x8xf32>
    %41 = vector.shape_cast %40 : vector<4x8xf32> to vector<4x1x8xf32>
    %c0_14 = arith.constant 0 : index
    %c0_15 = arith.constant 0 : index
    %42 = vector.load %arg8[%c0_14, %c0_15] : memref<4x8xf32, #tpu.memory_space<vmem>>, vector<4x8xf32>
    %43 = vector.shape_cast %42 : vector<4x8xf32> to vector<4x1x8xf32>
    %44 = arith.mulf %20, %20 : vector<4x64x8xf32>
    %cst_16 = arith.constant dense<0.000000e+00> : vector<4x64xf32>
    %45 = vector.multi_reduction <add>, %44, %cst_16 [2] : vector<4x64x8xf32> to vector<4x64xf32>
    %46 = vector.shape_cast %45 : vector<4x64xf32> to vector<4x64x1xf32>
    %cst_17 = arith.constant 8.000000e+00 : f32
    %47 = vector.broadcast %cst_17 : f32 to vector<4x64x1xf32>
    %48 = arith.divf %46, %47 : vector<4x64x1xf32>
    %cst_18 = arith.constant 9.99999993E-9 : f32
    %49 = vector.broadcast %cst_18 : f32 to vector<4x64x1xf32>
    %50 = arith.addf %48, %49 : vector<4x64x1xf32>
    %51 = math.rsqrt %50 : vector<4x64x1xf32>
    %52 = vector.broadcast %51 : vector<4x64x1xf32> to vector<4x64x8xf32>
    %53 = arith.mulf %20, %52 : vector<4x64x8xf32>
    %54 = vector.broadcast %41 : vector<4x1x8xf32> to vector<4x64x8xf32>
    %55 = arith.mulf %53, %54 : vector<4x64x8xf32>
    %56 = arith.mulf %29, %29 : vector<4x64x8xf32>
    %cst_19 = arith.constant dense<0.000000e+00> : vector<4x64xf32>
    %57 = vector.multi_reduction <add>, %56, %cst_19 [2] : vector<4x64x8xf32> to vector<4x64xf32>
    %58 = vector.shape_cast %57 : vector<4x64xf32> to vector<4x64x1xf32>
    %cst_20 = arith.constant 8.000000e+00 : f32
    %59 = vector.broadcast %cst_20 : f32 to vector<4x64x1xf32>
    %60 = arith.divf %58, %59 : vector<4x64x1xf32>
    %cst_21 = arith.constant 9.99999993E-9 : f32
    %61 = vector.broadcast %cst_21 : f32 to vector<4x64x1xf32>
    %62 = arith.addf %60, %61 : vector<4x64x1xf32>
    %63 = math.rsqrt %62 : vector<4x64x1xf32>
    %64 = vector.broadcast %63 : vector<4x64x1xf32> to vector<4x64x8xf32>
    %65 = arith.mulf %29, %64 : vector<4x64x8xf32>
    %66 = vector.broadcast %43 : vector<4x1x8xf32> to vector<4x64x8xf32>
    %67 = arith.mulf %65, %66 : vector<4x64x8xf32>
    %68 = vector.shape_cast %55 : vector<4x64x8xf32> to vector<16x16x8xf32>
    %69 = vector.shape_cast %67 : vector<4x64x8xf32> to vector<16x16x8xf32>
    "tpu.trace_start"() <{level = 10 : i32, message = "znd,zmd->znm"}> : () -> ()
    %cst_22 = arith.constant dense<0.000000e+00> : vector<16x16x16xf32>
    %70 = tpu.matmul %68, %69, %cst_22 {dimension_numbers = #tpu.dot_dimension_numbers<[2], [2], [1], [1], [0, 0, 0, 1, 1, 1], [0], [0]>} : vector<16x16x8xf32>, vector<16x16x8xf32>, vector<16x16x16xf32> -> vector<16x16x16xf32>
    "tpu.trace_stop"() : () -> ()
    %71 = vector.shape_cast %70 : vector<16x16x16xf32> to vector<4x4x16x16xf32>
    %c0_23 = arith.constant 0 : index
    %c0_24 = arith.constant 0 : index
    %c0_25 = arith.constant 0 : index
    %72 = vector.load %arg9[%c0_23, %c0_24, %c0_25] : memref<4x16x16xf32, #tpu.memory_space<vmem>>, vector<4x16x16xf32>
    %73 = vector.shape_cast %72 : vector<4x16x16xf32> to vector<4x1x16x16xf32>
    %74 = vector.broadcast %73 : vector<4x1x16x16xf32> to vector<4x4x16x16xf32>
    %75 = arith.addf %71, %74 : vector<4x4x16x16xf32>
    %c0_26 = arith.constant 0 : index
    %c0_27 = arith.constant 0 : index
    %c0_28 = arith.constant 0 : index
    %76 = vector.load %arg10[%c0_26, %c0_27, %c0_28] : memref<4x16x16xf32, #tpu.memory_space<vmem>>, vector<4x16x16xf32>
    %77 = vector.shape_cast %76 : vector<4x16x16xf32> to vector<1x4x16x16xf32>
    %78 = vector.broadcast %77 : vector<1x4x16x16xf32> to vector<4x4x16x16xf32>
    %79 = arith.addf %75, %78 : vector<4x4x16x16xf32>
    %cst_29 = arith.constant dense<0xFF800000> : vector<4x4x16xf32>
    %80 = vector.multi_reduction <maximumf>, %79, %cst_29 [3] : vector<4x4x16x16xf32> to vector<4x4x16xf32>
    %81 = vector.shape_cast %80 : vector<4x4x16xf32> to vector<4x4x16x1xf32>
    %82 = vector.broadcast %81 : vector<4x4x16x1xf32> to vector<4x4x16x16xf32>
    %83 = arith.subf %79, %82 : vector<4x4x16x16xf32>
    %84 = math.exp %83 : vector<4x4x16x16xf32>
    %cst_30 = arith.constant dense<0.000000e+00> : vector<4x4x16xf32>
    %85 = vector.multi_reduction <add>, %84, %cst_30 [3] : vector<4x4x16x16xf32> to vector<4x4x16xf32>
    %86 = vector.shape_cast %85 : vector<4x4x16xf32> to vector<4x4x16x1xf32>
    %87 = tpu.reciprocal %86 {approx = true} : vector<4x4x16x1xf32> -> vector<4x4x16x1xf32>
    %88 = vector.broadcast %87 : vector<4x4x16x1xf32> to vector<4x4x16x16xf32>
    %89 = arith.mulf %84, %88 : vector<4x4x16x16xf32>
    %90 = vector.shape_cast %89 : vector<4x4x16x16xf32> to vector<16x16x16xf32>
    %91 = arith.truncf %90 : vector<16x16x16xf32> to vector<16x16x16xbf16>
    %92 = vector.shape_cast %39 : vector<4x64x8xbf16> to vector<16x16x8xbf16>
    "tpu.trace_start"() <{level = 10 : i32, message = "znm,zmd->znd"}> : () -> ()
    %cst_31 = arith.constant dense<0.000000e+00> : vector<16x16x8xf32>
    %93 = tpu.matmul %91, %92, %cst_31 {dimension_numbers = #tpu.dot_dimension_numbers<[2], [1], [1], [2], [0, 0, 0, 1, 1, 2], [0], [0]>} : vector<16x16x16xbf16>, vector<16x16x8xbf16>, vector<16x16x8xf32> -> vector<16x16x8xf32>
    "tpu.trace_stop"() : () -> ()
    %94 = vector.shape_cast %93 : vector<16x16x8xf32> to vector<4x64x8xf32>
    %95 = vector.extract_strided_slice %94 {offsets = [0, 0, 0], sizes = [1, 64, 8], strides = [1, 1, 1]} : vector<4x64x8xf32> to vector<1x64x8xf32>
    %96 = vector.shape_cast %95 : vector<1x64x8xf32> to vector<64x8xf32>
    %97 = arith.truncf %96 : vector<64x8xf32> to vector<64x8xbf16>
    %c0_32 = arith.constant 0 : index
    %c0_33 = arith.constant 0 : index
    %c0_34 = arith.constant 0 : index
    %98 = vector.load %arg11[%c0_32, %c0_33, %c0_34] : memref<4x8x32xbf16, #tpu.memory_space<vmem>>, vector<1x8x32xbf16>
    %99 = vector.shape_cast %98 : vector<1x8x32xbf16> to vector<8x32xbf16>
    %cst_35 = arith.constant dense<0.000000e+00> : vector<64x32xf32>
    %100 = tpu.matmul %97, %99, %cst_35 {dimension_numbers = #tpu.dot_dimension_numbers<[1], [0], [0], [1], [0, 0, 1, 1], [], []>} : vector<64x8xbf16>, vector<8x32xbf16>, vector<64x32xf32> -> vector<64x32xf32>
    %101 = vector.extract_strided_slice %94 {offsets = [1, 0, 0], sizes = [1, 64, 8], strides = [1, 1, 1]} : vector<4x64x8xf32> to vector<1x64x8xf32>
    %102 = vector.shape_cast %101 : vector<1x64x8xf32> to vector<64x8xf32>
    %103 = arith.truncf %102 : vector<64x8xf32> to vector<64x8xbf16>
    %c1 = arith.constant 1 : index
    %c0_36 = arith.constant 0 : index
    %c0_37 = arith.constant 0 : index
    %104 = vector.load %arg11[%c1, %c0_36, %c0_37] : memref<4x8x32xbf16, #tpu.memory_space<vmem>>, vector<1x8x32xbf16>
    %105 = vector.shape_cast %104 : vector<1x8x32xbf16> to vector<8x32xbf16>
    %cst_38 = arith.constant dense<0.000000e+00> : vector<64x32xf32>
    %106 = tpu.matmul %103, %105, %cst_38 {dimension_numbers = #tpu.dot_dimension_numbers<[1], [0], [0], [1], [0, 0, 1, 1], [], []>} : vector<64x8xbf16>, vector<8x32xbf16>, vector<64x32xf32> -> vector<64x32xf32>
    %107 = arith.addf %100, %106 : vector<64x32xf32>
    %108 = vector.extract_strided_slice %94 {offsets = [2, 0, 0], sizes = [1, 64, 8], strides = [1, 1, 1]} : vector<4x64x8xf32> to vector<1x64x8xf32>
    %109 = vector.shape_cast %108 : vector<1x64x8xf32> to vector<64x8xf32>
    %110 = arith.truncf %109 : vector<64x8xf32> to vector<64x8xbf16>
    %c2 = arith.constant 2 : index
    %c0_39 = arith.constant 0 : index
    %c0_40 = arith.constant 0 : index
    %111 = vector.load %arg11[%c2, %c0_39, %c0_40] : memref<4x8x32xbf16, #tpu.memory_space<vmem>>, vector<1x8x32xbf16>
    %112 = vector.shape_cast %111 : vector<1x8x32xbf16> to vector<8x32xbf16>
    %cst_41 = arith.constant dense<0.000000e+00> : vector<64x32xf32>
    %113 = tpu.matmul %110, %112, %cst_41 {dimension_numbers = #tpu.dot_dimension_numbers<[1], [0], [0], [1], [0, 0, 1, 1], [], []>} : vector<64x8xbf16>, vector<8x32xbf16>, vector<64x32xf32> -> vector<64x32xf32>
    %114 = arith.addf %107, %113 : vector<64x32xf32>
    %115 = vector.extract_strided_slice %94 {offsets = [3, 0, 0], sizes = [1, 64, 8], strides = [1, 1, 1]} : vector<4x64x8xf32> to vector<1x64x8xf32>
    %116 = vector.shape_cast %115 : vector<1x64x8xf32> to vector<64x8xf32>
    %117 = arith.truncf %116 : vector<64x8xf32> to vector<64x8xbf16>
    %c3 = arith.constant 3 : index
    %c0_42 = arith.constant 0 : index
    %c0_43 = arith.constant 0 : index
    %118 = vector.load %arg11[%c3, %c0_42, %c0_43] : memref<4x8x32xbf16, #tpu.memory_space<vmem>>, vector<1x8x32xbf16>
    %119 = vector.shape_cast %118 : vector<1x8x32xbf16> to vector<8x32xbf16>
    %cst_44 = arith.constant dense<0.000000e+00> : vector<64x32xf32>
    %120 = tpu.matmul %117, %119, %cst_44 {dimension_numbers = #tpu.dot_dimension_numbers<[1], [0], [0], [1], [0, 0, 1, 1], [], []>} : vector<64x8xbf16>, vector<8x32xbf16>, vector<64x32xf32> -> vector<64x32xf32>
    %121 = arith.addf %114, %120 : vector<64x32xf32>
    %c0_45 = arith.constant 0 : index
    %c0_46 = arith.constant 0 : index
    %122 = vector.load %arg12[%c0_45, %c0_46] : memref<1x32xf32, #tpu.memory_space<vmem>>, vector<1x32xf32>
    %123 = vector.broadcast %122 : vector<1x32xf32> to vector<64x32xf32>
    %124 = arith.addf %121, %123 : vector<64x32xf32>
    %c0_47 = arith.constant 0 : index
    %c0_48 = arith.constant 0 : index
    %125 = vector.load %arg13[%c0_47, %c0_48] : memref<64x32xf32, #tpu.memory_space<vmem>>, vector<64x32xf32>
    tpu.vector_store %arg13[%c0_47, %c0_48], %124 {strides = array<i32>} : memref<64x32xf32, #tpu.memory_space<vmem>>, vector<64x32xf32>,
    return
  }
  func.func @transform_0(%arg0: i32) -> (i32, i32) {
    %c0_i32 = arith.constant 0 : i32
    %c0_i32_0 = arith.constant 0 : i32
    return %arg0, %c0_i32 : i32, i32
  }
  func.func @transform_1(%arg0: i32) -> (i32, i32) {
    %c0_i32 = arith.constant 0 : i32
    %c0_i32_0 = arith.constant 0 : i32
    return %arg0, %c0_i32 : i32, i32
  }
  func.func @transform_2(%arg0: i32) -> (i32, i32) {
    %c0_i32 = arith.constant 0 : i32
    %c0_i32_0 = arith.constant 0 : i32
    %c0_i32_1 = arith.constant 0 : i32
    return %c0_i32, %c0_i32_0 : i32, i32
  }
  func.func @transform_3(%arg0: i32) -> (i32, i32) {
    %c0_i32 = arith.constant 0 : i32
    %c0_i32_0 = arith.constant 0 : i32
    %c0_i32_1 = arith.constant 0 : i32
    return %c0_i32, %c0_i32_0 : i32, i32
  }
  func.func @transform_4(%arg0: i32) -> (i32, i32) {
    %c0_i32 = arith.constant 0 : i32
    %c0_i32_0 = arith.constant 0 : i32
    %c0_i32_1 = arith.constant 0 : i32
    return %c0_i32, %c0_i32_0 : i32, i32
  }
  func.func @transform_5(%arg0: i32) -> (i32, i32) {
    %c0_i32 = arith.constant 0 : i32
    %c0_i32_0 = arith.constant 0 : i32
    %c0_i32_1 = arith.constant 0 : i32
    return %c0_i32, %c0_i32_0 : i32, i32
  }
  func.func @transform_6(%arg0: i32) -> (i32, i32) {
    %c0_i32 = arith.constant 0 : i32
    %c0_i32_0 = arith.constant 0 : i32
    %c0_i32_1 = arith.constant 0 : i32
    return %c0_i32, %c0_i32_0 : i32, i32
  }
  func.func @transform_7(%arg0: i32) -> (i32, i32) {
    %c0_i32 = arith.constant 0 : i32
    %c0_i32_0 = arith.constant 0 : i32
    %c0_i32_1 = arith.constant 0 : i32
    return %c0_i32, %c0_i32_0 : i32, i32
  }
  func.func @transform_8(%arg0: i32) -> (i32, i32, i32) {
    %c0_i32 = arith.constant 0 : i32
    %c0_i32_0 = arith.constant 0 : i32
    %c0_i32_1 = arith.constant 0 : i32
    %c0_i32_2 = arith.constant 0 : i32
    return %c0_i32, %c0_i32_0, %c0_i32_1 : i32, i32, i32
  }
  func.func @transform_9(%arg0: i32) -> (i32, i32, i32) {
    %c0_i32 = arith.constant 0 : i32
    %c0_i32_0 = arith.constant 0 : i32
    %c0_i32_1 = arith.constant 0 : i32
    %c0_i32_2 = arith.constant 0 : i32
    return %c0_i32, %c0_i32_0, %c0_i32_1 : i32, i32, i32
  }
  func.func @transform_10(%arg0: i32) -> (i32, i32, i32) {
    %c0_i32 = arith.constant 0 : i32
    %c0_i32_0 = arith.constant 0 : i32
    %c0_i32_1 = arith.constant 0 : i32
    %c0_i32_2 = arith.constant 0 : i32
    return %c0_i32, %c0_i32_0, %c0_i32_1 : i32, i32, i32
  }
  func.func @transform_11(%arg0: i32) -> (i32, i32) {
    %c0_i32 = arith.constant 0 : i32
    %c0_i32_0 = arith.constant 0 : i32
    %c0_i32_1 = arith.constant 0 : i32
    return %c0_i32, %c0_i32_0 : i32, i32
  }
  func.func @transform_12(%arg0: i32) -> (i32, i32) {
    %c0_i32 = arith.constant 0 : i32
    %c0_i32_0 = arith.constant 0 : i32
    return %arg0, %c0_i32 : i32, i32
  }
}

</mosaic_0001>

<llo_original>
// kernel: window_context_attention.1
$region0: #{window_context_attention.1}
  #allocation0 [shape = 'u32[]', space=smem, size = 0x4, offset = 0x4, fixed_abs, tag = 'smem constant byte address 0x4 - core index']
  #allocation1 [shape = 'u32[144,128]{1,0:T(1,128)}', space=vmem, size = 0x12000, scoped, tag = 'internal scratch']
  %s0 = inlined_call_operand.vmem [shape: bf16[128,32], index: 0, kind: input, shape index: {}]
  %s1 = inlined_call_operand.vmem [shape: bf16[128,32], index: 1, kind: input, shape index: {}]
  %s2 = inlined_call_operand.vmem [shape: bf16[32,32], index: 2, kind: input, shape index: {}]
  %s3 = inlined_call_operand.vmem [shape: f32[1,32], index: 3, kind: input, shape index: {}]
  %s4 = inlined_call_operand.vmem [shape: bf16[32,64], index: 4, kind: input, shape index: {}]
  %s5 = inlined_call_operand.vmem [shape: f32[1,64], index: 5, kind: input, shape index: {}]
  %s6 = inlined_call_operand.vmem [shape: f32[4,8], index: 6, kind: input, shape index: {}]
  %s7 = inlined_call_operand.vmem [shape: f32[4,8], index: 7, kind: input, shape index: {}]
  %s8 = inlined_call_operand.vmem [shape: f32[4,16,16], index: 8, kind: input, shape index: {}]
  %s9 = inlined_call_operand.vmem [shape: f32[4,16,16], index: 9, kind: input, shape index: {}]
  %s10 = inlined_call_operand.vmem [shape: bf16[4,8,32], index: 10, kind: input, shape index: {}]
  %s11 = inlined_call_operand.vmem [shape: f32[1,32], index: 11, kind: input, shape index: {}]
  %s12 = inlined_call_operand.hbm [shape: f32[128,32], index: 12, kind: output, shape index: {}]
  %s13 = sld [smem:[#allocation0]]
  $region81: #{window_context_attention.1} parent=0
    _
  %s15 = ssub.s32 1, %s13
  %s16 = scalar_select 0, %s15, %s13
  $region1: #{window_context_attention.1} parent=0
    #allocation2 [shape = 'u8[65536]{0}', space=vmem, size = 0x10000, scoped, tag = 'output window, operand 0']
    #allocation3 [shape = 's32[2]{0}', space=sflag, size = 0x8, scoped, tag = 'scoped memory for window_context_attention.1']
    %17 = vsyncpa [#allocation3], 0
    %s18 = scalar_lea.sflag [#allocation3], 1
    %19 = vsyncpa %s18, 0
    loop: start=0, step=1, limit=4
    $region2: #{window_context_attention.1} parent=1 // loop_pre_header
      _
    $region3: #{window_context_attention.1} parent=1 // loop_header
      %s21 = sphi 0, %s25
      %p22 = scmp.ge.s32.totalorder %s21, 4
      %s31 = sphi 0, %s33
      %s34 = sphi 0, %s31
      %s35 = sphi 0, %s34
      %s51 = sphi 0, %s35
      %s57 = sphi 0, %s59
      %s60 = sphi 0, %s57
      %s61 = sphi 0, %s60
      %s77 = sphi 0, %s61
      %s81 = sphi 0, %s81
      %s83 = sphi 0, %s81
      %s84 = sphi 0, %s83
      %s98 = sphi 0, %s84
      %s102 = sphi 0, %s102
      %s104 = sphi 0, %s102
      %s105 = sphi 0, %s104
      %s119 = sphi 0, %s105
      %s123 = sphi 0, %s123
      %s125 = sphi 0, %s123
      %s126 = sphi 0, %s125
      %s140 = sphi 0, %s126
      %s144 = sphi 0, %s144
      %s146 = sphi 0, %s144
      %s147 = sphi 0, %s146
      %s161 = sphi 0, %s147
      %s165 = sphi 0, %s165
      %s167 = sphi 0, %s165
      %s168 = sphi 0, %s167
      %s182 = sphi 0, %s168
      %s186 = sphi 0, %s186
      %s188 = sphi 0, %s186
      %s189 = sphi 0, %s188
      %s203 = sphi 0, %s189
      %s207 = sphi 0, %s207
      %s209 = sphi 0, %s207
      %s210 = sphi 0, %s209
      %s224 = sphi 0, %s210
      %s228 = sphi 0, %s228
      %s230 = sphi 0, %s228
      %s231 = sphi 0, %s230
      %s245 = sphi 0, %s231
      %s249 = sphi 0, %s249
      %s251 = sphi 0, %s249
      %s252 = sphi 0, %s251
      %s266 = sphi 0, %s252
      %s270 = sphi 0, %s270
      %s272 = sphi 0, %s270
      %s273 = sphi 0, %s272
      %s287 = sphi 0, %s273
      %s293 = sphi 0, %s295
      %s296 = sphi 0, %s293
      %s297 = sphi 0, %s296
      %s313 = sphi 0, %s297
    $region4: #{window_context_attention.1} parent=1 // loop_header_branch
      %24 = sbr.rel (%p22) target = $region8
    $region5: #{window_context_attention.1} parent=1 // loop_body
      %s26 = ssub.s32 %s21, 1
      %s27 = ssub.s32 %s21, 2
      %s28 = sadd.s32 %s21, 1
      %s29 = ssub.s32 %s21, %s28
      %p30 = scmp.eq.s32.totalorder %s29, 0
      %s32 = sadd.s32 %s31, 1
      %s33 = scalar_select %p30, %s31, %s32
      %p36 = pneg %p30
      %p37 = scmp.eq.s32.totalorder %s21, 1
      %p38 = por %p36, %p37
      %p39 = scmp.ne.s32.totalorder %s31, %s34
      %p40 = scmp.eq.s32.totalorder %s21, 0
      %p41 = por %p39, %p40
      %p42 = scmp.ne.s32.totalorder %s31, %s34
      %p43 = scmp.eq.s32.totalorder %s26, 1
      %p44 = por %p42, %p43
      %p45 = scmp.ne.s32.totalorder %s34, %s35
      %p46 = scmp.eq.s32.totalorder %s26, 0
      %p47 = por %p45, %p46
      %p48 = scmp.ne.s32.totalorder %s34, %s35
      %p49 = scmp.eq.s32.totalorder %s27, 1
      %p50 = por %p48, %p49
      %p52 = scmp.ne.s32.totalorder %s35, %s51
      %p53 = scmp.eq.s32.totalorder %s27, 0
      %p54 = por %p52, %p53
      %s55 = ssub.s32 %s21, %s28
      %p56 = scmp.eq.s32.totalorder %s55, 0
      %s58 = sadd.s32 %s57, 1
      %s59 = scalar_select %p56, %s57, %s58
      %p62 = pneg %p56
      %p63 = scmp.eq.s32.totalorder %s21, 1
      %p64 = por %p62, %p63
      %p65 = scmp.ne.s32.totalorder %s57, %s60
      %p66 = scmp.eq.s32.totalorder %s21, 0
      %p67 = por %p65, %p66
      %p68 = scmp.ne.s32.totalorder %s57, %s60
      %p69 = scmp.eq.s32.totalorder %s26, 1
      %p70 = por %p68, %p69
      %p71 = scmp.ne.s32.totalorder %s60, %s61
      %p72 = scmp.eq.s32.totalorder %s26, 0
      %p73 = por %p71, %p72
      %p74 = scmp.ne.s32.totalorder %s60, %s61
      %p75 = scmp.eq.s32.totalorder %s27, 1
      %p76 = por %p74, %p75
      %p78 = scmp.ne.s32.totalorder %s61, %s77
      %p79 = scmp.eq.s32.totalorder %s27, 0
      %p80 = por %p78, %p79
      %s82 = sadd.s32 %s81, 1
      %p85 = scmp.eq.s32.totalorder %s21, 1
      %p86 = scmp.ne.s32.totalorder %s81, %s83
      %p87 = scmp.eq.s32.totalorder %s21, 0
      %p88 = por %p86, %p87
      %p89 = scmp.ne.s32.totalorder %s81, %s83
      %p90 = scmp.eq.s32.totalorder %s26, 1
      %p91 = por %p89, %p90
      %p92 = scmp.ne.s32.totalorder %s83, %s84
      %p93 = scmp.eq.s32.totalorder %s26, 0
      %p94 = por %p92, %p93
      %p95 = scmp.ne.s32.totalorder %s83, %s84
      %p96 = scmp.eq.s32.totalorder %s27, 1
      %p97 = por %p95, %p96
      %p99 = scmp.ne.s32.totalorder %s84, %s98
      %p100 = scmp.eq.s32.totalorder %s27, 0
      %p101 = por %p99, %p100
      %s103 = sadd.s32 %s102, 1
      %p106 = scmp.eq.s32.totalorder %s21, 1
      %p107 = scmp.ne.s32.totalorder %s102, %s104
      %p108 = scmp.eq.s32.totalorder %s21, 0
      %p109 = por %p107, %p108
      %p110 = scmp.ne.s32.totalorder %s102, %s104
      %p111 = scmp.eq.s32.totalorder %s26, 1
      %p112 = por %p110, %p111
      %p113 = scmp.ne.s32.totalorder %s104, %s105
      %p114 = scmp.eq.s32.totalorder %s26, 0
      %p115 = por %p113, %p114
      %p116 = scmp.ne.s32.totalorder %s104, %s105
      %p117 = scmp.eq.s32.totalorder %s27, 1
      %p118 = por %p116, %p117
      %p120 = scmp.ne.s32.totalorder %s105, %s119
      %p121 = scmp.eq.s32.totalorder %s27, 0
      %p122 = por %p120, %p121
      %s124 = sadd.s32 %s123, 1
      %p127 = scmp.eq.s32.totalorder %s21, 1
      %p128 = scmp.ne.s32.totalorder %s123, %s125
      %p129 = scmp.eq.s32.totalorder %s21, 0
      %p130 = por %p128, %p129
      %p131 = scmp.ne.s32.totalorder %s123, %s125
      %p132 = scmp.eq.s32.totalorder %s26, 1
      %p133 = por %p131, %p132
      %p134 = scmp.ne.s32.totalorder %s125, %s126
      %p135 = scmp.eq.s32.totalorder %s26, 0
      %p136 = por %p134, %p135
      %p137 = scmp.ne.s32.totalorder %s125, %s126
      %p138 = scmp.eq.s32.totalorder %s27, 1
      %p139 = por %p137, %p138
      %p141 = scmp.ne.s32.totalorder %s126, %s140
      %p142 = scmp.eq.s32.totalorder %s27, 0
      %p143 = por %p141, %p142
      %s145 = sadd.s32 %s144, 1
      %p148 = scmp.eq.s32.totalorder %s21, 1
      %p149 = scmp.ne.s32.totalorder %s144, %s146
      %p150 = scmp.eq.s32.totalorder %s21, 0
      %p151 = por %p149, %p150
      %p152 = scmp.ne.s32.totalorder %s144, %s146
      %p153 = scmp.eq.s32.totalorder %s26, 1
      %p154 = por %p152, %p153
      %p155 = scmp.ne.s32.totalorder %s146, %s147
      %p156 = scmp.eq.s32.totalorder %s26, 0
      %p157 = por %p155, %p156
      %p158 = scmp.ne.s32.totalorder %s146, %s147
      %p159 = scmp.eq.s32.totalorder %s27, 1
      %p160 = por %p158, %p159
      %p162 = scmp.ne.s32.totalorder %s147, %s161
      %p163 = scmp.eq.s32.totalorder %s27, 0
      %p164 = por %p162, %p163
      %s166 = sadd.s32 %s165, 1
      %p169 = scmp.eq.s32.totalorder %s21, 1
      %p170 = scmp.ne.s32.totalorder %s165, %s167
      %p171 = scmp.eq.s32.totalorder %s21, 0
      %p172 = por %p170, %p171
      %p173 = scmp.ne.s32.totalorder %s165, %s167
      %p174 = scmp.eq.s32.totalorder %s26, 1
      %p175 = por %p173, %p174
      %p176 = scmp.ne.s32.totalorder %s167, %s168
      %p177 = scmp.eq.s32.totalorder %s26, 0
      %p178 = por %p176, %p177
      %p179 = scmp.ne.s32.totalorder %s167, %s168
      %p180 = scmp.eq.s32.totalorder %s27, 1
      %p181 = por %p179, %p180
      %p183 = scmp.ne.s32.totalorder %s168, %s182
      %p184 = scmp.eq.s32.totalorder %s27, 0
      %p185 = por %p183, %p184
      %s187 = sadd.s32 %s186, 1
      %p190 = scmp.eq.s32.totalorder %s21, 1
      %p191 = scmp.ne.s32.totalorder %s186, %s188
      %p192 = scmp.eq.s32.totalorder %s21, 0
      %p193 = por %p191, %p192
      %p194 = scmp.ne.s32.totalorder %s186, %s188
      %p195 = scmp.eq.s32.totalorder %s26, 1
      %p196 = por %p194, %p195
      %p197 = scmp.ne.s32.totalorder %s188, %s189
      %p198 = scmp.eq.s32.totalorder %s26, 0
      %p199 = por %p197, %p198
      %p200 = scmp.ne.s32.totalorder %s188, %s189
      %p201 = scmp.eq.s32.totalorder %s27, 1
      %p202 = por %p200, %p201
      %p204 = scmp.ne.s32.totalorder %s189, %s203
      %p205 = scmp.eq.s32.totalorder %s27, 0
      %p206 = por %p204, %p205
      %s208 = sadd.s32 %s207, 1
      %p211 = scmp.eq.s32.totalorder %s21, 1
      %p212 = scmp.ne.s32.totalorder %s207, %s209
      %p213 = scmp.eq.s32.totalorder %s21, 0
      %p214 = por %p212, %p213
      %p215 = scmp.ne.s32.totalorder %s207, %s209
      %p216 = scmp.eq.s32.totalorder %s26, 1
      %p217 = por %p215, %p216
      %p218 = scmp.ne.s32.totalorder %s209, %s210
      %p219 = scmp.eq.s32.totalorder %s26, 0
      %p220 = por %p218, %p219
      %p221 = scmp.ne.s32.totalorder %s209, %s210
      %p222 = scmp.eq.s32.totalorder %s27, 1
      %p223 = por %p221, %p222
      %p225 = scmp.ne.s32.totalorder %s210, %s224
      %p226 = scmp.eq.s32.totalorder %s27, 0
      %p227 = por %p225, %p226
      %s229 = sadd.s32 %s228, 1
      %p232 = scmp.eq.s32.totalorder %s21, 1
      %p233 = scmp.ne.s32.totalorder %s228, %s230
      %p234 = scmp.eq.s32.totalorder %s21, 0
      %p235 = por %p233, %p234
      %p236 = scmp.ne.s32.totalorder %s228, %s230
      %p237 = scmp.eq.s32.totalorder %s26, 1
      %p238 = por %p236, %p237
      %p239 = scmp.ne.s32.totalorder %s230, %s231
      %p240 = scmp.eq.s32.totalorder %s26, 0
      %p241 = por %p239, %p240
      %p242 = scmp.ne.s32.totalorder %s230, %s231
      %p243 = scmp.eq.s32.totalorder %s27, 1
      %p244 = por %p242, %p243
      %p246 = scmp.ne.s32.totalorder %s231, %s245
      %p247 = scmp.eq.s32.totalorder %s27, 0
      %p248 = por %p246, %p247
      %s250 = sadd.s32 %s249, 1
      %p253 = scmp.eq.s32.totalorder %s21, 1
      %p254 = scmp.ne.s32.totalorder %s249, %s251
      %p255 = scmp.eq.s32.totalorder %s21, 0
      %p256 = por %p254, %p255
      %p257 = scmp.ne.s32.totalorder %s249, %s251
      %p258 = scmp.eq.s32.totalorder %s26, 1
      %p259 = por %p257, %p258
      %p260 = scmp.ne.s32.totalorder %s251, %s252
      %p261 = scmp.eq.s32.totalorder %s26, 0
      %p262 = por %p260, %p261
      %p263 = scmp.ne.s32.totalorder %s251, %s252
      %p264 = scmp.eq.s32.totalorder %s27, 1
      %p265 = por %p263, %p264
      %p267 = scmp.ne.s32.totalorder %s252, %s266
      %p268 = scmp.eq.s32.totalorder %s27, 0
      %p269 = por %p267, %p268
      %s271 = sadd.s32 %s270, 1
      %p274 = scmp.eq.s32.totalorder %s21, 1
      %p275 = scmp.ne.s32.totalorder %s270, %s272
      %p276 = scmp.eq.s32.totalorder %s21, 0
      %p277 = por %p275, %p276
      %p278 = scmp.ne.s32.totalorder %s270, %s272
      %p279 = scmp.eq.s32.totalorder %s26, 1
      %p280 = por %p278, %p279
      %p281 = scmp.ne.s32.totalorder %s272, %s273
      %p282 = scmp.eq.s32.totalorder %s26, 0
      %p283 = por %p281, %p282
      %p284 = scmp.ne.s32.totalorder %s272, %s273
      %p285 = scmp.eq.s32.totalorder %s27, 1
      %p286 = por %p284, %p285
      %p288 = scmp.ne.s32.totalorder %s273, %s287
      %p289 = scmp.eq.s32.totalorder %s27, 0
      %p290 = por %p288, %p289
      %s291 = ssub.s32 %s21, %s28
      %p292 = scmp.eq.s32.totalorder %s291, 0
      %s294 = sadd.s32 %s293, 1
      %s295 = scalar_select %p292, %s293, %s294
      %p298 = pneg %p292
      %p299 = scmp.eq.s32.totalorder %s21, 1
      %p300 = por %p298, %p299
      %p301 = scmp.ne.s32.totalorder %s293, %s296
      %p302 = scmp.eq.s32.totalorder %s21, 0
      %p303 = por %p301, %p302
      %p304 = scmp.ne.s32.totalorder %s293, %s296
      %p305 = scmp.eq.s32.totalorder %s26, 1
      %p306 = por %p304, %p305
      %p307 = scmp.ne.s32.totalorder %s296, %s297
      %p308 = scmp.eq.s32.totalorder %s26, 0
      %p309 = por %p307, %p308
      %p310 = scmp.ne.s32.totalorder %s296, %s297
      %p311 = scmp.eq.s32.totalorder %s27, 1
      %p312 = por %p310, %p311
      %p314 = scmp.ne.s32.totalorder %s297, %s313
      %p315 = scmp.eq.s32.totalorder %s27, 0
      %p316 = por %p314, %p315
      %p317 = scmp.le.s32.totalorder 1, %s21
      %p318 = scmp.lt.s32.totalorder %s21, 3
      %p319 = pnand %p317, %p318
      %p320 = pneg %p319
      // Predicated region
      $region9: #{window_context_attention.1} parent=5 // pred_check
        _
      $region10: #{window_context_attention.1} parent=5 // pred_check_branch
        %322 = sbr.rel (%p319) target = $region12
      $region11: #{window_context_attention.1} parent=5 // pred_region
        %s323 = ssub.s32 %s21, 1
        // Predicated region
        $region13: #{window_context_attention.1} parent=11 // pred_check
          %p324 = pneg %p94
        $region14: #{window_context_attention.1} parent=11 // pred_check_branch
          %326 = sbr.rel (%p324) target = $region16
        $region15: #{window_context_attention.1} parent=11 // pred_region
          _
        $region16: #{window_context_attention.1} parent=11 // pred_fallthru
          _
        // Predicated region
        $region17: #{window_context_attention.1} parent=11 // pred_check
          %p327 = pneg %p115
        $region18: #{window_context_attention.1} parent=11 // pred_check_branch
          %329 = sbr.rel (%p327) target = $region20
        $region19: #{window_context_attention.1} parent=11 // pred_region
          _
        $region20: #{window_context_attention.1} parent=11 // pred_fallthru
          _
        // Predicated region
        $region21: #{window_context_attention.1} parent=11 // pred_check
          %p330 = pneg %p136
        $region22: #{window_context_attention.1} parent=11 // pred_check_branch
          %332 = sbr.rel (%p330) target = $region24
        $region23: #{window_context_attention.1} parent=11 // pred_region
          _
        $region24: #{window_context_attention.1} parent=11 // pred_fallthru
          _
        // Predicated region
        $region25: #{window_context_attention.1} parent=11 // pred_check
          %p333 = pneg %p157
        $region26: #{window_context_attention.1} parent=11 // pred_check_branch
          %335 = sbr.rel (%p333) target = $region28
        $region27: #{window_context_attention.1} parent=11 // pred_region
          _
        $region28: #{window_context_attention.1} parent=11 // pred_fallthru
          _
        // Predicated region
        $region29: #{window_context_attention.1} parent=11 // pred_check
          %p336 = pneg %p178
        $region30: #{window_context_attention.1} parent=11 // pred_check_branch
          %338 = sbr.rel (%p336) target = $region32
        $region31: #{window_context_attention.1} parent=11 // pred_region
          _
        $region32: #{window_context_attention.1} parent=11 // pred_fallthru
          _
        // Predicated region
        $region33: #{window_context_attention.1} parent=11 // pred_check
          %p339 = pneg %p199
        $region34: #{window_context_attention.1} parent=11 // pred_check_branch
          %341 = sbr.rel (%p339) target = $region36
        $region35: #{window_context_attention.1} parent=11 // pred_region
          _
        $region36: #{window_context_attention.1} parent=11 // pred_fallthru
          _
        // Predicated region
        $region37: #{window_context_attention.1} parent=11 // pred_check
          %p342 = pneg %p220
        $region38: #{window_context_attention.1} parent=11 // pred_check_branch
          %344 = sbr.rel (%p342) target = $region40
        $region39: #{window_context_attention.1} parent=11 // pred_region
          _
        $region40: #{window_context_attention.1} parent=11 // pred_fallthru
          _
        // Predicated region
        $region41: #{window_context_attention.1} parent=11 // pred_check
          %p345 = pneg %p241
        $region42: #{window_context_attention.1} parent=11 // pred_check_branch
          %347 = sbr.rel (%p345) target = $region44
        $region43: #{window_context_attention.1} parent=11 // pred_region
          _
        $region44: #{window_context_attention.1} parent=11 // pred_fallthru
          _
        // Predicated region
        $region45: #{window_context_attention.1} parent=11 // pred_check
          %p348 = pneg %p262
        $region46: #{window_context_attention.1} parent=11 // pred_check_branch
          %350 = sbr.rel (%p348) target = $region48
        $region47: #{window_context_attention.1} parent=11 // pred_region
          _
        $region48: #{window_context_attention.1} parent=11 // pred_fallthru
          _
        // Predicated region
        $region49: #{window_context_attention.1} parent=11 // pred_check
          %p351 = pneg %p283
        $region50: #{window_context_attention.1} parent=11 // pred_check_branch
          %353 = sbr.rel (%p351) target = $region52
        $region51: #{window_context_attention.1} parent=11 // pred_region
          _
        $region52: #{window_context_attention.1} parent=11 // pred_fallthru
          _
      $region12: #{window_context_attention.1} parent=5 // pred_fallthru
        _
      %p354 = scmp.lt.s32.totalorder %s21, 2
      // Predicated region
      $region53: #{window_context_attention.1} parent=5 // pred_check
        %p355 = pneg %p354
      $region54: #{window_context_attention.1} parent=5 // pred_check_branch
        %357 = sbr.rel (%p355) target = $region56
      $region55: #{window_context_attention.1} parent=5 // pred_region
        // Predicated region
        $region57: #{window_context_attention.1} parent=55 // pred_check
          %p358 = pneg %p41
        $region58: #{window_context_attention.1} parent=55 // pred_check_branch
          %360 = sbr.rel (%p358) target = $region60
        $region59: #{window_context_attention.1} parent=55 // pred_region
          %s361 = smul.u32 8, %s21
          %p362 = scmp.lt.s32.totalorder %s361, 15
          %s363 = scalar_select %p362, %s361, 15
          %s364 = smul.addr %s363, 4
          %s365 = scalar_lea.vmem %s0, %s364
          %s366 = smul.u32 8, %s21
        $region60: #{window_context_attention.1} parent=55 // pred_fallthru
          _
        // Predicated region
        $region61: #{window_context_attention.1} parent=55 // pred_check
          %p367 = pneg %p67
        $region62: #{window_context_attention.1} parent=55 // pred_check_branch
          %369 = sbr.rel (%p367) target = $region64
        $region63: #{window_context_attention.1} parent=55 // pred_region
          %s370 = smul.u32 8, %s21
          %p371 = scmp.lt.s32.totalorder %s370, 15
          %s372 = scalar_select %p371, %s370, 15
          %s373 = smul.addr %s372, 4
          %s374 = scalar_lea.vmem %s1, %s373
          %s375 = smul.u32 8, %s21
        $region64: #{window_context_attention.1} parent=55 // pred_fallthru
          _
      $region56: #{window_context_attention.1} parent=5 // pred_fallthru
        _
      %p376 = scmp.le.s32.totalorder 1, %s21
      %p377 = scmp.lt.s32.totalorder %s21, 3
      %p378 = pnand %p376, %p377
      %p379 = pneg %p378
      // Predicated region
      $region65: #{window_context_attention.1} parent=5 // pred_check
        _
      $region66: #{window_context_attention.1} parent=5 // pred_check_branch
        %381 = sbr.rel (%p378) target = $region68
      $region67: #{window_context_attention.1} parent=5 // pred_region
        %s382 = ssub.s32 %s21, 1
        %s383 = smul.u32 8, %s26
        %p384 = scmp.lt.s32.totalorder %s383, 15
        %s385 = scalar_select %p384, %s383, 15
        %s386 = smul.addr %s385, 4
        %s387 = scalar_lea.vmem %s0, %s386
        %p388 = pneg %p47
        %p389 = pneg %p44
        %s390 = smul.u32 8, %s26
        %p391 = scmp.lt.s32.totalorder %s390, 15
        %s392 = scalar_select %p391, %s390, 15
        %s393 = smul.addr %s392, 4
        %s394 = scalar_lea.vmem %s1, %s393
        %p395 = pneg %p73
        %p396 = pneg %p70
        %p397 = pneg %p94
        %p398 = pneg %p91
        %p399 = pneg %p115
        %p400 = pneg %p112
        %p401 = pneg %p136
        %p402 = pneg %p133
        %p403 = pneg %p157
        %p404 = pneg %p154
        %p405 = pneg %p178
        %p406 = pneg %p175
        %p407 = pneg %p199
        %p408 = pneg %p196
        %p409 = pneg %p220
        %p410 = pneg %p217
        %p411 = pneg %p241
        %p412 = pneg %p238
        %p413 = pneg %p262
        %p414 = pneg %p259
        %p415 = pneg %p283
        %p416 = pneg %p280
        %p417 = pneg %p309
        %p418 = pneg %p306
        %s419 = sand.u32 %s296, 1
        %s420 = scalar_lea.sflag [#allocation3], %s419
        %s421 = sand.u32 %s296, 1
        %s422 = smul.addr %s421, 64
        %s423 = scalar_lea.vmem [#allocation2], %s422
        %s424 = smul.u32 8, %s26
        %p425 = scmp.lt.s32.totalorder %s424, 15
        %s426 = scalar_select %p425, %s424, 15
        %s427 = smul.addr %s426, 4
        %s428 = scalar_lea.vmem %s0, %s427
        %s429 = smul.u32 8, %s26
        %s430 = smul.u32 8, %s26
        %p431 = scmp.lt.s32.totalorder %s430, 15
        %s432 = scalar_select %p431, %s430, 15
        %s433 = smul.addr %s432, 4
        %s434 = scalar_lea.vmem %s1, %s433
        %s435 = smul.u32 8, %s26
        %s436 = smul.u32 8, %s26
        %v438 = vld [vmem:[%s428] sm:$0xf]
        %v439 = vld [vmem:[%s428 + $0x4] sm:$0xf]
        %v440 = vld [vmem:[%s428 + $0x8] sm:$0xf]
        %v441 = vld [vmem:[%s428 + $0xc] sm:$0xf]
        %v442 = vld [vmem:[%s428 + $0x10] sm:$0xf]
        %v443 = vld [vmem:[%s428 + $0x14] sm:$0xf]
        %v444 = vld [vmem:[%s428 + $0x18] sm:$0xf]
        %v445 = vld [vmem:[%s428 + $0x1c] sm:$0xf]
        %v446 = vld [vmem:[%s2] sm:$0xf]
        %v447 = vld [vmem:[%s2 + $0x4] sm:$0xf]
        %v448 = vld [vmem:[%s2 + $0x8] sm:$0xf]
        %v449 = vld [vmem:[%s2 + $0xc] sm:$0xf]
        %v450 = vld [vmem:[%s3] sm:$0x1]
        %v452 = vlaneseq
        %v453 = vshrl.u32 %v452, 7
        %v454 = vsub.s32 0, %v453
        %v455 = vrot.slane %v450, %v454
        %v465 = vunpack.c.l.b16 %v438
        %v466 = vunpack.c.l.b16 %v439
        %v467 = vunpack.c.l.b16 %v440
        %v468 = vunpack.c.l.b16 %v441
        %v469 = vunpack.c.l.b16 %v442
        %v470 = vunpack.c.l.b16 %v443
        %v471 = vunpack.c.l.b16 %v444
        %v472 = vunpack.c.l.b16 %v445
        %v473 = vpack.c.b16 %v466, %v465
        %v474 = vpack.c.b16 %v468, %v467
        %v475 = vpack.c.b16 %v470, %v469
        %v476 = vpack.c.b16 %v472, %v471
        %v481 = vunpack.c.l.b16 %v446
        %v482 = vunpack.c.l.b16 %v447
        %v483 = vunpack.c.l.b16 %v448
        %v484 = vunpack.c.l.b16 %v449
        %v485 = vpack.c.b16 %v482, %v481
        %v486 = vpack.c.b16 %v484, %v483
        %vm489 = vcmask 261120
        %v491 = vsel %vm489, %v473, 0
        %v494 = vsel %vm489, %v474, 0
        %v497 = vsel %vm489, %v475, 0
        %v500 = vsel %vm489, %v476, 0
        %502 = vmatprep.subr.bf16.mxu0 0
        %503 = vmatpush1.bf16.msra.mxu0 0
        %504 = vmatprep.subr.bf16.mxu0 0
        %505 = vmatpush1.bf16.msra.mxu0 0
        %506 = vmatprep.subr.bf16.mxu0 0
        %507 = vmatpush1.bf16.msra.mxu0 0
        %508 = vmatprep.subr.bf16.mxu0 0
        %509 = vmatpush1.bf16.msra.mxu0 0
        %510 = vmatprep.subr.bf16.mxu0 0
        %511 = vmatpush1.bf16.msra.mxu0 0
        %512 = vmatprep.subr.bf16.mxu0 0
        %513 = vmatpush1.bf16.msra.mxu0 0
        %514 = vmatprep.subr.bf16.mxu0 0
        %515 = vmatpush1.bf16.msra.mxu0 %v486
        %516 = vmatprep.subr.bf16.mxu0 0
        %517 = vmatpush1.bf16.msra.mxu0 %v485
        %518 = vmatprep.subr.bf16.mxu0 0
        %519 = vmatpush2.bf16.msra.mxu0 0
        %520 = vmatprep.subr.bf16.mxu0 0
        %521 = vmatpush2.bf16.msra.mxu0 0
        %522 = vmatprep.subr.bf16.mxu0 0
        %523 = vmatpush2.bf16.msra.mxu0 0
        %524 = vmatprep.subr.bf16.mxu0 0
        %525 = vmatpush2.bf16.msra.mxu0 0
        %526 = vmatprep.subr.bf16.mxu0 0
        %527 = vmatpush2.bf16.msra.mxu0 0
        %528 = vmatprep.subr.bf16.mxu0 0
        %529 = vmatpush2.bf16.msra.mxu0 0
        %530 = vmatprep.subr.bf16.mxu0 0
        %531 = vmatpush2.bf16.msra.mxu0 0
        %532 = vmatprep.subr.bf16.mxu0 0
        %533 = vmatpush2.bf16.msra.mxu0 0
        %534 = vmatprep.mubr.bf16.mxu0 0
        %535 = vmatmul.mubr.bf16.gmra.mxu0 %v491
        %v536 = vpop.f32.mrf.mxu0
        %v537 = vadd.f32 %v455, %v536
        %v538 = vpop.f32.mrf.mxu0
        %v539 = vpop.f32.mrf.mxu0
        %v540 = vadd.f32 %v455, %v539
        %v541 = vpop.f32.mrf.mxu0
        %542 = vmatprep.mubr.bf16.mxu0 0
        %543 = vmatmul.mubr.bf16.gmra.mxu0 %v494
        %v544 = vpop.f32.mrf.mxu0
        %v545 = vadd.f32 %v455, %v544
        %v546 = vpop.f32.mrf.mxu0
        %v547 = vpop.f32.mrf.mxu0
        %v548 = vadd.f32 %v455, %v547
        %v549 = vpop.f32.mrf.mxu0
        %550 = vmatprep.mubr.bf16.mxu0 0
        %551 = vmatmul.mubr.bf16.gmra.mxu0 %v497
        %v552 = vpop.f32.mrf.mxu0
        %v553 = vadd.f32 %v455, %v552
        %v554 = vpop.f32.mrf.mxu0
        %v555 = vpop.f32.mrf.mxu0
        %v556 = vadd.f32 %v455, %v555
        %v557 = vpop.f32.mrf.mxu0
        %558 = vmatprep.mubr.bf16.mxu0 0
        %559 = vmatmul.mubr.bf16.gmra.mxu0 %v500
        %v560 = vpop.f32.mrf.mxu0
        %v561 = vadd.f32 %v455, %v560
        %v562 = vpop.f32.mrf.mxu0
        %v563 = vpop.f32.mrf.mxu0
        %v564 = vadd.f32 %v455, %v563
        %v565 = vpop.f32.mrf.mxu0
        %566 = vdwg.mxu0
        %v567 = vld [vmem:[%s434] sm:$0xf]
        %v568 = vld [vmem:[%s434 + $0x4] sm:$0xf]
        %v569 = vld [vmem:[%s434 + $0x8] sm:$0xf]
        %v570 = vld [vmem:[%s434 + $0xc] sm:$0xf]
        %v571 = vld [vmem:[%s434 + $0x10] sm:$0xf]
        %v572 = vld [vmem:[%s434 + $0x14] sm:$0xf]
        %v573 = vld [vmem:[%s434 + $0x18] sm:$0xf]
        %v574 = vld [vmem:[%s434 + $0x1c] sm:$0xf]
        %v575 = vld [vmem:[%s4] sm:$0xf]
        %v576 = vld [vmem:[%s4 + $0x4] sm:$0xf]
        %v577 = vld [vmem:[%s4 + $0x8] sm:$0xf]
        %v578 = vld [vmem:[%s4 + $0xc] sm:$0xf]
        %v579 = vld [vmem:[%s5] sm:$0x1]
        %v581 = vlaneseq
        %v582 = vshrl.u32 %v581, 7
        %v583 = vsub.s32 0, %v582
        %v584 = vrot.slane %v579, %v583
        %v594 = vunpack.c.l.b16 %v567
        %v595 = vunpack.c.l.b16 %v568
        %v596 = vunpack.c.l.b16 %v569
        %v597 = vunpack.c.l.b16 %v570
        %v598 = vunpack.c.l.b16 %v571
        %v599 = vunpack.c.l.b16 %v572
        %v600 = vunpack.c.l.b16 %v573
        %v601 = vunpack.c.l.b16 %v574
        %v602 = vpack.c.b16 %v595, %v594
        %v603 = vpack.c.b16 %v597, %v596
        %v604 = vpack.c.b16 %v599, %v598
        %v605 = vpack.c.b16 %v601, %v600
        %v610 = vunpack.c.l.b16 %v575
        %v611 = vunpack.c.l.b16 %v576
        %v612 = vunpack.c.l.b16 %v577
        %v613 = vunpack.c.l.b16 %v578
        %v614 = vpack.c.b16 %v611, %v610
        %v615 = vpack.c.b16 %v613, %v612
        %v619 = vsel %vm489, %v602, 0
        %v622 = vsel %vm489, %v603, 0
        %v625 = vsel %vm489, %v604, 0
        %v628 = vsel %vm489, %v605, 0
        %630 = vmatprep.subr.bf16.mxu0 0
        %631 = vmatpush1.bf16.msra.mxu0 0
        %632 = vmatprep.subr.bf16.mxu0 0
        %633 = vmatpush1.bf16.msra.mxu0 0
        %634 = vmatprep.subr.bf16.mxu0 0
        %635 = vmatpush1.bf16.msra.mxu0 0
        %636 = vmatprep.subr.bf16.mxu0 0
        %637 = vmatpush1.bf16.msra.mxu0 0
        %638 = vmatprep.subr.bf16.mxu0 0
        %639 = vmatpush1.bf16.msra.mxu0 0
        %640 = vmatprep.subr.bf16.mxu0 0
        %641 = vmatpush1.bf16.msra.mxu0 0
        %642 = vmatprep.subr.bf16.mxu0 0
        %643 = vmatpush1.bf16.msra.mxu0 %v615
        %644 = vmatprep.subr.bf16.mxu0 0
        %645 = vmatpush1.bf16.msra.mxu0 %v614
        %646 = vmatprep.subr.bf16.mxu0 0
        %647 = vmatpush2.bf16.msra.mxu0 0
        %648 = vmatprep.subr.bf16.mxu0 0
        %649 = vmatpush2.bf16.msra.mxu0 0
        %650 = vmatprep.subr.bf16.mxu0 0
        %651 = vmatpush2.bf16.msra.mxu0 0
        %652 = vmatprep.subr.bf16.mxu0 0
        %653 = vmatpush2.bf16.msra.mxu0 0
        %654 = vmatprep.subr.bf16.mxu0 0
        %655 = vmatpush2.bf16.msra.mxu0 0
        %656 = vmatprep.subr.bf16.mxu0 0
        %657 = vmatpush2.bf16.msra.mxu0 0
        %658 = vmatprep.subr.bf16.mxu0 0
        %659 = vmatpush2.bf16.msra.mxu0 0
        %660 = vmatprep.subr.bf16.mxu0 0
        %661 = vmatpush2.bf16.msra.mxu0 0
        %662 = vmatprep.mubr.bf16.mxu0 0
        %663 = vmatmul.mubr.bf16.gmra.mxu0 %v619
        %v664 = vpop.f32.mrf.mxu0
        %v665 = vadd.f32 %v584, %v664
        %v666 = vpop.f32.mrf.mxu0
        %v667 = vpop.f32.mrf.mxu0
        %v668 = vadd.f32 %v584, %v667
        %v669 = vpop.f32.mrf.mxu0
        %670 = vmatprep.mubr.bf16.mxu0 0
        %671 = vmatmul.mubr.bf16.gmra.mxu0 %v622
        %v672 = vpop.f32.mrf.mxu0
        %v673 = vadd.f32 %v584, %v672
        %v674 = vpop.f32.mrf.mxu0
        %v675 = vpop.f32.mrf.mxu0
        %v676 = vadd.f32 %v584, %v675
        %v677 = vpop.f32.mrf.mxu0
        %678 = vmatprep.mubr.bf16.mxu0 0
        %679 = vmatmul.mubr.bf16.gmra.mxu0 %v625
        %v680 = vpop.f32.mrf.mxu0
        %v681 = vadd.f32 %v584, %v680
        %v682 = vpop.f32.mrf.mxu0
        %v683 = vpop.f32.mrf.mxu0
        %v684 = vadd.f32 %v584, %v683
        %v685 = vpop.f32.mrf.mxu0
        %686 = vmatprep.mubr.bf16.mxu0 0
        %687 = vmatmul.mubr.bf16.gmra.mxu0 %v628
        %v688 = vpop.f32.mrf.mxu0
        %v689 = vadd.f32 %v584, %v688
        %v690 = vpop.f32.mrf.mxu0
        %v691 = vpop.f32.mrf.mxu0
        %v692 = vadd.f32 %v584, %v691
        %v693 = vpop.f32.mrf.mxu0
        %694 = vdwg.mxu0
        %703 = vrot.lane.b32.xlu0 %v537, 120
        %v704 = vpop.permute.xlu0 %703
        %705 = vrot.lane.b32.xlu0 %v540, 120
        %v706 = vpop.permute.xlu0 %705
        %707 = vrot.lane.b32.xlu0 %v545, 120
        %v708 = vpop.permute.xlu0 %707
        %709 = vrot.lane.b32.xlu0 %v548, 120
        %v710 = vpop.permute.xlu0 %709
        %711 = vrot.lane.b32.xlu0 %v553, 120
        %v712 = vpop.permute.xlu0 %711
        %713 = vrot.lane.b32.xlu0 %v556, 120
        %v714 = vpop.permute.xlu0 %713
        %715 = vrot.lane.b32.xlu0 %v561, 120
        %v716 = vpop.permute.xlu0 %715
        %717 = vrot.lane.b32.xlu0 %v564, 120
        %v718 = vpop.permute.xlu0 %717
        %727 = vrot.lane.b32.xlu0 %v537, 112
        %v728 = vpop.permute.xlu0 %727
        %729 = vrot.lane.b32.xlu0 %v540, 112
        %v730 = vpop.permute.xlu0 %729
        %731 = vrot.lane.b32.xlu0 %v545, 112
        %v732 = vpop.permute.xlu0 %731
        %733 = vrot.lane.b32.xlu0 %v548, 112
        %v734 = vpop.permute.xlu0 %733
        %735 = vrot.lane.b32.xlu0 %v553, 112
        %v736 = vpop.permute.xlu0 %735
        %737 = vrot.lane.b32.xlu0 %v556, 112
        %v738 = vpop.permute.xlu0 %737
        %739 = vrot.lane.b32.xlu0 %v561, 112
        %v740 = vpop.permute.xlu0 %739
        %741 = vrot.lane.b32.xlu0 %v564, 112
        %v742 = vpop.permute.xlu0 %741
        %751 = vrot.lane.b32.xlu0 %v537, 104
        %v752 = vpop.permute.xlu0 %751
        %753 = vrot.lane.b32.xlu0 %v540, 104
        %v754 = vpop.permute.xlu0 %753
        %755 = vrot.lane.b32.xlu0 %v545, 104
        %v756 = vpop.permute.xlu0 %755
        %757 = vrot.lane.b32.xlu0 %v548, 104
        %v758 = vpop.permute.xlu0 %757
        %759 = vrot.lane.b32.xlu0 %v553, 104
        %v760 = vpop.permute.xlu0 %759
        %761 = vrot.lane.b32.xlu0 %v556, 104
        %v762 = vpop.permute.xlu0 %761
        %763 = vrot.lane.b32.xlu0 %v561, 104
        %v764 = vpop.permute.xlu0 %763
        %765 = vrot.lane.b32.xlu0 %v564, 104
        %v766 = vpop.permute.xlu0 %765
        %783 = vrot.lane.b32.xlu0 %v665, 120
        %v784 = vpop.permute.xlu0 %783
        %785 = vrot.lane.b32.xlu0 %v668, 120
        %v786 = vpop.permute.xlu0 %785
        %787 = vrot.lane.b32.xlu0 %v673, 120
        %v788 = vpop.permute.xlu0 %787
        %789 = vrot.lane.b32.xlu0 %v676, 120
        %v790 = vpop.permute.xlu0 %789
        %791 = vrot.lane.b32.xlu0 %v681, 120
        %v792 = vpop.permute.xlu0 %791
        %793 = vrot.lane.b32.xlu0 %v684, 120
        %v794 = vpop.permute.xlu0 %793
        %795 = vrot.lane.b32.xlu0 %v689, 120
        %v796 = vpop.permute.xlu0 %795
        %797 = vrot.lane.b32.xlu0 %v692, 120
        %v798 = vpop.permute.xlu0 %797
        %807 = vrot.lane.b32.xlu0 %v665, 112
        %v808 = vpop.permute.xlu0 %807
        %809 = vrot.lane.b32.xlu0 %v668, 112
        %v810 = vpop.permute.xlu0 %809
        %811 = vrot.lane.b32.xlu0 %v673, 112
        %v812 = vpop.permute.xlu0 %811
        %813 = vrot.lane.b32.xlu0 %v676, 112
        %v814 = vpop.permute.xlu0 %813
        %815 = vrot.lane.b32.xlu0 %v681, 112
        %v816 = vpop.permute.xlu0 %815
        %817 = vrot.lane.b32.xlu0 %v684, 112
        %v818 = vpop.permute.xlu0 %817
        %819 = vrot.lane.b32.xlu0 %v689, 112
        %v820 = vpop.permute.xlu0 %819
        %821 = vrot.lane.b32.xlu0 %v692, 112
        %v822 = vpop.permute.xlu0 %821
        %831 = vrot.lane.b32.xlu0 %v665, 104
        %v832 = vpop.permute.xlu0 %831
        %833 = vrot.lane.b32.xlu0 %v668, 104
        %v834 = vpop.permute.xlu0 %833
        %835 = vrot.lane.b32.xlu0 %v673, 104
        %v836 = vpop.permute.xlu0 %835
        %837 = vrot.lane.b32.xlu0 %v676, 104
        %v838 = vpop.permute.xlu0 %837
        %839 = vrot.lane.b32.xlu0 %v681, 104
        %v840 = vpop.permute.xlu0 %839
        %841 = vrot.lane.b32.xlu0 %v684, 104
        %v842 = vpop.permute.xlu0 %841
        %843 = vrot.lane.b32.xlu0 %v689, 104
        %v844 = vpop.permute.xlu0 %843
        %845 = vrot.lane.b32.xlu0 %v692, 104
        %v846 = vpop.permute.xlu0 %845
        %v855 = vpack.c.bf16 %v668, %v665
        %v856 = vpack.c.bf16 %v676, %v673
        %v857 = vpack.c.bf16 %v684, %v681
        %v858 = vpack.c.bf16 %v692, %v689
        %v859 = vpack.c.bf16 %v786, %v784
        %v860 = vpack.c.bf16 %v790, %v788
        %v861 = vpack.c.bf16 %v794, %v792
        %v862 = vpack.c.bf16 %v798, %v796
        %v863 = vpack.c.bf16 %v810, %v808
        %v864 = vpack.c.bf16 %v814, %v812
        %v865 = vpack.c.bf16 %v818, %v816
        %v866 = vpack.c.bf16 %v822, %v820
        %v867 = vpack.c.bf16 %v834, %v832
        %v868 = vpack.c.bf16 %v838, %v836
        %v869 = vpack.c.bf16 %v842, %v840
        %v870 = vpack.c.bf16 %v846, %v844
        %v871 = vld [vmem:[%s6] sm:$0xf]
        %v874 = vunpack.c.l.s4 1966171168
        %v875 = vunpack.c.0.s8 %v874
        %v876 = vlaneseq
        %v877 = vshrl.u32 %v876, 7
        %v878 = vsub.s32 %v875, %v877
        %v879 = vrot.slane %v871, %v878
        %v880 = vcombine.high %v879, %v879
        %v882 = vunpack.c.l.s4 1966171168
        %v883 = vunpack.c.0.s8 %v882
        %v884 = vlaneseq
        %v885 = vshrl.u32 %v884, 7
        %v886 = vsub.s32 %v883, %v885
        %v887 = vrot.slane %v879, %v886
        %v889 = vunpack.c.l.s4 1966171168
        %v890 = vunpack.c.0.s8 %v889
        %v891 = vlaneseq
        %v892 = vshrl.u32 %v891, 7
        %v893 = vsub.s32 %v890, %v892
        %v894 = vrot.slane %v880, %v893
        %v895 = vcombine.high %v887, %v887
        %v896 = vcombine.high %v894, %v894
        %v897 = vld [vmem:[%s7] sm:$0xf]
        %v900 = vunpack.c.l.s4 1966171168
        %v901 = vunpack.c.0.s8 %v900
        %v902 = vlaneseq
        %v903 = vshrl.u32 %v902, 7
        %v904 = vsub.s32 %v901, %v903
        %v905 = vrot.slane %v897, %v904
        %v906 = vcombine.high %v905, %v905
        %v908 = vunpack.c.l.s4 1966171168
        %v909 = vunpack.c.0.s8 %v908
        %v910 = vlaneseq
        %v911 = vshrl.u32 %v910, 7
        %v912 = vsub.s32 %v909, %v911
        %v913 = vrot.slane %v905, %v912
        %v915 = vunpack.c.l.s4 1966171168
        %v916 = vunpack.c.0.s8 %v915
        %v917 = vlaneseq
        %v918 = vshrl.u32 %v917, 7
        %v919 = vsub.s32 %v916, %v918
        %v920 = vrot.slane %v906, %v919
        %v921 = vcombine.high %v913, %v913
        %v922 = vcombine.high %v920, %v920
        %v923 = vmul.f32 %v537, %v537
        %v924 = vmul.f32 %v540, %v540
        %v925 = vmul.f32 %v545, %v545
        %v926 = vmul.f32 %v548, %v548
        %v927 = vmul.f32 %v553, %v553
        %v928 = vmul.f32 %v556, %v556
        %v929 = vmul.f32 %v561, %v561
        %v930 = vmul.f32 %v564, %v564
        %v931 = vmul.f32 %v704, %v704
        %v932 = vmul.f32 %v706, %v706
        %v933 = vmul.f32 %v708, %v708
        %v934 = vmul.f32 %v710, %v710
        %v935 = vmul.f32 %v712, %v712
        %v936 = vmul.f32 %v714, %v714
        %v937 = vmul.f32 %v716, %v716
        %v938 = vmul.f32 %v718, %v718
        %v939 = vmul.f32 %v728, %v728
        %v940 = vmul.f32 %v730, %v730
        %v941 = vmul.f32 %v732, %v732
        %v942 = vmul.f32 %v734, %v734
        %v943 = vmul.f32 %v736, %v736
        %v944 = vmul.f32 %v738, %v738
        %v945 = vmul.f32 %v740, %v740
        %v946 = vmul.f32 %v742, %v742
        %v947 = vmul.f32 %v752, %v752
        %v948 = vmul.f32 %v754, %v754
        %v949 = vmul.f32 %v756, %v756
        %v950 = vmul.f32 %v758, %v758
        %v951 = vmul.f32 %v760, %v760
        %v952 = vmul.f32 %v762, %v762
        %v953 = vmul.f32 %v764, %v764
        %v954 = vmul.f32 %v766, %v766
        %vm955 = vcmask 64512
        %v956 = vsel %vm955, %v923, 0.0
        %957 = vadd.xlane.f32.xlu0 %v956
        %v958 = vpop.xlane.xlu0 %957
        %v959 = vsel %vm955, %v924, 0.0
        %960 = vadd.xlane.f32.xlu0 %v959
        %v961 = vpop.xlane.xlu0 %960
        %v962 = vsel %vm955, %v925, 0.0
        %963 = vadd.xlane.f32.xlu0 %v962
        %v964 = vpop.xlane.xlu0 %963
        %v965 = vsel %vm955, %v926, 0.0
        %966 = vadd.xlane.f32.xlu0 %v965
        %v967 = vpop.xlane.xlu0 %966
        %v968 = vsel %vm955, %v927, 0.0
        %969 = vadd.xlane.f32.xlu0 %v968
        %v970 = vpop.xlane.xlu0 %969
        %v971 = vsel %vm955, %v928, 0.0
        %972 = vadd.xlane.f32.xlu0 %v971
        %v973 = vpop.xlane.xlu0 %972
        %v974 = vsel %vm955, %v929, 0.0
        %975 = vadd.xlane.f32.xlu0 %v974
        %v976 = vpop.xlane.xlu0 %975
        %v977 = vsel %vm955, %v930, 0.0
        %978 = vadd.xlane.f32.xlu0 %v977
        %v979 = vpop.xlane.xlu0 %978
        %v980 = vsel %vm955, %v931, 0.0
        %981 = vadd.xlane.f32.xlu0 %v980
        %v982 = vpop.xlane.xlu0 %981
        %v983 = vsel %vm955, %v932, 0.0
        %984 = vadd.xlane.f32.xlu0 %v983
        %v985 = vpop.xlane.xlu0 %984
        %v986 = vsel %vm955, %v933, 0.0
        %987 = vadd.xlane.f32.xlu0 %v986
        %v988 = vpop.xlane.xlu0 %987
        %v989 = vsel %vm955, %v934, 0.0
        %990 = vadd.xlane.f32.xlu0 %v989
        %v991 = vpop.xlane.xlu0 %990
        %v992 = vsel %vm955, %v935, 0.0
        %993 = vadd.xlane.f32.xlu0 %v992
        %v994 = vpop.xlane.xlu0 %993
        %v995 = vsel %vm955, %v936, 0.0
        %996 = vadd.xlane.f32.xlu0 %v995
        %v997 = vpop.xlane.xlu0 %996
        %v998 = vsel %vm955, %v937, 0.0
        %999 = vadd.xlane.f32.xlu0 %v998
        %v1000 = vpop.xlane.xlu0 %999
        %v1001 = vsel %vm955, %v938, 0.0
        %1002 = vadd.xlane.f32.xlu0 %v1001
        %v1003 = vpop.xlane.xlu0 %1002
        %v1004 = vsel %vm955, %v939, 0.0
        %1005 = vadd.xlane.f32.xlu0 %v1004
        %v1006 = vpop.xlane.xlu0 %1005
        %v1007 = vsel %vm955, %v940, 0.0
        %1008 = vadd.xlane.f32.xlu0 %v1007
        %v1009 = vpop.xlane.xlu0 %1008
        %v1010 = vsel %vm955, %v941, 0.0
        %1011 = vadd.xlane.f32.xlu0 %v1010
        %v1012 = vpop.xlane.xlu0 %1011
        %v1013 = vsel %vm955, %v942, 0.0
        %1014 = vadd.xlane.f32.xlu0 %v1013
        %v1015 = vpop.xlane.xlu0 %1014
        %v1016 = vsel %vm955, %v943, 0.0
        %1017 = vadd.xlane.f32.xlu0 %v1016
        %v1018 = vpop.xlane.xlu0 %1017
        %v1019 = vsel %vm955, %v944, 0.0
        %1020 = vadd.xlane.f32.xlu0 %v1019
        %v1021 = vpop.xlane.xlu0 %1020
        %v1022 = vsel %vm955, %v945, 0.0
        %1023 = vadd.xlane.f32.xlu0 %v1022
        %v1024 = vpop.xlane.xlu0 %1023
        %v1025 = vsel %vm955, %v946, 0.0
        %1026 = vadd.xlane.f32.xlu0 %v1025
        %v1027 = vpop.xlane.xlu0 %1026
        %v1028 = vsel %vm955, %v947, 0.0
        %1029 = vadd.xlane.f32.xlu0 %v1028
        %v1030 = vpop.xlane.xlu0 %1029
        %v1031 = vsel %vm955, %v948, 0.0
        %1032 = vadd.xlane.f32.xlu0 %v1031
        %v1033 = vpop.xlane.xlu0 %1032
        %v1034 = vsel %vm955, %v949, 0.0
        %1035 = vadd.xlane.f32.xlu0 %v1034
        %v1036 = vpop.xlane.xlu0 %1035
        %v1037 = vsel %vm955, %v950, 0.0
        %1038 = vadd.xlane.f32.xlu0 %v1037
        %v1039 = vpop.xlane.xlu0 %1038
        %v1040 = vsel %vm955, %v951, 0.0
        %1041 = vadd.xlane.f32.xlu0 %v1040
        %v1042 = vpop.xlane.xlu0 %1041
        %v1043 = vsel %vm955, %v952, 0.0
        %1044 = vadd.xlane.f32.xlu0 %v1043
        %v1045 = vpop.xlane.xlu0 %1044
        %v1046 = vsel %vm955, %v953, 0.0
        %1047 = vadd.xlane.f32.xlu0 %v1046
        %v1048 = vpop.xlane.xlu0 %1047
        %v1049 = vsel %vm955, %v954, 0.0
        %1050 = vadd.xlane.f32.xlu0 %v1049
        %v1051 = vpop.xlane.xlu0 %1050
        %v1052 = vrcp.pop 8.0
        %v1053 = vmul.f32 %v958, %v1052
        %v1054 = vmul.f32 %v961, %v1052
        %v1055 = vmul.f32 %v964, %v1052
        %v1056 = vmul.f32 %v967, %v1052
        %v1057 = vmul.f32 %v970, %v1052
        %v1058 = vmul.f32 %v973, %v1052
        %v1059 = vmul.f32 %v976, %v1052
        %v1060 = vmul.f32 %v979, %v1052
        %v1061 = vmul.f32 %v982, %v1052
        %v1062 = vmul.f32 %v985, %v1052
        %v1063 = vmul.f32 %v988, %v1052
        %v1064 = vmul.f32 %v991, %v1052
        %v1065 = vmul.f32 %v994, %v1052
        %v1066 = vmul.f32 %v997, %v1052
        %v1067 = vmul.f32 %v1000, %v1052
        %v1068 = vmul.f32 %v1003, %v1052
        %v1069 = vmul.f32 %v1006, %v1052
        %v1070 = vmul.f32 %v1009, %v1052
        %v1071 = vmul.f32 %v1012, %v1052
        %v1072 = vmul.f32 %v1015, %v1052
        %v1073 = vmul.f32 %v1018, %v1052
        %v1074 = vmul.f32 %v1021, %v1052
        %v1075 = vmul.f32 %v1024, %v1052
        %v1076 = vmul.f32 %v1027, %v1052
        %v1077 = vmul.f32 %v1030, %v1052
        %v1078 = vmul.f32 %v1033, %v1052
        %v1079 = vmul.f32 %v1036, %v1052
        %v1080 = vmul.f32 %v1039, %v1052
        %v1081 = vmul.f32 %v1042, %v1052
        %v1082 = vmul.f32 %v1045, %v1052
        %v1083 = vmul.f32 %v1048, %v1052
        %v1084 = vmul.f32 %v1051, %v1052
        %v1085 = vadd.f32 %v1053, 1e-08
        %v1086 = vadd.f32 %v1054, 1e-08
        %v1087 = vadd.f32 %v1055, 1e-08
        %v1088 = vadd.f32 %v1056, 1e-08
        %v1089 = vadd.f32 %v1057, 1e-08
        %v1090 = vadd.f32 %v1058, 1e-08
        %v1091 = vadd.f32 %v1059, 1e-08
        %v1092 = vadd.f32 %v1060, 1e-08
        %v1093 = vadd.f32 %v1061, 1e-08
        %v1094 = vadd.f32 %v1062, 1e-08
        %v1095 = vadd.f32 %v1063, 1e-08
        %v1096 = vadd.f32 %v1064, 1e-08
        %v1097 = vadd.f32 %v1065, 1e-08
        %v1098 = vadd.f32 %v1066, 1e-08
        %v1099 = vadd.f32 %v1067, 1e-08
        %v1100 = vadd.f32 %v1068, 1e-08
        %v1101 = vadd.f32 %v1069, 1e-08
        %v1102 = vadd.f32 %v1070, 1e-08
        %v1103 = vadd.f32 %v1071, 1e-08
        %v1104 = vadd.f32 %v1072, 1e-08
        %v1105 = vadd.f32 %v1073, 1e-08
        %v1106 = vadd.f32 %v1074, 1e-08
        %v1107 = vadd.f32 %v1075, 1e-08
        %v1108 = vadd.f32 %v1076, 1e-08
        %v1109 = vadd.f32 %v1077, 1e-08
        %v1110 = vadd.f32 %v1078, 1e-08
        %v1111 = vadd.f32 %v1079, 1e-08
        %v1112 = vadd.f32 %v1080, 1e-08
        %v1113 = vadd.f32 %v1081, 1e-08
        %v1114 = vadd.f32 %v1082, 1e-08
        %v1115 = vadd.f32 %v1083, 1e-08
        %v1116 = vadd.f32 %v1084, 1e-08
        %v1117 = vrsqrt.pop %v1085
        %v1118 = vrsqrt.pop %v1086
        %v1119 = vrsqrt.pop %v1087
        %v1120 = vrsqrt.pop %v1088
        %v1121 = vrsqrt.pop %v1089
        %v1122 = vrsqrt.pop %v1090
        %v1123 = vrsqrt.pop %v1091
        %v1124 = vrsqrt.pop %v1092
        %v1125 = vrsqrt.pop %v1093
        %v1126 = vrsqrt.pop %v1094
        %v1127 = vrsqrt.pop %v1095
        %v1128 = vrsqrt.pop %v1096
        %v1129 = vrsqrt.pop %v1097
        %v1130 = vrsqrt.pop %v1098
        %v1131 = vrsqrt.pop %v1099
        %v1132 = vrsqrt.pop %v1100
        %v1133 = vrsqrt.pop %v1101
        %v1134 = vrsqrt.pop %v1102
        %v1135 = vrsqrt.pop %v1103
        %v1136 = vrsqrt.pop %v1104
        %v1137 = vrsqrt.pop %v1105
        %v1138 = vrsqrt.pop %v1106
        %v1139 = vrsqrt.pop %v1107
        %v1140 = vrsqrt.pop %v1108
        %v1141 = vrsqrt.pop %v1109
        %v1142 = vrsqrt.pop %v1110
        %v1143 = vrsqrt.pop %v1111
        %v1144 = vrsqrt.pop %v1112
        %v1145 = vrsqrt.pop %v1113
        %v1146 = vrsqrt.pop %v1114
        %v1147 = vrsqrt.pop %v1115
        %v1148 = vrsqrt.pop %v1116
        %v1149 = vmul.f32 %v537, %v1117
        %v1150 = vmul.f32 %v540, %v1118
        %v1151 = vmul.f32 %v545, %v1119
        %v1152 = vmul.f32 %v548, %v1120
        %v1153 = vmul.f32 %v553, %v1121
        %v1154 = vmul.f32 %v556, %v1122
        %v1155 = vmul.f32 %v561, %v1123
        %v1156 = vmul.f32 %v564, %v1124
        %v1157 = vmul.f32 %v704, %v1125
        %v1158 = vmul.f32 %v706, %v1126
        %v1159 = vmul.f32 %v708, %v1127
        %v1160 = vmul.f32 %v710, %v1128
        %v1161 = vmul.f32 %v712, %v1129
        %v1162 = vmul.f32 %v714, %v1130
        %v1163 = vmul.f32 %v716, %v1131
        %v1164 = vmul.f32 %v718, %v1132
        %v1165 = vmul.f32 %v728, %v1133
        %v1166 = vmul.f32 %v730, %v1134
        %v1167 = vmul.f32 %v732, %v1135
        %v1168 = vmul.f32 %v734, %v1136
        %v1169 = vmul.f32 %v736, %v1137
        %v1170 = vmul.f32 %v738, %v1138
        %v1171 = vmul.f32 %v740, %v1139
        %v1172 = vmul.f32 %v742, %v1140
        %v1173 = vmul.f32 %v752, %v1141
        %v1174 = vmul.f32 %v754, %v1142
        %v1175 = vmul.f32 %v756, %v1143
        %v1176 = vmul.f32 %v758, %v1144
        %v1177 = vmul.f32 %v760, %v1145
        %v1178 = vmul.f32 %v762, %v1146
        %v1179 = vmul.f32 %v764, %v1147
        %v1180 = vmul.f32 %v766, %v1148
        %v1181 = vlaneseq
        %v1182 = vshrl.u32 %v1181, 7
        %v1183 = vsub.s32 0, %v1182
        %v1184 = vrot.slane %v887, %v1183
        %v1185 = vlaneseq
        %v1186 = vshrl.u32 %v1185, 7
        %v1187 = vsub.s32 0, %v1186
        %v1188 = vrot.slane %v894, %v1187
        %v1189 = vlaneseq
        %v1190 = vshrl.u32 %v1189, 7
        %v1191 = vsub.s32 0, %v1190
        %v1192 = vrot.slane %v895, %v1191
        %v1193 = vlaneseq
        %v1194 = vshrl.u32 %v1193, 7
        %v1195 = vsub.s32 0, %v1194
        %v1196 = vrot.slane %v896, %v1195
        %v1201 = vmul.f32 %v1149, %v1184
        %v1202 = vmul.f32 %v1150, %v1184
        %v1203 = vmul.f32 %v1151, %v1184
        %v1204 = vmul.f32 %v1152, %v1184
        %v1205 = vmul.f32 %v1153, %v1184
        %v1206 = vmul.f32 %v1154, %v1184
        %v1207 = vmul.f32 %v1155, %v1184
        %v1208 = vmul.f32 %v1156, %v1184
        %v1209 = vmul.f32 %v1157, %v1188
        %v1210 = vmul.f32 %v1158, %v1188
        %v1211 = vmul.f32 %v1159, %v1188
        %v1212 = vmul.f32 %v1160, %v1188
        %v1213 = vmul.f32 %v1161, %v1188
        %v1214 = vmul.f32 %v1162, %v1188
        %v1215 = vmul.f32 %v1163, %v1188
        %v1216 = vmul.f32 %v1164, %v1188
        %v1217 = vmul.f32 %v1165, %v1192
        %v1218 = vmul.f32 %v1166, %v1192
        %v1219 = vmul.f32 %v1167, %v1192
        %v1220 = vmul.f32 %v1168, %v1192
        %v1221 = vmul.f32 %v1169, %v1192
        %v1222 = vmul.f32 %v1170, %v1192
        %v1223 = vmul.f32 %v1171, %v1192
        %v1224 = vmul.f32 %v1172, %v1192
        %v1225 = vmul.f32 %v1173, %v1196
        %v1226 = vmul.f32 %v1174, %v1196
        %v1227 = vmul.f32 %v1175, %v1196
        %v1228 = vmul.f32 %v1176, %v1196
        %v1229 = vmul.f32 %v1177, %v1196
        %v1230 = vmul.f32 %v1178, %v1196
        %v1231 = vmul.f32 %v1179, %v1196
        %v1232 = vmul.f32 %v1180, %v1196
        %v1233 = vmul.f32 %v665, %v665
        %v1234 = vmul.f32 %v668, %v668
        %v1235 = vmul.f32 %v673, %v673
        %v1236 = vmul.f32 %v676, %v676
        %v1237 = vmul.f32 %v681, %v681
        %v1238 = vmul.f32 %v684, %v684
        %v1239 = vmul.f32 %v689, %v689
        %v1240 = vmul.f32 %v692, %v692
        %v1241 = vmul.f32 %v784, %v784
        %v1242 = vmul.f32 %v786, %v786
        %v1243 = vmul.f32 %v788, %v788
        %v1244 = vmul.f32 %v790, %v790
        %v1245 = vmul.f32 %v792, %v792
        %v1246 = vmul.f32 %v794, %v794
        %v1247 = vmul.f32 %v796, %v796
        %v1248 = vmul.f32 %v798, %v798
        %v1249 = vmul.f32 %v808, %v808
        %v1250 = vmul.f32 %v810, %v810
        %v1251 = vmul.f32 %v812, %v812
        %v1252 = vmul.f32 %v814, %v814
        %v1253 = vmul.f32 %v816, %v816
        %v1254 = vmul.f32 %v818, %v818
        %v1255 = vmul.f32 %v820, %v820
        %v1256 = vmul.f32 %v822, %v822
        %v1257 = vmul.f32 %v832, %v832
        %v1258 = vmul.f32 %v834, %v834
        %v1259 = vmul.f32 %v836, %v836
        %v1260 = vmul.f32 %v838, %v838
        %v1261 = vmul.f32 %v840, %v840
        %v1262 = vmul.f32 %v842, %v842
        %v1263 = vmul.f32 %v844, %v844
        %v1264 = vmul.f32 %v846, %v846
        %v1265 = vsel %vm955, %v1233, 0.0
        %1266 = vadd.xlane.f32.xlu0 %v1265
        %v1267 = vpop.xlane.xlu0 %1266
        %v1268 = vsel %vm955, %v1234, 0.0
        %1269 = vadd.xlane.f32.xlu0 %v1268
        %v1270 = vpop.xlane.xlu0 %1269
        %v1271 = vsel %vm955, %v1235, 0.0
        %1272 = vadd.xlane.f32.xlu0 %v1271
        %v1273 = vpop.xlane.xlu0 %1272
        %v1274 = vsel %vm955, %v1236, 0.0
        %1275 = vadd.xlane.f32.xlu0 %v1274
        %v1276 = vpop.xlane.xlu0 %1275
        %v1277 = vsel %vm955, %v1237, 0.0
        %1278 = vadd.xlane.f32.xlu0 %v1277
        %v1279 = vpop.xlane.xlu0 %1278
        %v1280 = vsel %vm955, %v1238, 0.0
        %1281 = vadd.xlane.f32.xlu0 %v1280
        %v1282 = vpop.xlane.xlu0 %1281
        %v1283 = vsel %vm955, %v1239, 0.0
        %1284 = vadd.xlane.f32.xlu0 %v1283
        %v1285 = vpop.xlane.xlu0 %1284
        %v1286 = vsel %vm955, %v1240, 0.0
        %1287 = vadd.xlane.f32.xlu0 %v1286
        %v1288 = vpop.xlane.xlu0 %1287
        %v1289 = vsel %vm955, %v1241, 0.0
        %1290 = vadd.xlane.f32.xlu0 %v1289
        %v1291 = vpop.xlane.xlu0 %1290
        %v1292 = vsel %vm955, %v1242, 0.0
        %1293 = vadd.xlane.f32.xlu0 %v1292
        %v1294 = vpop.xlane.xlu0 %1293
        %v1295 = vsel %vm955, %v1243, 0.0
        %1296 = vadd.xlane.f32.xlu0 %v1295
        %v1297 = vpop.xlane.xlu0 %1296
        %v1298 = vsel %vm955, %v1244, 0.0
        %1299 = vadd.xlane.f32.xlu0 %v1298
        %v1300 = vpop.xlane.xlu0 %1299
        %v1301 = vsel %vm955, %v1245, 0.0
        %1302 = vadd.xlane.f32.xlu0 %v1301
        %v1303 = vpop.xlane.xlu0 %1302
        %v1304 = vsel %vm955, %v1246, 0.0
        %1305 = vadd.xlane.f32.xlu0 %v1304
        %v1306 = vpop.xlane.xlu0 %1305
        %v1307 = vsel %vm955, %v1247, 0.0
        %1308 = vadd.xlane.f32.xlu0 %v1307
        %v1309 = vpop.xlane.xlu0 %1308
        %v1310 = vsel %vm955, %v1248, 0.0
        %1311 = vadd.xlane.f32.xlu0 %v1310
        %v1312 = vpop.xlane.xlu0 %1311
        %v1313 = vsel %vm955, %v1249, 0.0
        %1314 = vadd.xlane.f32.xlu0 %v1313
        %v1315 = vpop.xlane.xlu0 %1314
        %v1316 = vsel %vm955, %v1250, 0.0
        %1317 = vadd.xlane.f32.xlu0 %v1316
        %v1318 = vpop.xlane.xlu0 %1317
        %v1319 = vsel %vm955, %v1251, 0.0
        %1320 = vadd.xlane.f32.xlu0 %v1319
        %v1321 = vpop.xlane.xlu0 %1320
        %v1322 = vsel %vm955, %v1252, 0.0
        %1323 = vadd.xlane.f32.xlu0 %v1322
        %v1324 = vpop.xlane.xlu0 %1323
        %v1325 = vsel %vm955, %v1253, 0.0
        %1326 = vadd.xlane.f32.xlu0 %v1325
        %v1327 = vpop.xlane.xlu0 %1326
        %v1328 = vsel %vm955, %v1254, 0.0
        %1329 = vadd.xlane.f32.xlu0 %v1328
        %v1330 = vpop.xlane.xlu0 %1329
        %v1331 = vsel %vm955, %v1255, 0.0
        %1332 = vadd.xlane.f32.xlu0 %v1331
        %v1333 = vpop.xlane.xlu0 %1332
        %v1334 = vsel %vm955, %v1256, 0.0
        %1335 = vadd.xlane.f32.xlu0 %v1334
        %v1336 = vpop.xlane.xlu0 %1335
        %v1337 = vsel %vm955, %v1257, 0.0
        %1338 = vadd.xlane.f32.xlu0 %v1337
        %v1339 = vpop.xlane.xlu0 %1338
        %v1340 = vsel %vm955, %v1258, 0.0
        %1341 = vadd.xlane.f32.xlu0 %v1340
        %v1342 = vpop.xlane.xlu0 %1341
        %v1343 = vsel %vm955, %v1259, 0.0
        %1344 = vadd.xlane.f32.xlu0 %v1343
        %v1345 = vpop.xlane.xlu0 %1344
        %v1346 = vsel %vm955, %v1260, 0.0
        %1347 = vadd.xlane.f32.xlu0 %v1346
        %v1348 = vpop.xlane.xlu0 %1347
        %v1349 = vsel %vm955, %v1261, 0.0
        %1350 = vadd.xlane.f32.xlu0 %v1349
        %v1351 = vpop.xlane.xlu0 %1350
        %v1352 = vsel %vm955, %v1262, 0.0
        %1353 = vadd.xlane.f32.xlu0 %v1352
        %v1354 = vpop.xlane.xlu0 %1353
        %v1355 = vsel %vm955, %v1263, 0.0
        %1356 = vadd.xlane.f32.xlu0 %v1355
        %v1357 = vpop.xlane.xlu0 %1356
        %v1358 = vsel %vm955, %v1264, 0.0
        %1359 = vadd.xlane.f32.xlu0 %v1358
        %v1360 = vpop.xlane.xlu0 %1359
        %v1361 = vmul.f32 %v1267, %v1052
        %v1362 = vmul.f32 %v1270, %v1052
        %v1363 = vmul.f32 %v1273, %v1052
        %v1364 = vmul.f32 %v1276, %v1052
        %v1365 = vmul.f32 %v1279, %v1052
        %v1366 = vmul.f32 %v1282, %v1052
        %v1367 = vmul.f32 %v1285, %v1052
        %v1368 = vmul.f32 %v1288, %v1052
        %v1369 = vmul.f32 %v1291, %v1052
        %v1370 = vmul.f32 %v1294, %v1052
        %v1371 = vmul.f32 %v1297, %v1052
        %v1372 = vmul.f32 %v1300, %v1052
        %v1373 = vmul.f32 %v1303, %v1052
        %v1374 = vmul.f32 %v1306, %v1052
        %v1375 = vmul.f32 %v1309, %v1052
        %v1376 = vmul.f32 %v1312, %v1052
        %v1377 = vmul.f32 %v1315, %v1052
        %v1378 = vmul.f32 %v1318, %v1052
        %v1379 = vmul.f32 %v1321, %v1052
        %v1380 = vmul.f32 %v1324, %v1052
        %v1381 = vmul.f32 %v1327, %v1052
        %v1382 = vmul.f32 %v1330, %v1052
        %v1383 = vmul.f32 %v1333, %v1052
        %v1384 = vmul.f32 %v1336, %v1052
        %v1385 = vmul.f32 %v1339, %v1052
        %v1386 = vmul.f32 %v1342, %v1052
        %v1387 = vmul.f32 %v1345, %v1052
        %v1388 = vmul.f32 %v1348, %v1052
        %v1389 = vmul.f32 %v1351, %v1052
        %v1390 = vmul.f32 %v1354, %v1052
        %v1391 = vmul.f32 %v1357, %v1052
        %v1392 = vmul.f32 %v1360, %v1052
        %v1393 = vadd.f32 %v1361, 1e-08
        %v1394 = vadd.f32 %v1362, 1e-08
        %v1395 = vadd.f32 %v1363, 1e-08
        %v1396 = vadd.f32 %v1364, 1e-08
        %v1397 = vadd.f32 %v1365, 1e-08
        %v1398 = vadd.f32 %v1366, 1e-08
        %v1399 = vadd.f32 %v1367, 1e-08
        %v1400 = vadd.f32 %v1368, 1e-08
        %v1401 = vadd.f32 %v1369, 1e-08
        %v1402 = vadd.f32 %v1370, 1e-08
        %v1403 = vadd.f32 %v1371, 1e-08
        %v1404 = vadd.f32 %v1372, 1e-08
        %v1405 = vadd.f32 %v1373, 1e-08
        %v1406 = vadd.f32 %v1374, 1e-08
        %v1407 = vadd.f32 %v1375, 1e-08
        %v1408 = vadd.f32 %v1376, 1e-08
        %v1409 = vadd.f32 %v1377, 1e-08
        %v1410 = vadd.f32 %v1378, 1e-08
        %v1411 = vadd.f32 %v1379, 1e-08
        %v1412 = vadd.f32 %v1380, 1e-08
        %v1413 = vadd.f32 %v1381, 1e-08
        %v1414 = vadd.f32 %v1382, 1e-08
        %v1415 = vadd.f32 %v1383, 1e-08
        %v1416 = vadd.f32 %v1384, 1e-08
        %v1417 = vadd.f32 %v1385, 1e-08
        %v1418 = vadd.f32 %v1386, 1e-08
        %v1419 = vadd.f32 %v1387, 1e-08
        %v1420 = vadd.f32 %v1388, 1e-08
        %v1421 = vadd.f32 %v1389, 1e-08
        %v1422 = vadd.f32 %v1390, 1e-08
        %v1423 = vadd.f32 %v1391, 1e-08
        %v1424 = vadd.f32 %v1392, 1e-08
        %v1425 = vrsqrt.pop %v1393
        %v1426 = vrsqrt.pop %v1394
        %v1427 = vrsqrt.pop %v1395
        %v1428 = vrsqrt.pop %v1396
        %v1429 = vrsqrt.pop %v1397
        %v1430 = vrsqrt.pop %v1398
        %v1431 = vrsqrt.pop %v1399
        %v1432 = vrsqrt.pop %v1400
        %v1433 = vrsqrt.pop %v1401
        %v1434 = vrsqrt.pop %v1402
        %v1435 = vrsqrt.pop %v1403
        %v1436 = vrsqrt.pop %v1404
        %v1437 = vrsqrt.pop %v1405
        %v1438 = vrsqrt.pop %v1406
        %v1439 = vrsqrt.pop %v1407
        %v1440 = vrsqrt.pop %v1408
        %v1441 = vrsqrt.pop %v1409
        %v1442 = vrsqrt.pop %v1410
        %v1443 = vrsqrt.pop %v1411
        %v1444 = vrsqrt.pop %v1412
        %v1445 = vrsqrt.pop %v1413
        %v1446 = vrsqrt.pop %v1414
        %v1447 = vrsqrt.pop %v1415
        %v1448 = vrsqrt.pop %v1416
        %v1449 = vrsqrt.pop %v1417
        %v1450 = vrsqrt.pop %v1418
        %v1451 = vrsqrt.pop %v1419
        %v1452 = vrsqrt.pop %v1420
        %v1453 = vrsqrt.pop %v1421
        %v1454 = vrsqrt.pop %v1422
        %v1455 = vrsqrt.pop %v1423
        %v1456 = vrsqrt.pop %v1424
        %v1457 = vmul.f32 %v665, %v1425
        %v1458 = vmul.f32 %v668, %v1426
        %v1459 = vmul.f32 %v673, %v1427
        %v1460 = vmul.f32 %v676, %v1428
        %v1461 = vmul.f32 %v681, %v1429
        %v1462 = vmul.f32 %v684, %v1430
        %v1463 = vmul.f32 %v689, %v1431
        %v1464 = vmul.f32 %v692, %v1432
        %v1465 = vmul.f32 %v784, %v1433
        %v1466 = vmul.f32 %v786, %v1434
        %v1467 = vmul.f32 %v788, %v1435
        %v1468 = vmul.f32 %v790, %v1436
        %v1469 = vmul.f32 %v792, %v1437
        %v1470 = vmul.f32 %v794, %v1438
        %v1471 = vmul.f32 %v796, %v1439
        %v1472 = vmul.f32 %v798, %v1440
        %v1473 = vmul.f32 %v808, %v1441
        %v1474 = vmul.f32 %v810, %v1442
        %v1475 = vmul.f32 %v812, %v1443
        %v1476 = vmul.f32 %v814, %v1444
        %v1477 = vmul.f32 %v816, %v1445
        %v1478 = vmul.f32 %v818, %v1446
        %v1479 = vmul.f32 %v820, %v1447
        %v1480 = vmul.f32 %v822, %v1448
        %v1481 = vmul.f32 %v832, %v1449
        %v1482 = vmul.f32 %v834, %v1450
        %v1483 = vmul.f32 %v836, %v1451
        %v1484 = vmul.f32 %v838, %v1452
        %v1485 = vmul.f32 %v840, %v1453
        %v1486 = vmul.f32 %v842, %v1454
        %v1487 = vmul.f32 %v844, %v1455
        %v1488 = vmul.f32 %v846, %v1456
        %v1489 = vlaneseq
        %v1490 = vshrl.u32 %v1489, 7
        %v1491 = vsub.s32 0, %v1490
        %v1492 = vrot.slane %v913, %v1491
        %v1493 = vlaneseq
        %v1494 = vshrl.u32 %v1493, 7
        %v1495 = vsub.s32 0, %v1494
        %v1496 = vrot.slane %v920, %v1495
        %v1497 = vlaneseq
        %v1498 = vshrl.u32 %v1497, 7
        %v1499 = vsub.s32 0, %v1498
        %v1500 = vrot.slane %v921, %v1499
        %v1501 = vlaneseq
        %v1502 = vshrl.u32 %v1501, 7
        %v1503 = vsub.s32 0, %v1502
        %v1504 = vrot.slane %v922, %v1503
        %v1509 = vmul.f32 %v1457, %v1492
        %v1510 = vmul.f32 %v1458, %v1492
        %v1511 = vmul.f32 %v1459, %v1492
        %v1512 = vmul.f32 %v1460, %v1492
        %v1513 = vmul.f32 %v1461, %v1492
        %v1514 = vmul.f32 %v1462, %v1492
        %v1515 = vmul.f32 %v1463, %v1492
        %v1516 = vmul.f32 %v1464, %v1492
        %v1517 = vmul.f32 %v1465, %v1496
        %v1518 = vmul.f32 %v1466, %v1496
        %v1519 = vmul.f32 %v1467, %v1496
        %v1520 = vmul.f32 %v1468, %v1496
        %v1521 = vmul.f32 %v1469, %v1496
        %v1522 = vmul.f32 %v1470, %v1496
        %v1523 = vmul.f32 %v1471, %v1496
        %v1524 = vmul.f32 %v1472, %v1496
        %v1525 = vmul.f32 %v1473, %v1500
        %v1526 = vmul.f32 %v1474, %v1500
        %v1527 = vmul.f32 %v1475, %v1500
        %v1528 = vmul.f32 %v1476, %v1500
        %v1529 = vmul.f32 %v1477, %v1500
        %v1530 = vmul.f32 %v1478, %v1500
        %v1531 = vmul.f32 %v1479, %v1500
        %v1532 = vmul.f32 %v1480, %v1500
        %v1533 = vmul.f32 %v1481, %v1504
        %v1534 = vmul.f32 %v1482, %v1504
        %v1535 = vmul.f32 %v1483, %v1504
        %v1536 = vmul.f32 %v1484, %v1504
        %v1537 = vmul.f32 %v1485, %v1504
        %v1538 = vmul.f32 %v1486, %v1504
        %v1539 = vmul.f32 %v1487, %v1504
        %v1540 = vmul.f32 %v1488, %v1504
        %v1542 = vsel %vm955, %v1201, 0
        %v1545 = vsel %vm955, %v1202, 0
        %v1548 = vsel %vm955, %v1509, 0
        %v1551 = vsel %vm955, %v1510, 0
        %1553 = vmatprep.subr.mxu0 0.0
        %1554 = vmatpush1.xpose.msra.mxu0 0.0
        %1555 = vmatprep.subr.mxu0 0.0
        %1556 = vmatpush1.xpose.msra.mxu0 0.0
        %1557 = vmatprep.subr.mxu0 0.0
        %1558 = vmatpush1.xpose.msra.mxu0 0.0
        %1559 = vmatprep.subr.mxu0 0.0
        %1560 = vmatpush1.xpose.msra.mxu0 0.0
        %1561 = vmatprep.subr.mxu0 0.0
        %1562 = vmatpush1.xpose.msra.mxu0 0.0
        %1563 = vmatprep.subr.mxu0 0.0
        %1564 = vmatpush1.xpose.msra.mxu0 0.0
        %1565 = vmatprep.subr.mxu0 0.0
        %1566 = vmatpush1.xpose.msra.mxu0 0.0
        %1567 = vmatprep.subr.mxu0 0.0
        %1568 = vmatpush1.xpose.msra.mxu0 0.0
        %1569 = vmatprep.subr.mxu0 0.0
        %1570 = vmatpush1.xpose.msra.mxu0 0.0
        %1571 = vmatprep.subr.mxu0 0.0
        %1572 = vmatpush1.xpose.msra.mxu0 0.0
        %1573 = vmatprep.subr.mxu0 0.0
        %1574 = vmatpush1.xpose.msra.mxu0 0.0
        %1575 = vmatprep.subr.mxu0 0.0
        %1576 = vmatpush1.xpose.msra.mxu0 0.0
        %1577 = vmatprep.subr.mxu0 0.0
        %1578 = vmatpush1.xpose.msra.mxu0 0.0
        %1579 = vmatprep.subr.mxu0 0.0
        %1580 = vmatpush1.xpose.msra.mxu0 0.0
        %1581 = vmatprep.subr.mxu0 0.0
        %1582 = vmatpush1.xpose.msra.mxu0 %v1551
        %1583 = vmatprep.subr.mxu0 0.0
        %1584 = vmatpush1.xpose.msra.mxu0 %v1548
        %1585 = vmatprep.subr.mxu0 0.0
        %1586 = vmatpush2.xpose.msra.mxu0 0.0
        %1587 = vmatprep.subr.mxu0 0.0
        %1588 = vmatpush2.xpose.msra.mxu0 0.0
        %1589 = vmatprep.subr.mxu0 0.0
        %1590 = vmatpush2.xpose.msra.mxu0 0.0
        %1591 = vmatprep.subr.mxu0 0.0
        %1592 = vmatpush2.xpose.msra.mxu0 0.0
        %1593 = vmatprep.subr.mxu0 0.0
        %1594 = vmatpush2.xpose.msra.mxu0 0.0
        %1595 = vmatprep.subr.mxu0 0.0
        %1596 = vmatpush2.xpose.msra.mxu0 0.0
        %1597 = vmatprep.subr.mxu0 0.0
        %1598 = vmatpush2.xpose.msra.mxu0 0.0
        %1599 = vmatprep.subr.mxu0 0.0
        %1600 = vmatpush2.xpose.msra.mxu0 0.0
        %1601 = vmatprep.subr.mxu0 0.0
        %1602 = vmatpush2.xpose.msra.mxu0 0.0
        %1603 = vmatprep.subr.mxu0 0.0
        %1604 = vmatpush2.xpose.msra.mxu0 0.0
        %1605 = vmatprep.subr.mxu0 0.0
        %1606 = vmatpush2.xpose.msra.mxu0 0.0
        %1607 = vmatprep.subr.mxu0 0.0
        %1608 = vmatpush2.xpose.msra.mxu0 0.0
        %1609 = vmatprep.subr.mxu0 0.0
        %1610 = vmatpush2.xpose.msra.mxu0 0.0
        %1611 = vmatprep.subr.mxu0 0.0
        %1612 = vmatpush2.xpose.msra.mxu0 0.0
        %1613 = vmatprep.subr.mxu0 0.0
        %1614 = vmatpush2.xpose.msra.mxu0 0.0
        %1615 = vmatprep.subr.mxu0 0.0
        %1616 = vmatpush2.xpose.msra.mxu0 0.0
        %1617 = vmatprep.mubr.f32.mxu0 0.0
        %1618 = vmatmul.mubr.f32.gmra.mxu0 %v1542
        %v1619 = vpop.f32.mrf.mxu0
        %v1620 = vadd.f32 0.0, %v1619
        %v1621 = vpop.f32.mrf.mxu0
        %1622 = vmatprep.mubr.f32.mxu0 0.0
        %1623 = vmatmul.mubr.f32.gmra.mxu0 %v1545
        %v1624 = vpop.f32.mrf.mxu0
        %v1625 = vadd.f32 0.0, %v1624
        %v1626 = vpop.f32.mrf.mxu0
        %1627 = vdwg.mxu0
        %v1629 = vsel %vm955, %v1203, 0
        %v1632 = vsel %vm955, %v1204, 0
        %v1635 = vsel %vm955, %v1511, 0
        %v1638 = vsel %vm955, %v1512, 0
        %1640 = vmatprep.subr.mxu0 0.0
        %1641 = vmatpush1.xpose.msra.mxu0 0.0
        %1642 = vmatprep.subr.mxu0 0.0
        %1643 = vmatpush1.xpose.msra.mxu0 0.0
        %1644 = vmatprep.subr.mxu0 0.0
        %1645 = vmatpush1.xpose.msra.mxu0 0.0
        %1646 = vmatprep.subr.mxu0 0.0
        %1647 = vmatpush1.xpose.msra.mxu0 0.0
        %1648 = vmatprep.subr.mxu0 0.0
        %1649 = vmatpush1.xpose.msra.mxu0 0.0
        %1650 = vmatprep.subr.mxu0 0.0
        %1651 = vmatpush1.xpose.msra.mxu0 0.0
        %1652 = vmatprep.subr.mxu0 0.0
        %1653 = vmatpush1.xpose.msra.mxu0 0.0
        %1654 = vmatprep.subr.mxu0 0.0
        %1655 = vmatpush1.xpose.msra.mxu0 0.0
        %1656 = vmatprep.subr.mxu0 0.0
        %1657 = vmatpush1.xpose.msra.mxu0 0.0
        %1658 = vmatprep.subr.mxu0 0.0
        %1659 = vmatpush1.xpose.msra.mxu0 0.0
        %1660 = vmatprep.subr.mxu0 0.0
        %1661 = vmatpush1.xpose.msra.mxu0 0.0
        %1662 = vmatprep.subr.mxu0 0.0
        %1663 = vmatpush1.xpose.msra.mxu0 0.0
        %1664 = vmatprep.subr.mxu0 0.0
        %1665 = vmatpush1.xpose.msra.mxu0 0.0
        %1666 = vmatprep.subr.mxu0 0.0
        %1667 = vmatpush1.xpose.msra.mxu0 0.0
        %1668 = vmatprep.subr.mxu0 0.0
        %1669 = vmatpush1.xpose.msra.mxu0 %v1638
        %1670 = vmatprep.subr.mxu0 0.0
        %1671 = vmatpush1.xpose.msra.mxu0 %v1635
        %1672 = vmatprep.subr.mxu0 0.0
        %1673 = vmatpush2.xpose.msra.mxu0 0.0
        %1674 = vmatprep.subr.mxu0 0.0
        %1675 = vmatpush2.xpose.msra.mxu0 0.0
        %1676 = vmatprep.subr.mxu0 0.0
        %1677 = vmatpush2.xpose.msra.mxu0 0.0
        %1678 = vmatprep.subr.mxu0 0.0
        %1679 = vmatpush2.xpose.msra.mxu0 0.0
        %1680 = vmatprep.subr.mxu0 0.0
        %1681 = vmatpush2.xpose.msra.mxu0 0.0
        %1682 = vmatprep.subr.mxu0 0.0
        %1683 = vmatpush2.xpose.msra.mxu0 0.0
        %1684 = vmatprep.subr.mxu0 0.0
        %1685 = vmatpush2.xpose.msra.mxu0 0.0
        %1686 = vmatprep.subr.mxu0 0.0
        %1687 = vmatpush2.xpose.msra.mxu0 0.0
        %1688 = vmatprep.subr.mxu0 0.0
        %1689 = vmatpush2.xpose.msra.mxu0 0.0
        %1690 = vmatprep.subr.mxu0 0.0
        %1691 = vmatpush2.xpose.msra.mxu0 0.0
        %1692 = vmatprep.subr.mxu0 0.0
        %1693 = vmatpush2.xpose.msra.mxu0 0.0
        %1694 = vmatprep.subr.mxu0 0.0
        %1695 = vmatpush2.xpose.msra.mxu0 0.0
        %1696 = vmatprep.subr.mxu0 0.0
        %1697 = vmatpush2.xpose.msra.mxu0 0.0
        %1698 = vmatprep.subr.mxu0 0.0
        %1699 = vmatpush2.xpose.msra.mxu0 0.0
        %1700 = vmatprep.subr.mxu0 0.0
        %1701 = vmatpush2.xpose.msra.mxu0 0.0
        %1702 = vmatprep.subr.mxu0 0.0
        %1703 = vmatpush2.xpose.msra.mxu0 0.0
        %1704 = vmatprep.mubr.f32.mxu0 0.0
        %1705 = vmatmul.mubr.f32.gmra.mxu0 %v1629
        %v1706 = vpop.f32.mrf.mxu0
        %v1707 = vadd.f32 0.0, %v1706
        %v1708 = vpop.f32.mrf.mxu0
        %1709 = vmatprep.mubr.f32.mxu0 0.0
        %1710 = vmatmul.mubr.f32.gmra.mxu0 %v1632
        %v1711 = vpop.f32.mrf.mxu0
        %v1712 = vadd.f32 0.0, %v1711
        %v1713 = vpop.f32.mrf.mxu0
        %1714 = vdwg.mxu0
        %v1716 = vsel %vm955, %v1205, 0
        %v1719 = vsel %vm955, %v1206, 0
        %v1722 = vsel %vm955, %v1513, 0
        %v1725 = vsel %vm955, %v1514, 0
        %1727 = vmatprep.subr.mxu0 0.0
        %1728 = vmatpush1.xpose.msra.mxu0 0.0
        %1729 = vmatprep.subr.mxu0 0.0
        %1730 = vmatpush1.xpose.msra.mxu0 0.0
        %1731 = vmatprep.subr.mxu0 0.0
        %1732 = vmatpush1.xpose.msra.mxu0 0.0
        %1733 = vmatprep.subr.mxu0 0.0
        %1734 = vmatpush1.xpose.msra.mxu0 0.0
        %1735 = vmatprep.subr.mxu0 0.0
        %1736 = vmatpush1.xpose.msra.mxu0 0.0
        %1737 = vmatprep.subr.mxu0 0.0
        %1738 = vmatpush1.xpose.msra.mxu0 0.0
        %1739 = vmatprep.subr.mxu0 0.0
        %1740 = vmatpush1.xpose.msra.mxu0 0.0
        %1741 = vmatprep.subr.mxu0 0.0
        %1742 = vmatpush1.xpose.msra.mxu0 0.0
        %1743 = vmatprep.subr.mxu0 0.0
        %1744 = vmatpush1.xpose.msra.mxu0 0.0
        %1745 = vmatprep.subr.mxu0 0.0
        %1746 = vmatpush1.xpose.msra.mxu0 0.0
        %1747 = vmatprep.subr.mxu0 0.0
        %1748 = vmatpush1.xpose.msra.mxu0 0.0
        %1749 = vmatprep.subr.mxu0 0.0
        %1750 = vmatpush1.xpose.msra.mxu0 0.0
        %1751 = vmatprep.subr.mxu0 0.0
        %1752 = vmatpush1.xpose.msra.mxu0 0.0
        %1753 = vmatprep.subr.mxu0 0.0
        %1754 = vmatpush1.xpose.msra.mxu0 0.0
        %1755 = vmatprep.subr.mxu0 0.0
        %1756 = vmatpush1.xpose.msra.mxu0 %v1725
        %1757 = vmatprep.subr.mxu0 0.0
        %1758 = vmatpush1.xpose.msra.mxu0 %v1722
        %1759 = vmatprep.subr.mxu0 0.0
        %1760 = vmatpush2.xpose.msra.mxu0 0.0
        %1761 = vmatprep.subr.mxu0 0.0
        %1762 = vmatpush2.xpose.msra.mxu0 0.0
        %1763 = vmatprep.subr.mxu0 0.0
        %1764 = vmatpush2.xpose.msra.mxu0 0.0
        %1765 = vmatprep.subr.mxu0 0.0
        %1766 = vmatpush2.xpose.msra.mxu0 0.0
        %1767 = vmatprep.subr.mxu0 0.0
        %1768 = vmatpush2.xpose.msra.mxu0 0.0
        %1769 = vmatprep.subr.mxu0 0.0
        %1770 = vmatpush2.xpose.msra.mxu0 0.0
        %1771 = vmatprep.subr.mxu0 0.0
        %1772 = vmatpush2.xpose.msra.mxu0 0.0
        %1773 = vmatprep.subr.mxu0 0.0
        %1774 = vmatpush2.xpose.msra.mxu0 0.0
        %1775 = vmatprep.subr.mxu0 0.0
        %1776 = vmatpush2.xpose.msra.mxu0 0.0
        %1777 = vmatprep.subr.mxu0 0.0
        %1778 = vmatpush2.xpose.msra.mxu0 0.0
        %1779 = vmatprep.subr.mxu0 0.0
        %1780 = vmatpush2.xpose.msra.mxu0 0.0
        %1781 = vmatprep.subr.mxu0 0.0
        %1782 = vmatpush2.xpose.msra.mxu0 0.0
        %1783 = vmatprep.subr.mxu0 0.0
        %1784 = vmatpush2.xpose.msra.mxu0 0.0
        %1785 = vmatprep.subr.mxu0 0.0
        %1786 = vmatpush2.xpose.msra.mxu0 0.0
        %1787 = vmatprep.subr.mxu0 0.0
        %1788 = vmatpush2.xpose.msra.mxu0 0.0
        %1789 = vmatprep.subr.mxu0 0.0
        %1790 = vmatpush2.xpose.msra.mxu0 0.0
        %1791 = vmatprep.mubr.f32.mxu0 0.0
        %1792 = vmatmul.mubr.f32.gmra.mxu0 %v1716
        %v1793 = vpop.f32.mrf.mxu0
        %v1794 = vadd.f32 0.0, %v1793
        %v1795 = vpop.f32.mrf.mxu0
        %1796 = vmatprep.mubr.f32.mxu0 0.0
        %1797 = vmatmul.mubr.f32.gmra.mxu0 %v1719
        %v1798 = vpop.f32.mrf.mxu0
        %v1799 = vadd.f32 0.0, %v1798
        %v1800 = vpop.f32.mrf.mxu0
        %1801 = vdwg.mxu0
        %v1803 = vsel %vm955, %v1207, 0
        %v1806 = vsel %vm955, %v1208, 0
        %v1809 = vsel %vm955, %v1515, 0
        %v1812 = vsel %vm955, %v1516, 0
        %1814 = vmatprep.subr.mxu0 0.0
        %1815 = vmatpush1.xpose.msra.mxu0 0.0
        %1816 = vmatprep.subr.mxu0 0.0
        %1817 = vmatpush1.xpose.msra.mxu0 0.0
        %1818 = vmatprep.subr.mxu0 0.0
        %1819 = vmatpush1.xpose.msra.mxu0 0.0
        %1820 = vmatprep.subr.mxu0 0.0
        %1821 = vmatpush1.xpose.msra.mxu0 0.0
        %1822 = vmatprep.subr.mxu0 0.0
        %1823 = vmatpush1.xpose.msra.mxu0 0.0
        %1824 = vmatprep.subr.mxu0 0.0
        %1825 = vmatpush1.xpose.msra.mxu0 0.0
        %1826 = vmatprep.subr.mxu0 0.0
        %1827 = vmatpush1.xpose.msra.mxu0 0.0
        %1828 = vmatprep.subr.mxu0 0.0
        %1829 = vmatpush1.xpose.msra.mxu0 0.0
        %1830 = vmatprep.subr.mxu0 0.0
        %1831 = vmatpush1.xpose.msra.mxu0 0.0
        %1832 = vmatprep.subr.mxu0 0.0
        %1833 = vmatpush1.xpose.msra.mxu0 0.0
        %1834 = vmatprep.subr.mxu0 0.0
        %1835 = vmatpush1.xpose.msra.mxu0 0.0
        %1836 = vmatprep.subr.mxu0 0.0
        %1837 = vmatpush1.xpose.msra.mxu0 0.0
        %1838 = vmatprep.subr.mxu0 0.0
        %1839 = vmatpush1.xpose.msra.mxu0 0.0
        %1840 = vmatprep.subr.mxu0 0.0
        %1841 = vmatpush1.xpose.msra.mxu0 0.0
        %1842 = vmatprep.subr.mxu0 0.0
        %1843 = vmatpush1.xpose.msra.mxu0 %v1812
        %1844 = vmatprep.subr.mxu0 0.0
        %1845 = vmatpush1.xpose.msra.mxu0 %v1809
        %1846 = vmatprep.subr.mxu0 0.0
        %1847 = vmatpush2.xpose.msra.mxu0 0.0
        %1848 = vmatprep.subr.mxu0 0.0
        %1849 = vmatpush2.xpose.msra.mxu0 0.0
        %1850 = vmatprep.subr.mxu0 0.0
        %1851 = vmatpush2.xpose.msra.mxu0 0.0
        %1852 = vmatprep.subr.mxu0 0.0
        %1853 = vmatpush2.xpose.msra.mxu0 0.0
        %1854 = vmatprep.subr.mxu0 0.0
        %1855 = vmatpush2.xpose.msra.mxu0 0.0
        %1856 = vmatprep.subr.mxu0 0.0
        %1857 = vmatpush2.xpose.msra.mxu0 0.0
        %1858 = vmatprep.subr.mxu0 0.0
        %1859 = vmatpush2.xpose.msra.mxu0 0.0
        %1860 = vmatprep.subr.mxu0 0.0
        %1861 = vmatpush2.xpose.msra.mxu0 0.0
        %1862 = vmatprep.subr.mxu0 0.0
        %1863 = vmatpush2.xpose.msra.mxu0 0.0
        %1864 = vmatprep.subr.mxu0 0.0
        %1865 = vmatpush2.xpose.msra.mxu0 0.0
        %1866 = vmatprep.subr.mxu0 0.0
        %1867 = vmatpush2.xpose.msra.mxu0 0.0
        %1868 = vmatprep.subr.mxu0 0.0
        %1869 = vmatpush2.xpose.msra.mxu0 0.0
        %1870 = vmatprep.subr.mxu0 0.0
        %1871 = vmatpush2.xpose.msra.mxu0 0.0
        %1872 = vmatprep.subr.mxu0 0.0
        %1873 = vmatpush2.xpose.msra.mxu0 0.0
        %1874 = vmatprep.subr.mxu0 0.0
        %1875 = vmatpush2.xpose.msra.mxu0 0.0
        %1876 = vmatprep.subr.mxu0 0.0
        %1877 = vmatpush2.xpose.msra.mxu0 0.0
        %1878 = vmatprep.mubr.f32.mxu0 0.0
        %1879 = vmatmul.mubr.f32.gmra.mxu0 %v1803
        %v1880 = vpop.f32.mrf.mxu0
        %v1881 = vadd.f32 0.0, %v1880
        %v1882 = vpop.f32.mrf.mxu0
        %1883 = vmatprep.mubr.f32.mxu0 0.0
        %1884 = vmatmul.mubr.f32.gmra.mxu0 %v1806
        %v1885 = vpop.f32.mrf.mxu0
        %v1886 = vadd.f32 0.0, %v1885
        %v1887 = vpop.f32.mrf.mxu0
        %1888 = vdwg.mxu0
        %v1890 = vsel %vm955, %v1209, 0
        %v1893 = vsel %vm955, %v1210, 0
        %v1896 = vsel %vm955, %v1517, 0
        %v1899 = vsel %vm955, %v1518, 0
        %1901 = vmatprep.subr.mxu0 0.0
        %1902 = vmatpush1.xpose.msra.mxu0 0.0
        %1903 = vmatprep.subr.mxu0 0.0
        %1904 = vmatpush1.xpose.msra.mxu0 0.0
        %1905 = vmatprep.subr.mxu0 0.0
        %1906 = vmatpush1.xpose.msra.mxu0 0.0
        %1907 = vmatprep.subr.mxu0 0.0
        %1908 = vmatpush1.xpose.msra.mxu0 0.0
        %1909 = vmatprep.subr.mxu0 0.0
        %1910 = vmatpush1.xpose.msra.mxu0 0.0
        %1911 = vmatprep.subr.mxu0 0.0
        %1912 = vmatpush1.xpose.msra.mxu0 0.0
        %1913 = vmatprep.subr.mxu0 0.0
        %1914 = vmatpush1.xpose.msra.mxu0 0.0
        %1915 = vmatprep.subr.mxu0 0.0
        %1916 = vmatpush1.xpose.msra.mxu0 0.0
        %1917 = vmatprep.subr.mxu0 0.0
        %1918 = vmatpush1.xpose.msra.mxu0 0.0
        %1919 = vmatprep.subr.mxu0 0.0
        %1920 = vmatpush1.xpose.msra.mxu0 0.0
        %1921 = vmatprep.subr.mxu0 0.0
        %1922 = vmatpush1.xpose.msra.mxu0 0.0
        %1923 = vmatprep.subr.mxu0 0.0
        %1924 = vmatpush1.xpose.msra.mxu0 0.0
        %1925 = vmatprep.subr.mxu0 0.0
        %1926 = vmatpush1.xpose.msra.mxu0 0.0
        %1927 = vmatprep.subr.mxu0 0.0
        %1928 = vmatpush1.xpose.msra.mxu0 0.0
        %1929 = vmatprep.subr.mxu0 0.0
        %1930 = vmatpush1.xpose.msra.mxu0 %v1899
        %1931 = vmatprep.subr.mxu0 0.0
        %1932 = vmatpush1.xpose.msra.mxu0 %v1896
        %1933 = vmatprep.subr.mxu0 0.0
        %1934 = vmatpush2.xpose.msra.mxu0 0.0
        %1935 = vmatprep.subr.mxu0 0.0
        %1936 = vmatpush2.xpose.msra.mxu0 0.0
        %1937 = vmatprep.subr.mxu0 0.0
        %1938 = vmatpush2.xpose.msra.mxu0 0.0
        %1939 = vmatprep.subr.mxu0 0.0
        %1940 = vmatpush2.xpose.msra.mxu0 0.0
        %1941 = vmatprep.subr.mxu0 0.0
        %1942 = vmatpush2.xpose.msra.mxu0 0.0
        %1943 = vmatprep.subr.mxu0 0.0
        %1944 = vmatpush2.xpose.msra.mxu0 0.0
        %1945 = vmatprep.subr.mxu0 0.0
        %1946 = vmatpush2.xpose.msra.mxu0 0.0
        %1947 = vmatprep.subr.mxu0 0.0
        %1948 = vmatpush2.xpose.msra.mxu0 0.0
        %1949 = vmatprep.subr.mxu0 0.0
        %1950 = vmatpush2.xpose.msra.mxu0 0.0
        %1951 = vmatprep.subr.mxu0 0.0
        %1952 = vmatpush2.xpose.msra.mxu0 0.0
        %1953 = vmatprep.subr.mxu0 0.0
        %1954 = vmatpush2.xpose.msra.mxu0 0.0
        %1955 = vmatprep.subr.mxu0 0.0
        %1956 = vmatpush2.xpose.msra.mxu0 0.0
        %1957 = vmatprep.subr.mxu0 0.0
        %1958 = vmatpush2.xpose.msra.mxu0 0.0
        %1959 = vmatprep.subr.mxu0 0.0
        %1960 = vmatpush2.xpose.msra.mxu0 0.0
        %1961 = vmatprep.subr.mxu0 0.0
        %1962 = vmatpush2.xpose.msra.mxu0 0.0
        %1963 = vmatprep.subr.mxu0 0.0
        %1964 = vmatpush2.xpose.msra.mxu0 0.0
        %1965 = vmatprep.mubr.f32.mxu0 0.0
        %1966 = vmatmul.mubr.f32.gmra.mxu0 %v1890
        %v1967 = vpop.f32.mrf.mxu0
        %v1968 = vadd.f32 0.0, %v1967
        %v1969 = vpop.f32.mrf.mxu0
        %1970 = vmatprep.mubr.f32.mxu0 0.0
        %1971 = vmatmul.mubr.f32.gmra.mxu0 %v1893
        %v1972 = vpop.f32.mrf.mxu0
        %v1973 = vadd.f32 0.0, %v1972
        %v1974 = vpop.f32.mrf.mxu0
        %1975 = vdwg.mxu0
        %v1977 = vsel %vm955, %v1211, 0
        %v1980 = vsel %vm955, %v1212, 0
        %v1983 = vsel %vm955, %v1519, 0
        %v1986 = vsel %vm955, %v1520, 0
        %1988 = vmatprep.subr.mxu0 0.0
        %1989 = vmatpush1.xpose.msra.mxu0 0.0
        %1990 = vmatprep.subr.mxu0 0.0
        %1991 = vmatpush1.xpose.msra.mxu0 0.0
        %1992 = vmatprep.subr.mxu0 0.0
        %1993 = vmatpush1.xpose.msra.mxu0 0.0
        %1994 = vmatprep.subr.mxu0 0.0
        %1995 = vmatpush1.xpose.msra.mxu0 0.0
        %1996 = vmatprep.subr.mxu0 0.0
        %1997 = vmatpush1.xpose.msra.mxu0 0.0
        %1998 = vmatprep.subr.mxu0 0.0
        %1999 = vmatpush1.xpose.msra.mxu0 0.0
        %2000 = vmatprep.subr.mxu0 0.0
        %2001 = vmatpush1.xpose.msra.mxu0 0.0
        %2002 = vmatprep.subr.mxu0 0.0
        %2003 = vmatpush1.xpose.msra.mxu0 0.0
        %2004 = vmatprep.subr.mxu0 0.0
        %2005 = vmatpush1.xpose.msra.mxu0 0.0
        %2006 = vmatprep.subr.mxu0 0.0
        %2007 = vmatpush1.xpose.msra.mxu0 0.0
        %2008 = vmatprep.subr.mxu0 0.0
        %2009 = vmatpush1.xpose.msra.mxu0 0.0
        %2010 = vmatprep.subr.mxu0 0.0
        %2011 = vmatpush1.xpose.msra.mxu0 0.0
        %2012 = vmatprep.subr.mxu0 0.0
        %2013 = vmatpush1.xpose.msra.mxu0 0.0
        %2014 = vmatprep.subr.mxu0 0.0
        %2015 = vmatpush1.xpose.msra.mxu0 0.0
        %2016 = vmatprep.subr.mxu0 0.0
        %2017 = vmatpush1.xpose.msra.mxu0 %v1986
        %2018 = vmatprep.subr.mxu0 0.0
        %2019 = vmatpush1.xpose.msra.mxu0 %v1983
        %2020 = vmatprep.subr.mxu0 0.0
        %2021 = vmatpush2.xpose.msra.mxu0 0.0
        %2022 = vmatprep.subr.mxu0 0.0
        %2023 = vmatpush2.xpose.msra.mxu0 0.0
        %2024 = vmatprep.subr.mxu0 0.0
        %2025 = vmatpush2.xpose.msra.mxu0 0.0
        %2026 = vmatprep.subr.mxu0 0.0
        %2027 = vmatpush2.xpose.msra.mxu0 0.0
        %2028 = vmatprep.subr.mxu0 0.0
        %2029 = vmatpush2.xpose.msra.mxu0 0.0
        %2030 = vmatprep.subr.mxu0 0.0
        %2031 = vmatpush2.xpose.msra.mxu0 0.0
        %2032 = vmatprep.subr.mxu0 0.0
        %2033 = vmatpush2.xpose.msra.mxu0 0.0
        %2034 = vmatprep.subr.mxu0 0.0
        %2035 = vmatpush2.xpose.msra.mxu0 0.0
        %2036 = vmatprep.subr.mxu0 0.0
        %2037 = vmatpush2.xpose.msra.mxu0 0.0
        %2038 = vmatprep.subr.mxu0 0.0
        %2039 = vmatpush2.xpose.msra.mxu0 0.0
        %2040 = vmatprep.subr.mxu0 0.0
        %2041 = vmatpush2.xpose.msra.mxu0 0.0
        %2042 = vmatprep.subr.mxu0 0.0
        %2043 = vmatpush2.xpose.msra.mxu0 0.0
        %2044 = vmatprep.subr.mxu0 0.0
        %2045 = vmatpush2.xpose.msra.mxu0 0.0
        %2046 = vmatprep.subr.mxu0 0.0
        %2047 = vmatpush2.xpose.msra.mxu0 0.0
        %2048 = vmatprep.subr.mxu0 0.0
        %2049 = vmatpush2.xpose.msra.mxu0 0.0
        %2050 = vmatprep.subr.mxu0 0.0
        %2051 = vmatpush2.xpose.msra.mxu0 0.0
        %2052 = vmatprep.mubr.f32.mxu0 0.0
        %2053 = vmatmul.mubr.f32.gmra.mxu0 %v1977
        %v2054 = vpop.f32.mrf.mxu0
        %v2055 = vadd.f32 0.0, %v2054
        %v2056 = vpop.f32.mrf.mxu0
        %2057 = vmatprep.mubr.f32.mxu0 0.0
        %2058 = vmatmul.mubr.f32.gmra.mxu0 %v1980
        %v2059 = vpop.f32.mrf.mxu0
        %v2060 = vadd.f32 0.0, %v2059
        %v2061 = vpop.f32.mrf.mxu0
        %2062 = vdwg.mxu0
        %v2064 = vsel %vm955, %v1213, 0
        %v2067 = vsel %vm955, %v1214, 0
        %v2070 = vsel %vm955, %v1521, 0
        %v2073 = vsel %vm955, %v1522, 0
        %2075 = vmatprep.subr.mxu0 0.0
        %2076 = vmatpush1.xpose.msra.mxu0 0.0
        %2077 = vmatprep.subr.mxu0 0.0
        %2078 = vmatpush1.xpose.msra.mxu0 0.0
        %2079 = vmatprep.subr.mxu0 0.0
        %2080 = vmatpush1.xpose.msra.mxu0 0.0
        %2081 = vmatprep.subr.mxu0 0.0
        %2082 = vmatpush1.xpose.msra.mxu0 0.0
        %2083 = vmatprep.subr.mxu0 0.0
        %2084 = vmatpush1.xpose.msra.mxu0 0.0
        %2085 = vmatprep.subr.mxu0 0.0
        %2086 = vmatpush1.xpose.msra.mxu0 0.0
        %2087 = vmatprep.subr.mxu0 0.0
        %2088 = vmatpush1.xpose.msra.mxu0 0.0
        %2089 = vmatprep.subr.mxu0 0.0
        %2090 = vmatpush1.xpose.msra.mxu0 0.0
        %2091 = vmatprep.subr.mxu0 0.0
        %2092 = vmatpush1.xpose.msra.mxu0 0.0
        %2093 = vmatprep.subr.mxu0 0.0
        %2094 = vmatpush1.xpose.msra.mxu0 0.0
        %2095 = vmatprep.subr.mxu0 0.0
        %2096 = vmatpush1.xpose.msra.mxu0 0.0
        %2097 = vmatprep.subr.mxu0 0.0
        %2098 = vmatpush1.xpose.msra.mxu0 0.0
        %2099 = vmatprep.subr.mxu0 0.0
        %2100 = vmatpush1.xpose.msra.mxu0 0.0
        %2101 = vmatprep.subr.mxu0 0.0
        %2102 = vmatpush1.xpose.msra.mxu0 0.0
        %2103 = vmatprep.subr.mxu0 0.0
        %2104 = vmatpush1.xpose.msra.mxu0 %v2073
        %2105 = vmatprep.subr.mxu0 0.0
        %2106 = vmatpush1.xpose.msra.mxu0 %v2070
        %2107 = vmatprep.subr.mxu0 0.0
        %2108 = vmatpush2.xpose.msra.mxu0 0.0
        %2109 = vmatprep.subr.mxu0 0.0
        %2110 = vmatpush2.xpose.msra.mxu0 0.0
        %2111 = vmatprep.subr.mxu0 0.0
        %2112 = vmatpush2.xpose.msra.mxu0 0.0
        %2113 = vmatprep.subr.mxu0 0.0
        %2114 = vmatpush2.xpose.msra.mxu0 0.0
        %2115 = vmatprep.subr.mxu0 0.0
        %2116 = vmatpush2.xpose.msra.mxu0 0.0
        %2117 = vmatprep.subr.mxu0 0.0
        %2118 = vmatpush2.xpose.msra.mxu0 0.0
        %2119 = vmatprep.subr.mxu0 0.0
        %2120 = vmatpush2.xpose.msra.mxu0 0.0
        %2121 = vmatprep.subr.mxu0 0.0
        %2122 = vmatpush2.xpose.msra.mxu0 0.0
        %2123 = vmatprep.subr.mxu0 0.0
        %2124 = vmatpush2.xpose.msra.mxu0 0.0
        %2125 = vmatprep.subr.mxu0 0.0
        %2126 = vmatpush2.xpose.msra.mxu0 0.0
        %2127 = vmatprep.subr.mxu0 0.0
        %2128 = vmatpush2.xpose.msra.mxu0 0.0
        %2129 = vmatprep.subr.mxu0 0.0
        %2130 = vmatpush2.xpose.msra.mxu0 0.0
        %2131 = vmatprep.subr.mxu0 0.0
        %2132 = vmatpush2.xpose.msra.mxu0 0.0
        %2133 = vmatprep.subr.mxu0 0.0
        %2134 = vmatpush2.xpose.msra.mxu0 0.0
        %2135 = vmatprep.subr.mxu0 0.0
        %2136 = vmatpush2.xpose.msra.mxu0 0.0
        %2137 = vmatprep.subr.mxu0 0.0
        %2138 = vmatpush2.xpose.msra.mxu0 0.0
        %2139 = vmatprep.mubr.f32.mxu0 0.0
        %2140 = vmatmul.mubr.f32.gmra.mxu0 %v2064
        %v2141 = vpop.f32.mrf.mxu0
        %v2142 = vadd.f32 0.0, %v2141
        %v2143 = vpop.f32.mrf.mxu0
        %2144 = vmatprep.mubr.f32.mxu0 0.0
        %2145 = vmatmul.mubr.f32.gmra.mxu0 %v2067
        %v2146 = vpop.f32.mrf.mxu0
        %v2147 = vadd.f32 0.0, %v2146
        %v2148 = vpop.f32.mrf.mxu0
        %2149 = vdwg.mxu0
        %v2151 = vsel %vm955, %v1215, 0
        %v2154 = vsel %vm955, %v1216, 0
        %v2157 = vsel %vm955, %v1523, 0
        %v2160 = vsel %vm955, %v1524, 0
        %2162 = vmatprep.subr.mxu0 0.0
        %2163 = vmatpush1.xpose.msra.mxu0 0.0
        %2164 = vmatprep.subr.mxu0 0.0
        %2165 = vmatpush1.xpose.msra.mxu0 0.0
        %2166 = vmatprep.subr.mxu0 0.0
        %2167 = vmatpush1.xpose.msra.mxu0 0.0
        %2168 = vmatprep.subr.mxu0 0.0
        %2169 = vmatpush1.xpose.msra.mxu0 0.0
        %2170 = vmatprep.subr.mxu0 0.0
        %2171 = vmatpush1.xpose.msra.mxu0 0.0
        %2172 = vmatprep.subr.mxu0 0.0
        %2173 = vmatpush1.xpose.msra.mxu0 0.0
        %2174 = vmatprep.subr.mxu0 0.0
        %2175 = vmatpush1.xpose.msra.mxu0 0.0
        %2176 = vmatprep.subr.mxu0 0.0
        %2177 = vmatpush1.xpose.msra.mxu0 0.0
        %2178 = vmatprep.subr.mxu0 0.0
        %2179 = vmatpush1.xpose.msra.mxu0 0.0
        %2180 = vmatprep.subr.mxu0 0.0
        %2181 = vmatpush1.xpose.msra.mxu0 0.0
        %2182 = vmatprep.subr.mxu0 0.0
        %2183 = vmatpush1.xpose.msra.mxu0 0.0
        %2184 = vmatprep.subr.mxu0 0.0
        %2185 = vmatpush1.xpose.msra.mxu0 0.0
        %2186 = vmatprep.subr.mxu0 0.0
        %2187 = vmatpush1.xpose.msra.mxu0 0.0
        %2188 = vmatprep.subr.mxu0 0.0
        %2189 = vmatpush1.xpose.msra.mxu0 0.0
        %2190 = vmatprep.subr.mxu0 0.0
        %2191 = vmatpush1.xpose.msra.mxu0 %v2160
        %2192 = vmatprep.subr.mxu0 0.0
        %2193 = vmatpush1.xpose.msra.mxu0 %v2157
        %2194 = vmatprep.subr.mxu0 0.0
        %2195 = vmatpush2.xpose.msra.mxu0 0.0
        %2196 = vmatprep.subr.mxu0 0.0
        %2197 = vmatpush2.xpose.msra.mxu0 0.0
        %2198 = vmatprep.subr.mxu0 0.0
        %2199 = vmatpush2.xpose.msra.mxu0 0.0
        %2200 = vmatprep.subr.mxu0 0.0
        %2201 = vmatpush2.xpose.msra.mxu0 0.0
        %2202 = vmatprep.subr.mxu0 0.0
        %2203 = vmatpush2.xpose.msra.mxu0 0.0
        %2204 = vmatprep.subr.mxu0 0.0
        %2205 = vmatpush2.xpose.msra.mxu0 0.0
        %2206 = vmatprep.subr.mxu0 0.0
        %2207 = vmatpush2.xpose.msra.mxu0 0.0
        %2208 = vmatprep.subr.mxu0 0.0
        %2209 = vmatpush2.xpose.msra.mxu0 0.0
        %2210 = vmatprep.subr.mxu0 0.0
        %2211 = vmatpush2.xpose.msra.mxu0 0.0
        %2212 = vmatprep.subr.mxu0 0.0
        %2213 = vmatpush2.xpose.msra.mxu0 0.0
        %2214 = vmatprep.subr.mxu0 0.0
        %2215 = vmatpush2.xpose.msra.mxu0 0.0
        %2216 = vmatprep.subr.mxu0 0.0
        %2217 = vmatpush2.xpose.msra.mxu0 0.0
        %2218 = vmatprep.subr.mxu0 0.0
        %2219 = vmatpush2.xpose.msra.mxu0 0.0
        %2220 = vmatprep.subr.mxu0 0.0
        %2221 = vmatpush2.xpose.msra.mxu0 0.0
        %2222 = vmatprep.subr.mxu0 0.0
        %2223 = vmatpush2.xpose.msra.mxu0 0.0
        %2224 = vmatprep.subr.mxu0 0.0
        %2225 = vmatpush2.xpose.msra.mxu0 0.0
        %2226 = vmatprep.mubr.f32.mxu0 0.0
        %2227 = vmatmul.mubr.f32.gmra.mxu0 %v2151
        %v2228 = vpop.f32.mrf.mxu0
        %v2229 = vadd.f32 0.0, %v2228
        %v2230 = vpop.f32.mrf.mxu0
        %2231 = vmatprep.mubr.f32.mxu0 0.0
        %2232 = vmatmul.mubr.f32.gmra.mxu0 %v2154
        %v2233 = vpop.f32.mrf.mxu0
        %v2234 = vadd.f32 0.0, %v2233
        %v2235 = vpop.f32.mrf.mxu0
        %2236 = vdwg.mxu0
        %v2238 = vsel %vm955, %v1217, 0
        %v2241 = vsel %vm955, %v1218, 0
        %v2244 = vsel %vm955, %v1525, 0
        %v2247 = vsel %vm955, %v1526, 0
        %2249 = vmatprep.subr.mxu0 0.0
        %2250 = vmatpush1.xpose.msra.mxu0 0.0
        %2251 = vmatprep.subr.mxu0 0.0
        %2252 = vmatpush1.xpose.msra.mxu0 0.0
        %2253 = vmatprep.subr.mxu0 0.0
        %2254 = vmatpush1.xpose.msra.mxu0 0.0
        %2255 = vmatprep.subr.mxu0 0.0
        %2256 = vmatpush1.xpose.msra.mxu0 0.0
        %2257 = vmatprep.subr.mxu0 0.0
        %2258 = vmatpush1.xpose.msra.mxu0 0.0
        %2259 = vmatprep.subr.mxu0 0.0
        %2260 = vmatpush1.xpose.msra.mxu0 0.0
        %2261 = vmatprep.subr.mxu0 0.0
        %2262 = vmatpush1.xpose.msra.mxu0 0.0
        %2263 = vmatprep.subr.mxu0 0.0
        %2264 = vmatpush1.xpose.msra.mxu0 0.0
        %2265 = vmatprep.subr.mxu0 0.0
        %2266 = vmatpush1.xpose.msra.mxu0 0.0
        %2267 = vmatprep.subr.mxu0 0.0
        %2268 = vmatpush1.xpose.msra.mxu0 0.0
        %2269 = vmatprep.subr.mxu0 0.0
        %2270 = vmatpush1.xpose.msra.mxu0 0.0
        %2271 = vmatprep.subr.mxu0 0.0
        %2272 = vmatpush1.xpose.msra.mxu0 0.0
        %2273 = vmatprep.subr.mxu0 0.0
        %2274 = vmatpush1.xpose.msra.mxu0 0.0
        %2275 = vmatprep.subr.mxu0 0.0
        %2276 = vmatpush1.xpose.msra.mxu0 0.0
        %2277 = vmatprep.subr.mxu0 0.0
        %2278 = vmatpush1.xpose.msra.mxu0 %v2247
        %2279 = vmatprep.subr.mxu0 0.0
        %2280 = vmatpush1.xpose.msra.mxu0 %v2244
        %2281 = vmatprep.subr.mxu0 0.0
        %2282 = vmatpush2.xpose.msra.mxu0 0.0
        %2283 = vmatprep.subr.mxu0 0.0
        %2284 = vmatpush2.xpose.msra.mxu0 0.0
        %2285 = vmatprep.subr.mxu0 0.0
        %2286 = vmatpush2.xpose.msra.mxu0 0.0
        %2287 = vmatprep.subr.mxu0 0.0
        %2288 = vmatpush2.xpose.msra.mxu0 0.0
        %2289 = vmatprep.subr.mxu0 0.0
        %2290 = vmatpush2.xpose.msra.mxu0 0.0
        %2291 = vmatprep.subr.mxu0 0.0
        %2292 = vmatpush2.xpose.msra.mxu0 0.0
        %2293 = vmatprep.subr.mxu0 0.0
        %2294 = vmatpush2.xpose.msra.mxu0 0.0
        %2295 = vmatprep.subr.mxu0 0.0
        %2296 = vmatpush2.xpose.msra.mxu0 0.0
        %2297 = vmatprep.subr.mxu0 0.0
        %2298 = vmatpush2.xpose.msra.mxu0 0.0
        %2299 = vmatprep.subr.mxu0 0.0
        %2300 = vmatpush2.xpose.msra.mxu0 0.0
        %2301 = vmatprep.subr.mxu0 0.0
        %2302 = vmatpush2.xpose.msra.mxu0 0.0
        %2303 = vmatprep.subr.mxu0 0.0
        %2304 = vmatpush2.xpose.msra.mxu0 0.0
        %2305 = vmatprep.subr.mxu0 0.0
        %2306 = vmatpush2.xpose.msra.mxu0 0.0
        %2307 = vmatprep.subr.mxu0 0.0
        %2308 = vmatpush2.xpose.msra.mxu0 0.0
        %2309 = vmatprep.subr.mxu0 0.0
        %2310 = vmatpush2.xpose.msra.mxu0 0.0
        %2311 = vmatprep.subr.mxu0 0.0
        %2312 = vmatpush2.xpose.msra.mxu0 0.0
        %2313 = vmatprep.mubr.f32.mxu0 0.0
        %2314 = vmatmul.mubr.f32.gmra.mxu0 %v2238
        %v2315 = vpop.f32.mrf.mxu0
        %v2316 = vadd.f32 0.0, %v2315
        %v2317 = vpop.f32.mrf.mxu0
        %2318 = vmatprep.mubr.f32.mxu0 0.0
        %2319 = vmatmul.mubr.f32.gmra.mxu0 %v2241
        %v2320 = vpop.f32.mrf.mxu0
        %v2321 = vadd.f32 0.0, %v2320
        %v2322 = vpop.f32.mrf.mxu0
        %2323 = vdwg.mxu0
        %v2325 = vsel %vm955, %v1219, 0
        %v2328 = vsel %vm955, %v1220, 0
        %v2331 = vsel %vm955, %v1527, 0
        %v2334 = vsel %vm955, %v1528, 0
        %2336 = vmatprep.subr.mxu0 0.0
        %2337 = vmatpush1.xpose.msra.mxu0 0.0
        %2338 = vmatprep.subr.mxu0 0.0
        %2339 = vmatpush1.xpose.msra.mxu0 0.0
        %2340 = vmatprep.subr.mxu0 0.0
        %2341 = vmatpush1.xpose.msra.mxu0 0.0
        %2342 = vmatprep.subr.mxu0 0.0
        %2343 = vmatpush1.xpose.msra.mxu0 0.0
        %2344 = vmatprep.subr.mxu0 0.0
        %2345 = vmatpush1.xpose.msra.mxu0 0.0
        %2346 = vmatprep.subr.mxu0 0.0
        %2347 = vmatpush1.xpose.msra.mxu0 0.0
        %2348 = vmatprep.subr.mxu0 0.0
        %2349 = vmatpush1.xpose.msra.mxu0 0.0
        %2350 = vmatprep.subr.mxu0 0.0
        %2351 = vmatpush1.xpose.msra.mxu0 0.0
        %2352 = vmatprep.subr.mxu0 0.0
        %2353 = vmatpush1.xpose.msra.mxu0 0.0
        %2354 = vmatprep.subr.mxu0 0.0
        %2355 = vmatpush1.xpose.msra.mxu0 0.0
        %2356 = vmatprep.subr.mxu0 0.0
        %2357 = vmatpush1.xpose.msra.mxu0 0.0
        %2358 = vmatprep.subr.mxu0 0.0
        %2359 = vmatpush1.xpose.msra.mxu0 0.0
        %2360 = vmatprep.subr.mxu0 0.0
        %2361 = vmatpush1.xpose.msra.mxu0 0.0
        %2362 = vmatprep.subr.mxu0 0.0
        %2363 = vmatpush1.xpose.msra.mxu0 0.0
        %2364 = vmatprep.subr.mxu0 0.0
        %2365 = vmatpush1.xpose.msra.mxu0 %v2334
        %2366 = vmatprep.subr.mxu0 0.0
        %2367 = vmatpush1.xpose.msra.mxu0 %v2331
        %2368 = vmatprep.subr.mxu0 0.0
        %2369 = vmatpush2.xpose.msra.mxu0 0.0
        %2370 = vmatprep.subr.mxu0 0.0
        %2371 = vmatpush2.xpose.msra.mxu0 0.0
        %2372 = vmatprep.subr.mxu0 0.0
        %2373 = vmatpush2.xpose.msra.mxu0 0.0
        %2374 = vmatprep.subr.mxu0 0.0
        %2375 = vmatpush2.xpose.msra.mxu0 0.0
        %2376 = vmatprep.subr.mxu0 0.0
        %2377 = vmatpush2.xpose.msra.mxu0 0.0
        %2378 = vmatprep.subr.mxu0 0.0
        %2379 = vmatpush2.xpose.msra.mxu0 0.0
        %2380 = vmatprep.subr.mxu0 0.0
        %2381 = vmatpush2.xpose.msra.mxu0 0.0
        %2382 = vmatprep.subr.mxu0 0.0
        %2383 = vmatpush2.xpose.msra.mxu0 0.0
        %2384 = vmatprep.subr.mxu0 0.0
        %2385 = vmatpush2.xpose.msra.mxu0 0.0
        %2386 = vmatprep.subr.mxu0 0.0
        %2387 = vmatpush2.xpose.msra.mxu0 0.0
        %2388 = vmatprep.subr.mxu0 0.0
        %2389 = vmatpush2.xpose.msra.mxu0 0.0
        %2390 = vmatprep.subr.mxu0 0.0
        %2391 = vmatpush2.xpose.msra.mxu0 0.0
        %2392 = vmatprep.subr.mxu0 0.0
        %2393 = vmatpush2.xpose.msra.mxu0 0.0
        %2394 = vmatprep.subr.mxu0 0.0
        %2395 = vmatpush2.xpose.msra.mxu0 0.0
        %2396 = vmatprep.subr.mxu0 0.0
        %2397 = vmatpush2.xpose.msra.mxu0 0.0
        %2398 = vmatprep.subr.mxu0 0.0
        %2399 = vmatpush2.xpose.msra.mxu0 0.0
        %2400 = vmatprep.mubr.f32.mxu0 0.0
        %2401 = vmatmul.mubr.f32.gmra.mxu0 %v2325
        %v2402 = vpop.f32.mrf.mxu0
        %v2403 = vadd.f32 0.0, %v2402
        %v2404 = vpop.f32.mrf.mxu0
        %2405 = vmatprep.mubr.f32.mxu0 0.0
        %2406 = vmatmul.mubr.f32.gmra.mxu0 %v2328
        %v2407 = vpop.f32.mrf.mxu0
        %v2408 = vadd.f32 0.0, %v2407
        %v2409 = vpop.f32.mrf.mxu0
        %2410 = vdwg.mxu0
        %v2412 = vsel %vm955, %v1221, 0
        %v2415 = vsel %vm955, %v1222, 0
        %v2418 = vsel %vm955, %v1529, 0
        %v2421 = vsel %vm955, %v1530, 0
        %2423 = vmatprep.subr.mxu0 0.0
        %2424 = vmatpush1.xpose.msra.mxu0 0.0
        %2425 = vmatprep.subr.mxu0 0.0
        %2426 = vmatpush1.xpose.msra.mxu0 0.0
        %2427 = vmatprep.subr.mxu0 0.0
        %2428 = vmatpush1.xpose.msra.mxu0 0.0
        %2429 = vmatprep.subr.mxu0 0.0
        %2430 = vmatpush1.xpose.msra.mxu0 0.0
        %2431 = vmatprep.subr.mxu0 0.0
        %2432 = vmatpush1.xpose.msra.mxu0 0.0
        %2433 = vmatprep.subr.mxu0 0.0
        %2434 = vmatpush1.xpose.msra.mxu0 0.0
        %2435 = vmatprep.subr.mxu0 0.0
        %2436 = vmatpush1.xpose.msra.mxu0 0.0
        %2437 = vmatprep.subr.mxu0 0.0
        %2438 = vmatpush1.xpose.msra.mxu0 0.0
        %2439 = vmatprep.subr.mxu0 0.0
        %2440 = vmatpush1.xpose.msra.mxu0 0.0
        %2441 = vmatprep.subr.mxu0 0.0
        %2442 = vmatpush1.xpose.msra.mxu0 0.0
        %2443 = vmatprep.subr.mxu0 0.0
        %2444 = vmatpush1.xpose.msra.mxu0 0.0
        %2445 = vmatprep.subr.mxu0 0.0
        %2446 = vmatpush1.xpose.msra.mxu0 0.0
        %2447 = vmatprep.subr.mxu0 0.0
        %2448 = vmatpush1.xpose.msra.mxu0 0.0
        %2449 = vmatprep.subr.mxu0 0.0
        %2450 = vmatpush1.xpose.msra.mxu0 0.0
        %2451 = vmatprep.subr.mxu0 0.0
        %2452 = vmatpush1.xpose.msra.mxu0 %v2421
        %2453 = vmatprep.subr.mxu0 0.0
        %2454 = vmatpush1.xpose.msra.mxu0 %v2418
        %2455 = vmatprep.subr.mxu0 0.0
        %2456 = vmatpush2.xpose.msra.mxu0 0.0
        %2457 = vmatprep.subr.mxu0 0.0
        %2458 = vmatpush2.xpose.msra.mxu0 0.0
        %2459 = vmatprep.subr.mxu0 0.0
        %2460 = vmatpush2.xpose.msra.mxu0 0.0
        %2461 = vmatprep.subr.mxu0 0.0
        %2462 = vmatpush2.xpose.msra.mxu0 0.0
        %2463 = vmatprep.subr.mxu0 0.0
        %2464 = vmatpush2.xpose.msra.mxu0 0.0
        %2465 = vmatprep.subr.mxu0 0.0
        %2466 = vmatpush2.xpose.msra.mxu0 0.0
        %2467 = vmatprep.subr.mxu0 0.0
        %2468 = vmatpush2.xpose.msra.mxu0 0.0
        %2469 = vmatprep.subr.mxu0 0.0
        %2470 = vmatpush2.xpose.msra.mxu0 0.0
        %2471 = vmatprep.subr.mxu0 0.0
        %2472 = vmatpush2.xpose.msra.mxu0 0.0
        %2473 = vmatprep.subr.mxu0 0.0
        %2474 = vmatpush2.xpose.msra.mxu0 0.0
        %2475 = vmatprep.subr.mxu0 0.0
        %2476 = vmatpush2.xpose.msra.mxu0 0.0
        %2477 = vmatprep.subr.mxu0 0.0
        %2478 = vmatpush2.xpose.msra.mxu0 0.0
        %2479 = vmatprep.subr.mxu0 0.0
        %2480 = vmatpush2.xpose.msra.mxu0 0.0
        %2481 = vmatprep.subr.mxu0 0.0
        %2482 = vmatpush2.xpose.msra.mxu0 0.0
        %2483 = vmatprep.subr.mxu0 0.0
        %2484 = vmatpush2.xpose.msra.mxu0 0.0
        %2485 = vmatprep.subr.mxu0 0.0
        %2486 = vmatpush2.xpose.msra.mxu0 0.0
        %2487 = vmatprep.mubr.f32.mxu0 0.0
        %2488 = vmatmul.mubr.f32.gmra.mxu0 %v2412
        %v2489 = vpop.f32.mrf.mxu0
        %v2490 = vadd.f32 0.0, %v2489
        %v2491 = vpop.f32.mrf.mxu0
        %2492 = vmatprep.mubr.f32.mxu0 0.0
        %2493 = vmatmul.mubr.f32.gmra.mxu0 %v2415
        %v2494 = vpop.f32.mrf.mxu0
        %v2495 = vadd.f32 0.0, %v2494
        %v2496 = vpop.f32.mrf.mxu0
        %2497 = vdwg.mxu0
        %v2499 = vsel %vm955, %v1223, 0
        %v2502 = vsel %vm955, %v1224, 0
        %v2505 = vsel %vm955, %v1531, 0
        %v2508 = vsel %vm955, %v1532, 0
        %2510 = vmatprep.subr.mxu0 0.0
        %2511 = vmatpush1.xpose.msra.mxu0 0.0
        %2512 = vmatprep.subr.mxu0 0.0
        %2513 = vmatpush1.xpose.msra.mxu0 0.0
        %2514 = vmatprep.subr.mxu0 0.0
        %2515 = vmatpush1.xpose.msra.mxu0 0.0
        %2516 = vmatprep.subr.mxu0 0.0
        %2517 = vmatpush1.xpose.msra.mxu0 0.0
        %2518 = vmatprep.subr.mxu0 0.0
        %2519 = vmatpush1.xpose.msra.mxu0 0.0
        %2520 = vmatprep.subr.mxu0 0.0
        %2521 = vmatpush1.xpose.msra.mxu0 0.0
        %2522 = vmatprep.subr.mxu0 0.0
        %2523 = vmatpush1.xpose.msra.mxu0 0.0
        %2524 = vmatprep.subr.mxu0 0.0
        %2525 = vmatpush1.xpose.msra.mxu0 0.0
        %2526 = vmatprep.subr.mxu0 0.0
        %2527 = vmatpush1.xpose.msra.mxu0 0.0
        %2528 = vmatprep.subr.mxu0 0.0
        %2529 = vmatpush1.xpose.msra.mxu0 0.0
        %2530 = vmatprep.subr.mxu0 0.0
        %2531 = vmatpush1.xpose.msra.mxu0 0.0
        %2532 = vmatprep.subr.mxu0 0.0
        %2533 = vmatpush1.xpose.msra.mxu0 0.0
        %2534 = vmatprep.subr.mxu0 0.0
        %2535 = vmatpush1.xpose.msra.mxu0 0.0
        %2536 = vmatprep.subr.mxu0 0.0
        %2537 = vmatpush1.xpose.msra.mxu0 0.0
        %2538 = vmatprep.subr.mxu0 0.0
        %2539 = vmatpush1.xpose.msra.mxu0 %v2508
        %2540 = vmatprep.subr.mxu0 0.0
        %2541 = vmatpush1.xpose.msra.mxu0 %v2505
        %2542 = vmatprep.subr.mxu0 0.0
        %2543 = vmatpush2.xpose.msra.mxu0 0.0
        %2544 = vmatprep.subr.mxu0 0.0
        %2545 = vmatpush2.xpose.msra.mxu0 0.0
        %2546 = vmatprep.subr.mxu0 0.0
        %2547 = vmatpush2.xpose.msra.mxu0 0.0
        %2548 = vmatprep.subr.mxu0 0.0
        %2549 = vmatpush2.xpose.msra.mxu0 0.0
        %2550 = vmatprep.subr.mxu0 0.0
        %2551 = vmatpush2.xpose.msra.mxu0 0.0
        %2552 = vmatprep.subr.mxu0 0.0
        %2553 = vmatpush2.xpose.msra.mxu0 0.0
        %2554 = vmatprep.subr.mxu0 0.0
        %2555 = vmatpush2.xpose.msra.mxu0 0.0
        %2556 = vmatprep.subr.mxu0 0.0
        %2557 = vmatpush2.xpose.msra.mxu0 0.0
        %2558 = vmatprep.subr.mxu0 0.0
        %2559 = vmatpush2.xpose.msra.mxu0 0.0
        %2560 = vmatprep.subr.mxu0 0.0
        %2561 = vmatpush2.xpose.msra.mxu0 0.0
        %2562 = vmatprep.subr.mxu0 0.0
        %2563 = vmatpush2.xpose.msra.mxu0 0.0
        %2564 = vmatprep.subr.mxu0 0.0
        %2565 = vmatpush2.xpose.msra.mxu0 0.0
        %2566 = vmatprep.subr.mxu0 0.0
        %2567 = vmatpush2.xpose.msra.mxu0 0.0
        %2568 = vmatprep.subr.mxu0 0.0
        %2569 = vmatpush2.xpose.msra.mxu0 0.0
        %2570 = vmatprep.subr.mxu0 0.0
        %2571 = vmatpush2.xpose.msra.mxu0 0.0
        %2572 = vmatprep.subr.mxu0 0.0
        %2573 = vmatpush2.xpose.msra.mxu0 0.0
        %2574 = vmatprep.mubr.f32.mxu0 0.0
        %2575 = vmatmul.mubr.f32.gmra.mxu0 %v2499
        %v2576 = vpop.f32.mrf.mxu0
        %v2577 = vadd.f32 0.0, %v2576
        %v2578 = vpop.f32.mrf.mxu0
        %2579 = vmatprep.mubr.f32.mxu0 0.0
        %2580 = vmatmul.mubr.f32.gmra.mxu0 %v2502
        %v2581 = vpop.f32.mrf.mxu0
        %v2582 = vadd.f32 0.0, %v2581
        %v2583 = vpop.f32.mrf.mxu0
        %2584 = vdwg.mxu0
        %v2586 = vsel %vm955, %v1225, 0
        %v2589 = vsel %vm955, %v1226, 0
        %v2592 = vsel %vm955, %v1533, 0
        %v2595 = vsel %vm955, %v1534, 0
        %2597 = vmatprep.subr.mxu0 0.0
        %2598 = vmatpush1.xpose.msra.mxu0 0.0
        %2599 = vmatprep.subr.mxu0 0.0
        %2600 = vmatpush1.xpose.msra.mxu0 0.0
        %2601 = vmatprep.subr.mxu0 0.0
        %2602 = vmatpush1.xpose.msra.mxu0 0.0
        %2603 = vmatprep.subr.mxu0 0.0
        %2604 = vmatpush1.xpose.msra.mxu0 0.0
        %2605 = vmatprep.subr.mxu0 0.0
        %2606 = vmatpush1.xpose.msra.mxu0 0.0
        %2607 = vmatprep.subr.mxu0 0.0
        %2608 = vmatpush1.xpose.msra.mxu0 0.0
        %2609 = vmatprep.subr.mxu0 0.0
        %2610 = vmatpush1.xpose.msra.mxu0 0.0
        %2611 = vmatprep.subr.mxu0 0.0
        %2612 = vmatpush1.xpose.msra.mxu0 0.0
        %2613 = vmatprep.subr.mxu0 0.0
        %2614 = vmatpush1.xpose.msra.mxu0 0.0
        %2615 = vmatprep.subr.mxu0 0.0
        %2616 = vmatpush1.xpose.msra.mxu0 0.0
        %2617 = vmatprep.subr.mxu0 0.0
        %2618 = vmatpush1.xpose.msra.mxu0 0.0
        %2619 = vmatprep.subr.mxu0 0.0
        %2620 = vmatpush1.xpose.msra.mxu0 0.0
        %2621 = vmatprep.subr.mxu0 0.0
        %2622 = vmatpush1.xpose.msra.mxu0 0.0
        %2623 = vmatprep.subr.mxu0 0.0
        %2624 = vmatpush1.xpose.msra.mxu0 0.0
        %2625 = vmatprep.subr.mxu0 0.0
        %2626 = vmatpush1.xpose.msra.mxu0 %v2595
        %2627 = vmatprep.subr.mxu0 0.0
        %2628 = vmatpush1.xpose.msra.mxu0 %v2592
        %2629 = vmatprep.subr.mxu0 0.0
        %2630 = vmatpush2.xpose.msra.mxu0 0.0
        %2631 = vmatprep.subr.mxu0 0.0
        %2632 = vmatpush2.xpose.msra.mxu0 0.0
        %2633 = vmatprep.subr.mxu0 0.0
        %2634 = vmatpush2.xpose.msra.mxu0 0.0
        %2635 = vmatprep.subr.mxu0 0.0
        %2636 = vmatpush2.xpose.msra.mxu0 0.0
        %2637 = vmatprep.subr.mxu0 0.0
        %2638 = vmatpush2.xpose.msra.mxu0 0.0
        %2639 = vmatprep.subr.mxu0 0.0
        %2640 = vmatpush2.xpose.msra.mxu0 0.0
        %2641 = vmatprep.subr.mxu0 0.0
        %2642 = vmatpush2.xpose.msra.mxu0 0.0
        %2643 = vmatprep.subr.mxu0 0.0
        %2644 = vmatpush2.xpose.msra.mxu0 0.0
        %2645 = vmatprep.subr.mxu0 0.0
        %2646 = vmatpush2.xpose.msra.mxu0 0.0
        %2647 = vmatprep.subr.mxu0 0.0
        %2648 = vmatpush2.xpose.msra.mxu0 0.0
        %2649 = vmatprep.subr.mxu0 0.0
        %2650 = vmatpush2.xpose.msra.mxu0 0.0
        %2651 = vmatprep.subr.mxu0 0.0
        %2652 = vmatpush2.xpose.msra.mxu0 0.0
        %2653 = vmatprep.subr.mxu0 0.0
        %2654 = vmatpush2.xpose.msra.mxu0 0.0
        %2655 = vmatprep.subr.mxu0 0.0
        %2656 = vmatpush2.xpose.msra.mxu0 0.0
        %2657 = vmatprep.subr.mxu0 0.0
        %2658 = vmatpush2.xpose.msra.mxu0 0.0
        %2659 = vmatprep.subr.mxu0 0.0
        %2660 = vmatpush2.xpose.msra.mxu0 0.0
        %2661 = vmatprep.mubr.f32.mxu0 0.0
        %2662 = vmatmul.mubr.f32.gmra.mxu0 %v2586
        %v2663 = vpop.f32.mrf.mxu0
        %v2664 = vadd.f32 0.0, %v2663
        %v2665 = vpop.f32.mrf.mxu0
        %2666 = vmatprep.mubr.f32.mxu0 0.0
        %2667 = vmatmul.mubr.f32.gmra.mxu0 %v2589
        %v2668 = vpop.f32.mrf.mxu0
        %v2669 = vadd.f32 0.0, %v2668
        %v2670 = vpop.f32.mrf.mxu0
        %2671 = vdwg.mxu0
        %v2673 = vsel %vm955, %v1227, 0
        %v2676 = vsel %vm955, %v1228, 0
        %v2679 = vsel %vm955, %v1535, 0
        %v2682 = vsel %vm955, %v1536, 0
        %2684 = vmatprep.subr.mxu0 0.0
        %2685 = vmatpush1.xpose.msra.mxu0 0.0
        %2686 = vmatprep.subr.mxu0 0.0
        %2687 = vmatpush1.xpose.msra.mxu0 0.0
        %2688 = vmatprep.subr.mxu0 0.0
        %2689 = vmatpush1.xpose.msra.mxu0 0.0
        %2690 = vmatprep.subr.mxu0 0.0
        %2691 = vmatpush1.xpose.msra.mxu0 0.0
        %2692 = vmatprep.subr.mxu0 0.0
        %2693 = vmatpush1.xpose.msra.mxu0 0.0
        %2694 = vmatprep.subr.mxu0 0.0
        %2695 = vmatpush1.xpose.msra.mxu0 0.0
        %2696 = vmatprep.subr.mxu0 0.0
        %2697 = vmatpush1.xpose.msra.mxu0 0.0
        %2698 = vmatprep.subr.mxu0 0.0
        %2699 = vmatpush1.xpose.msra.mxu0 0.0
        %2700 = vmatprep.subr.mxu0 0.0
        %2701 = vmatpush1.xpose.msra.mxu0 0.0
        %2702 = vmatprep.subr.mxu0 0.0
        %2703 = vmatpush1.xpose.msra.mxu0 0.0
        %2704 = vmatprep.subr.mxu0 0.0
        %2705 = vmatpush1.xpose.msra.mxu0 0.0
        %2706 = vmatprep.subr.mxu0 0.0
        %2707 = vmatpush1.xpose.msra.mxu0 0.0
        %2708 = vmatprep.subr.mxu0 0.0
        %2709 = vmatpush1.xpose.msra.mxu0 0.0
        %2710 = vmatprep.subr.mxu0 0.0
        %2711 = vmatpush1.xpose.msra.mxu0 0.0
        %2712 = vmatprep.subr.mxu0 0.0
        %2713 = vmatpush1.xpose.msra.mxu0 %v2682
        %2714 = vmatprep.subr.mxu0 0.0
        %2715 = vmatpush1.xpose.msra.mxu0 %v2679
        %2716 = vmatprep.subr.mxu0 0.0
        %2717 = vmatpush2.xpose.msra.mxu0 0.0
        %2718 = vmatprep.subr.mxu0 0.0
        %2719 = vmatpush2.xpose.msra.mxu0 0.0
        %2720 = vmatprep.subr.mxu0 0.0
        %2721 = vmatpush2.xpose.msra.mxu0 0.0
        %2722 = vmatprep.subr.mxu0 0.0
        %2723 = vmatpush2.xpose.msra.mxu0 0.0
        %2724 = vmatprep.subr.mxu0 0.0
        %2725 = vmatpush2.xpose.msra.mxu0 0.0
        %2726 = vmatprep.subr.mxu0 0.0
        %2727 = vmatpush2.xpose.msra.mxu0 0.0
        %2728 = vmatprep.subr.mxu0 0.0
        %2729 = vmatpush2.xpose.msra.mxu0 0.0
        %2730 = vmatprep.subr.mxu0 0.0
        %2731 = vmatpush2.xpose.msra.mxu0 0.0
        %2732 = vmatprep.subr.mxu0 0.0
        %2733 = vmatpush2.xpose.msra.mxu0 0.0
        %2734 = vmatprep.subr.mxu0 0.0
        %2735 = vmatpush2.xpose.msra.mxu0 0.0
        %2736 = vmatprep.subr.mxu0 0.0
        %2737 = vmatpush2.xpose.msra.mxu0 0.0
        %2738 = vmatprep.subr.mxu0 0.0
        %2739 = vmatpush2.xpose.msra.mxu0 0.0
        %2740 = vmatprep.subr.mxu0 0.0
        %2741 = vmatpush2.xpose.msra.mxu0 0.0
        %2742 = vmatprep.subr.mxu0 0.0
        %2743 = vmatpush2.xpose.msra.mxu0 0.0
        %2744 = vmatprep.subr.mxu0 0.0
        %2745 = vmatpush2.xpose.msra.mxu0 0.0
        %2746 = vmatprep.subr.mxu0 0.0
        %2747 = vmatpush2.xpose.msra.mxu0 0.0
        %2748 = vmatprep.mubr.f32.mxu0 0.0
        %2749 = vmatmul.mubr.f32.gmra.mxu0 %v2673
        %v2750 = vpop.f32.mrf.mxu0
        %v2751 = vadd.f32 0.0, %v2750
        %v2752 = vpop.f32.mrf.mxu0
        %2753 = vmatprep.mubr.f32.mxu0 0.0
        %2754 = vmatmul.mubr.f32.gmra.mxu0 %v2676
        %v2755 = vpop.f32.mrf.mxu0
        %v2756 = vadd.f32 0.0, %v2755
        %v2757 = vpop.f32.mrf.mxu0
        %2758 = vdwg.mxu0
        %v2760 = vsel %vm955, %v1229, 0
        %v2763 = vsel %vm955, %v1230, 0
        %v2766 = vsel %vm955, %v1537, 0
        %v2769 = vsel %vm955, %v1538, 0
        %2771 = vmatprep.subr.mxu0 0.0
        %2772 = vmatpush1.xpose.msra.mxu0 0.0
        %2773 = vmatprep.subr.mxu0 0.0
        %2774 = vmatpush1.xpose.msra.mxu0 0.0
        %2775 = vmatprep.subr.mxu0 0.0
        %2776 = vmatpush1.xpose.msra.mxu0 0.0
        %2777 = vmatprep.subr.mxu0 0.0
        %2778 = vmatpush1.xpose.msra.mxu0 0.0
        %2779 = vmatprep.subr.mxu0 0.0
        %2780 = vmatpush1.xpose.msra.mxu0 0.0
        %2781 = vmatprep.subr.mxu0 0.0
        %2782 = vmatpush1.xpose.msra.mxu0 0.0
        %2783 = vmatprep.subr.mxu0 0.0
        %2784 = vmatpush1.xpose.msra.mxu0 0.0
        %2785 = vmatprep.subr.mxu0 0.0
        %2786 = vmatpush1.xpose.msra.mxu0 0.0
        %2787 = vmatprep.subr.mxu0 0.0
        %2788 = vmatpush1.xpose.msra.mxu0 0.0
        %2789 = vmatprep.subr.mxu0 0.0
        %2790 = vmatpush1.xpose.msra.mxu0 0.0
        %2791 = vmatprep.subr.mxu0 0.0
        %2792 = vmatpush1.xpose.msra.mxu0 0.0
        %2793 = vmatprep.subr.mxu0 0.0
        %2794 = vmatpush1.xpose.msra.mxu0 0.0
        %2795 = vmatprep.subr.mxu0 0.0
        %2796 = vmatpush1.xpose.msra.mxu0 0.0
        %2797 = vmatprep.subr.mxu0 0.0
        %2798 = vmatpush1.xpose.msra.mxu0 0.0
        %2799 = vmatprep.subr.mxu0 0.0
        %2800 = vmatpush1.xpose.msra.mxu0 %v2769
        %2801 = vmatprep.subr.mxu0 0.0
        %2802 = vmatpush1.xpose.msra.mxu0 %v2766
        %2803 = vmatprep.subr.mxu0 0.0
        %2804 = vmatpush2.xpose.msra.mxu0 0.0
        %2805 = vmatprep.subr.mxu0 0.0
        %2806 = vmatpush2.xpose.msra.mxu0 0.0
        %2807 = vmatprep.subr.mxu0 0.0
        %2808 = vmatpush2.xpose.msra.mxu0 0.0
        %2809 = vmatprep.subr.mxu0 0.0
        %2810 = vmatpush2.xpose.msra.mxu0 0.0
        %2811 = vmatprep.subr.mxu0 0.0
        %2812 = vmatpush2.xpose.msra.mxu0 0.0
        %2813 = vmatprep.subr.mxu0 0.0
        %2814 = vmatpush2.xpose.msra.mxu0 0.0
        %2815 = vmatprep.subr.mxu0 0.0
        %2816 = vmatpush2.xpose.msra.mxu0 0.0
        %2817 = vmatprep.subr.mxu0 0.0
        %2818 = vmatpush2.xpose.msra.mxu0 0.0
        %2819 = vmatprep.subr.mxu0 0.0
        %2820 = vmatpush2.xpose.msra.mxu0 0.0
        %2821 = vmatprep.subr.mxu0 0.0
        %2822 = vmatpush2.xpose.msra.mxu0 0.0
        %2823 = vmatprep.subr.mxu0 0.0
        %2824 = vmatpush2.xpose.msra.mxu0 0.0
        %2825 = vmatprep.subr.mxu0 0.0
        %2826 = vmatpush2.xpose.msra.mxu0 0.0
        %2827 = vmatprep.subr.mxu0 0.0
        %2828 = vmatpush2.xpose.msra.mxu0 0.0
        %2829 = vmatprep.subr.mxu0 0.0
        %2830 = vmatpush2.xpose.msra.mxu0 0.0
        %2831 = vmatprep.subr.mxu0 0.0
        %2832 = vmatpush2.xpose.msra.mxu0 0.0
        %2833 = vmatprep.subr.mxu0 0.0
        %2834 = vmatpush2.xpose.msra.mxu0 0.0
        %2835 = vmatprep.mubr.f32.mxu0 0.0
        %2836 = vmatmul.mubr.f32.gmra.mxu0 %v2760
        %v2837 = vpop.f32.mrf.mxu0
        %v2838 = vadd.f32 0.0, %v2837
        %v2839 = vpop.f32.mrf.mxu0
        %2840 = vmatprep.mubr.f32.mxu0 0.0
        %2841 = vmatmul.mubr.f32.gmra.mxu0 %v2763
        %v2842 = vpop.f32.mrf.mxu0
        %v2843 = vadd.f32 0.0, %v2842
        %v2844 = vpop.f32.mrf.mxu0
        %2845 = vdwg.mxu0
        %v2847 = vsel %vm955, %v1231, 0
        %v2850 = vsel %vm955, %v1232, 0
        %v2853 = vsel %vm955, %v1539, 0
        %v2856 = vsel %vm955, %v1540, 0
        %2858 = vmatprep.subr.mxu0 0.0
        %2859 = vmatpush1.xpose.msra.mxu0 0.0
        %2860 = vmatprep.subr.mxu0 0.0
        %2861 = vmatpush1.xpose.msra.mxu0 0.0
        %2862 = vmatprep.subr.mxu0 0.0
        %2863 = vmatpush1.xpose.msra.mxu0 0.0
        %2864 = vmatprep.subr.mxu0 0.0
        %2865 = vmatpush1.xpose.msra.mxu0 0.0
        %2866 = vmatprep.subr.mxu0 0.0
        %2867 = vmatpush1.xpose.msra.mxu0 0.0
        %2868 = vmatprep.subr.mxu0 0.0
        %2869 = vmatpush1.xpose.msra.mxu0 0.0
        %2870 = vmatprep.subr.mxu0 0.0
        %2871 = vmatpush1.xpose.msra.mxu0 0.0
        %2872 = vmatprep.subr.mxu0 0.0
        %2873 = vmatpush1.xpose.msra.mxu0 0.0
        %2874 = vmatprep.subr.mxu0 0.0
        %2875 = vmatpush1.xpose.msra.mxu0 0.0
        %2876 = vmatprep.subr.mxu0 0.0
        %2877 = vmatpush1.xpose.msra.mxu0 0.0
        %2878 = vmatprep.subr.mxu0 0.0
        %2879 = vmatpush1.xpose.msra.mxu0 0.0
        %2880 = vmatprep.subr.mxu0 0.0
        %2881 = vmatpush1.xpose.msra.mxu0 0.0
        %2882 = vmatprep.subr.mxu0 0.0
        %2883 = vmatpush1.xpose.msra.mxu0 0.0
        %2884 = vmatprep.subr.mxu0 0.0
        %2885 = vmatpush1.xpose.msra.mxu0 0.0
        %2886 = vmatprep.subr.mxu0 0.0
        %2887 = vmatpush1.xpose.msra.mxu0 %v2856
        %2888 = vmatprep.subr.mxu0 0.0
        %2889 = vmatpush1.xpose.msra.mxu0 %v2853
        %2890 = vmatprep.subr.mxu0 0.0
        %2891 = vmatpush2.xpose.msra.mxu0 0.0
        %2892 = vmatprep.subr.mxu0 0.0
        %2893 = vmatpush2.xpose.msra.mxu0 0.0
        %2894 = vmatprep.subr.mxu0 0.0
        %2895 = vmatpush2.xpose.msra.mxu0 0.0
        %2896 = vmatprep.subr.mxu0 0.0
        %2897 = vmatpush2.xpose.msra.mxu0 0.0
        %2898 = vmatprep.subr.mxu0 0.0
        %2899 = vmatpush2.xpose.msra.mxu0 0.0
        %2900 = vmatprep.subr.mxu0 0.0
        %2901 = vmatpush2.xpose.msra.mxu0 0.0
        %2902 = vmatprep.subr.mxu0 0.0
        %2903 = vmatpush2.xpose.msra.mxu0 0.0
        %2904 = vmatprep.subr.mxu0 0.0
        %2905 = vmatpush2.xpose.msra.mxu0 0.0
        %2906 = vmatprep.subr.mxu0 0.0
        %2907 = vmatpush2.xpose.msra.mxu0 0.0
        %2908 = vmatprep.subr.mxu0 0.0
        %2909 = vmatpush2.xpose.msra.mxu0 0.0
        %2910 = vmatprep.subr.mxu0 0.0
        %2911 = vmatpush2.xpose.msra.mxu0 0.0
        %2912 = vmatprep.subr.mxu0 0.0
        %2913 = vmatpush2.xpose.msra.mxu0 0.0
        %2914 = vmatprep.subr.mxu0 0.0
        %2915 = vmatpush2.xpose.msra.mxu0 0.0
        %2916 = vmatprep.subr.mxu0 0.0
        %2917 = vmatpush2.xpose.msra.mxu0 0.0
        %2918 = vmatprep.subr.mxu0 0.0
        %2919 = vmatpush2.xpose.msra.mxu0 0.0
        %2920 = vmatprep.subr.mxu0 0.0
        %2921 = vmatpush2.xpose.msra.mxu0 0.0
        %2922 = vmatprep.mubr.f32.mxu0 0.0
        %2923 = vmatmul.mubr.f32.gmra.mxu0 %v2847
        %v2924 = vpop.f32.mrf.mxu0
        %v2925 = vadd.f32 0.0, %v2924
        %v2926 = vpop.f32.mrf.mxu0
        %2927 = vmatprep.mubr.f32.mxu0 0.0
        %2928 = vmatmul.mubr.f32.gmra.mxu0 %v2850
        %v2929 = vpop.f32.mrf.mxu0
        %v2930 = vadd.f32 0.0, %v2929
        %v2931 = vpop.f32.mrf.mxu0
        %2932 = vdwg.mxu0
        %v2933 = vld [vmem:[%s8] sm:$0xff]
        %v2934 = vld [vmem:[%s8 + $0x8] sm:$0xff]
        %v2935 = vld [vmem:[%s8 + $0x10] sm:$0xff]
        %v2936 = vld [vmem:[%s8 + $0x18] sm:$0xff]
        %v2937 = vld [vmem:[%s8 + $0x20] sm:$0xff]
        %v2938 = vld [vmem:[%s8 + $0x28] sm:$0xff]
        %v2939 = vld [vmem:[%s8 + $0x30] sm:$0xff]
        %v2940 = vld [vmem:[%s8 + $0x38] sm:$0xff]
        %v2941 = vadd.f32 %v1620, %v2933
        %v2942 = vadd.f32 %v1625, %v2934
        %v2943 = vadd.f32 %v1707, %v2933
        %v2944 = vadd.f32 %v1712, %v2934
        %v2945 = vadd.f32 %v1794, %v2933
        %v2946 = vadd.f32 %v1799, %v2934
        %v2947 = vadd.f32 %v1881, %v2933
        %v2948 = vadd.f32 %v1886, %v2934
        %v2949 = vadd.f32 %v1968, %v2935
        %v2950 = vadd.f32 %v1973, %v2936
        %v2951 = vadd.f32 %v2055, %v2935
        %v2952 = vadd.f32 %v2060, %v2936
        %v2953 = vadd.f32 %v2142, %v2935
        %v2954 = vadd.f32 %v2147, %v2936
        %v2955 = vadd.f32 %v2229, %v2935
        %v2956 = vadd.f32 %v2234, %v2936
        %v2957 = vadd.f32 %v2316, %v2937
        %v2958 = vadd.f32 %v2321, %v2938
        %v2959 = vadd.f32 %v2403, %v2937
        %v2960 = vadd.f32 %v2408, %v2938
        %v2961 = vadd.f32 %v2490, %v2937
        %v2962 = vadd.f32 %v2495, %v2938
        %v2963 = vadd.f32 %v2577, %v2937
        %v2964 = vadd.f32 %v2582, %v2938
        %v2965 = vadd.f32 %v2664, %v2939
        %v2966 = vadd.f32 %v2669, %v2940
        %v2967 = vadd.f32 %v2751, %v2939
        %v2968 = vadd.f32 %v2756, %v2940
        %v2969 = vadd.f32 %v2838, %v2939
        %v2970 = vadd.f32 %v2843, %v2940
        %v2971 = vadd.f32 %v2925, %v2939
        %v2972 = vadd.f32 %v2930, %v2940
        %v2973 = vld [vmem:[%s9] sm:$0xff]
        %v2974 = vld [vmem:[%s9 + $0x8] sm:$0xff]
        %v2975 = vld [vmem:[%s9 + $0x10] sm:$0xff]
        %v2976 = vld [vmem:[%s9 + $0x18] sm:$0xff]
        %v2977 = vld [vmem:[%s9 + $0x20] sm:$0xff]
        %v2978 = vld [vmem:[%s9 + $0x28] sm:$0xff]
        %v2979 = vld [vmem:[%s9 + $0x30] sm:$0xff]
        %v2980 = vld [vmem:[%s9 + $0x38] sm:$0xff]
        %v2981 = vadd.f32 %v2941, %v2973
        %v2982 = vadd.f32 %v2942, %v2974
        %v2983 = vadd.f32 %v2943, %v2975
        %v2984 = vadd.f32 %v2944, %v2976
        %v2985 = vadd.f32 %v2945, %v2977
        %v2986 = vadd.f32 %v2946, %v2978
        %v2987 = vadd.f32 %v2947, %v2979
        %v2988 = vadd.f32 %v2948, %v2980
        %v2989 = vadd.f32 %v2949, %v2973
        %v2990 = vadd.f32 %v2950, %v2974
        %v2991 = vadd.f32 %v2951, %v2975
        %v2992 = vadd.f32 %v2952, %v2976
        %v2993 = vadd.f32 %v2953, %v2977
        %v2994 = vadd.f32 %v2954, %v2978
        %v2995 = vadd.f32 %v2955, %v2979
        %v2996 = vadd.f32 %v2956, %v2980
        %v2997 = vadd.f32 %v2957, %v2973
        %v2998 = vadd.f32 %v2958, %v2974
        %v2999 = vadd.f32 %v2959, %v2975
        %v3000 = vadd.f32 %v2960, %v2976
        %v3001 = vadd.f32 %v2961, %v2977
        %v3002 = vadd.f32 %v2962, %v2978
        %v3003 = vadd.f32 %v2963, %v2979
        %v3004 = vadd.f32 %v2964, %v2980
        %v3005 = vadd.f32 %v2965, %v2973
        %v3006 = vadd.f32 %v2966, %v2974
        %v3007 = vadd.f32 %v2967, %v2975
        %v3008 = vadd.f32 %v2968, %v2976
        %v3009 = vadd.f32 %v2969, %v2977
        %v3010 = vadd.f32 %v2970, %v2978
        %v3011 = vadd.f32 %v2971, %v2979
        %v3012 = vadd.f32 %v2972, %v2980
        %vm3013 = vcmask 130048
        %v3014 = vsel %vm3013, %v2981, -inf
        %3015 = vmax.xlane.f32.xlu0 %v3014
        %v3016 = vpop.xlane.xlu0 %3015
        %v3017 = vsel %vm3013, %v2982, -inf
        %3018 = vmax.xlane.f32.xlu0 %v3017
        %v3019 = vpop.xlane.xlu0 %3018
        %v3020 = vsel %vm3013, %v2983, -inf
        %3021 = vmax.xlane.f32.xlu0 %v3020
        %v3022 = vpop.xlane.xlu0 %3021
        %v3023 = vsel %vm3013, %v2984, -inf
        %3024 = vmax.xlane.f32.xlu0 %v3023
        %v3025 = vpop.xlane.xlu0 %3024
        %v3026 = vsel %vm3013, %v2985, -inf
        %3027 = vmax.xlane.f32.xlu0 %v3026
        %v3028 = vpop.xlane.xlu0 %3027
        %v3029 = vsel %vm3013, %v2986, -inf
        %3030 = vmax.xlane.f32.xlu0 %v3029
        %v3031 = vpop.xlane.xlu0 %3030
        %v3032 = vsel %vm3013, %v2987, -inf
        %3033 = vmax.xlane.f32.xlu0 %v3032
        %v3034 = vpop.xlane.xlu0 %3033
        %v3035 = vsel %vm3013, %v2988, -inf
        %3036 = vmax.xlane.f32.xlu0 %v3035
        %v3037 = vpop.xlane.xlu0 %3036
        %v3038 = vsel %vm3013, %v2989, -inf
        %3039 = vmax.xlane.f32.xlu0 %v3038
        %v3040 = vpop.xlane.xlu0 %3039
        %v3041 = vsel %vm3013, %v2990, -inf
        %3042 = vmax.xlane.f32.xlu0 %v3041
        %v3043 = vpop.xlane.xlu0 %3042
        %v3044 = vsel %vm3013, %v2991, -inf
        %3045 = vmax.xlane.f32.xlu0 %v3044
        %v3046 = vpop.xlane.xlu0 %3045
        %v3047 = vsel %vm3013, %v2992, -inf
        %3048 = vmax.xlane.f32.xlu0 %v3047
        %v3049 = vpop.xlane.xlu0 %3048
        %v3050 = vsel %vm3013, %v2993, -inf
        %3051 = vmax.xlane.f32.xlu0 %v3050
        %v3052 = vpop.xlane.xlu0 %3051
        %v3053 = vsel %vm3013, %v2994, -inf
        %3054 = vmax.xlane.f32.xlu0 %v3053
        %v3055 = vpop.xlane.xlu0 %3054
        %v3056 = vsel %vm3013, %v2995, -inf
        %3057 = vmax.xlane.f32.xlu0 %v3056
        %v3058 = vpop.xlane.xlu0 %3057
        %v3059 = vsel %vm3013, %v2996, -inf
        %3060 = vmax.xlane.f32.xlu0 %v3059
        %v3061 = vpop.xlane.xlu0 %3060
        %v3062 = vsel %vm3013, %v2997, -inf
        %3063 = vmax.xlane.f32.xlu0 %v3062
        %v3064 = vpop.xlane.xlu0 %3063
        %v3065 = vsel %vm3013, %v2998, -inf
        %3066 = vmax.xlane.f32.xlu0 %v3065
        %v3067 = vpop.xlane.xlu0 %3066
        %v3068 = vsel %vm3013, %v2999, -inf
        %3069 = vmax.xlane.f32.xlu0 %v3068
        %v3070 = vpop.xlane.xlu0 %3069
        %v3071 = vsel %vm3013, %v3000, -inf
        %3072 = vmax.xlane.f32.xlu0 %v3071
        %v3073 = vpop.xlane.xlu0 %3072
        %v3074 = vsel %vm3013, %v3001, -inf
        %3075 = vmax.xlane.f32.xlu0 %v3074
        %v3076 = vpop.xlane.xlu0 %3075
        %v3077 = vsel %vm3013, %v3002, -inf
        %3078 = vmax.xlane.f32.xlu0 %v3077
        %v3079 = vpop.xlane.xlu0 %3078
        %v3080 = vsel %vm3013, %v3003, -inf
        %3081 = vmax.xlane.f32.xlu0 %v3080
        %v3082 = vpop.xlane.xlu0 %3081
        %v3083 = vsel %vm3013, %v3004, -inf
        %3084 = vmax.xlane.f32.xlu0 %v3083
        %v3085 = vpop.xlane.xlu0 %3084
        %v3086 = vsel %vm3013, %v3005, -inf
        %3087 = vmax.xlane.f32.xlu0 %v3086
        %v3088 = vpop.xlane.xlu0 %3087
        %v3089 = vsel %vm3013, %v3006, -inf
        %3090 = vmax.xlane.f32.xlu0 %v3089
        %v3091 = vpop.xlane.xlu0 %3090
        %v3092 = vsel %vm3013, %v3007, -inf
        %3093 = vmax.xlane.f32.xlu0 %v3092
        %v3094 = vpop.xlane.xlu0 %3093
        %v3095 = vsel %vm3013, %v3008, -inf
        %3096 = vmax.xlane.f32.xlu0 %v3095
        %v3097 = vpop.xlane.xlu0 %3096
        %v3098 = vsel %vm3013, %v3009, -inf
        %3099 = vmax.xlane.f32.xlu0 %v3098
        %v3100 = vpop.xlane.xlu0 %3099
        %v3101 = vsel %vm3013, %v3010, -inf
        %3102 = vmax.xlane.f32.xlu0 %v3101
        %v3103 = vpop.xlane.xlu0 %3102
        %v3104 = vsel %vm3013, %v3011, -inf
        %3105 = vmax.xlane.f32.xlu0 %v3104
        %v3106 = vpop.xlane.xlu0 %3105
        %v3107 = vsel %vm3013, %v3012, -inf
        %3108 = vmax.xlane.f32.xlu0 %v3107
        %v3109 = vpop.xlane.xlu0 %3108
        %v3110 = vsub.f32 %v2981, %v3016
        %v3111 = vsub.f32 %v2982, %v3019
        %v3112 = vsub.f32 %v2983, %v3022
        %v3113 = vsub.f32 %v2984, %v3025
        %v3114 = vsub.f32 %v2985, %v3028
        %v3115 = vsub.f32 %v2986, %v3031
        %v3116 = vsub.f32 %v2987, %v3034
        %v3117 = vsub.f32 %v2988, %v3037
        %v3118 = vsub.f32 %v2989, %v3040
        %v3119 = vsub.f32 %v2990, %v3043
        %v3120 = vsub.f32 %v2991, %v3046
        %v3121 = vsub.f32 %v2992, %v3049
        %v3122 = vsub.f32 %v2993, %v3052
        %v3123 = vsub.f32 %v2994, %v3055
        %v3124 = vsub.f32 %v2995, %v3058
        %v3125 = vsub.f32 %v2996, %v3061
        %v3126 = vsub.f32 %v2997, %v3064
        %v3127 = vsub.f32 %v2998, %v3067
        %v3128 = vsub.f32 %v2999, %v3070
        %v3129 = vsub.f32 %v3000, %v3073
        %v3130 = vsub.f32 %v3001, %v3076
        %v3131 = vsub.f32 %v3002, %v3079
        %v3132 = vsub.f32 %v3003, %v3082
        %v3133 = vsub.f32 %v3004, %v3085
        %v3134 = vsub.f32 %v3005, %v3088
        %v3135 = vsub.f32 %v3006, %v3091
        %v3136 = vsub.f32 %v3007, %v3094
        %v3137 = vsub.f32 %v3008, %v3097
        %v3138 = vsub.f32 %v3009, %v3100
        %v3139 = vsub.f32 %v3010, %v3103
        %v3140 = vsub.f32 %v3011, %v3106
        %v3141 = vsub.f32 %v3012, %v3109
        %v3142 = vmul.f32 %v3110, 1.442695
        %v3143 = vpow.pop %v3142
        %v3144 = vmul.f32 %v3111, 1.442695
        %v3145 = vpow.pop %v3144
        %v3146 = vmul.f32 %v3112, 1.442695
        %v3147 = vpow.pop %v3146
        %v3148 = vmul.f32 %v3113, 1.442695
        %v3149 = vpow.pop %v3148
        %v3150 = vmul.f32 %v3114, 1.442695
        %v3151 = vpow.pop %v3150
        %v3152 = vmul.f32 %v3115, 1.442695
        %v3153 = vpow.pop %v3152
        %v3154 = vmul.f32 %v3116, 1.442695
        %v3155 = vpow.pop %v3154
        %v3156 = vmul.f32 %v3117, 1.442695
        %v3157 = vpow.pop %v3156
        %v3158 = vmul.f32 %v3118, 1.442695
        %v3159 = vpow.pop %v3158
        %v3160 = vmul.f32 %v3119, 1.442695
        %v3161 = vpow.pop %v3160
        %v3162 = vmul.f32 %v3120, 1.442695
        %v3163 = vpow.pop %v3162
        %v3164 = vmul.f32 %v3121, 1.442695
        %v3165 = vpow.pop %v3164
        %v3166 = vmul.f32 %v3122, 1.442695
        %v3167 = vpow.pop %v3166
        %v3168 = vmul.f32 %v3123, 1.442695
        %v3169 = vpow.pop %v3168
        %v3170 = vmul.f32 %v3124, 1.442695
        %v3171 = vpow.pop %v3170
        %v3172 = vmul.f32 %v3125, 1.442695
        %v3173 = vpow.pop %v3172
        %v3174 = vmul.f32 %v3126, 1.442695
        %v3175 = vpow.pop %v3174
        %v3176 = vmul.f32 %v3127, 1.442695
        %v3177 = vpow.pop %v3176
        %v3178 = vmul.f32 %v3128, 1.442695
        %v3179 = vpow.pop %v3178
        %v3180 = vmul.f32 %v3129, 1.442695
        %v3181 = vpow.pop %v3180
        %v3182 = vmul.f32 %v3130, 1.442695
        %v3183 = vpow.pop %v3182
        %v3184 = vmul.f32 %v3131, 1.442695
        %v3185 = vpow.pop %v3184
        %v3186 = vmul.f32 %v3132, 1.442695
        %v3187 = vpow.pop %v3186
        %v3188 = vmul.f32 %v3133, 1.442695
        %v3189 = vpow.pop %v3188
        %v3190 = vmul.f32 %v3134, 1.442695
        %v3191 = vpow.pop %v3190
        %v3192 = vmul.f32 %v3135, 1.442695
        %v3193 = vpow.pop %v3192
        %v3194 = vmul.f32 %v3136, 1.442695
        %v3195 = vpow.pop %v3194
        %v3196 = vmul.f32 %v3137, 1.442695
        %v3197 = vpow.pop %v3196
        %v3198 = vmul.f32 %v3138, 1.442695
        %v3199 = vpow.pop %v3198
        %v3200 = vmul.f32 %v3139, 1.442695
        %v3201 = vpow.pop %v3200
        %v3202 = vmul.f32 %v3140, 1.442695
        %v3203 = vpow.pop %v3202
        %v3204 = vmul.f32 %v3141, 1.442695
        %v3205 = vpow.pop %v3204
        %v3206 = vsel %vm3013, %v3143, 0.0
        %3207 = vadd.xlane.f32.xlu0 %v3206
        %v3208 = vpop.xlane.xlu0 %3207
        %v3209 = vsel %vm3013, %v3145, 0.0
        %3210 = vadd.xlane.f32.xlu0 %v3209
        %v3211 = vpop.xlane.xlu0 %3210
        %v3212 = vsel %vm3013, %v3147, 0.0
        %3213 = vadd.xlane.f32.xlu0 %v3212
        %v3214 = vpop.xlane.xlu0 %3213
        %v3215 = vsel %vm3013, %v3149, 0.0
        %3216 = vadd.xlane.f32.xlu0 %v3215
        %v3217 = vpop.xlane.xlu0 %3216
        %v3218 = vsel %vm3013, %v3151, 0.0
        %3219 = vadd.xlane.f32.xlu0 %v3218
        %v3220 = vpop.xlane.xlu0 %3219
        %v3221 = vsel %vm3013, %v3153, 0.0
        %3222 = vadd.xlane.f32.xlu0 %v3221
        %v3223 = vpop.xlane.xlu0 %3222
        %v3224 = vsel %vm3013, %v3155, 0.0
        %3225 = vadd.xlane.f32.xlu0 %v3224
        %v3226 = vpop.xlane.xlu0 %3225
        %v3227 = vsel %vm3013, %v3157, 0.0
        %3228 = vadd.xlane.f32.xlu0 %v3227
        %v3229 = vpop.xlane.xlu0 %3228
        %v3230 = vsel %vm3013, %v3159, 0.0
        %3231 = vadd.xlane.f32.xlu0 %v3230
        %v3232 = vpop.xlane.xlu0 %3231
        %v3233 = vsel %vm3013, %v3161, 0.0
        %3234 = vadd.xlane.f32.xlu0 %v3233
        %v3235 = vpop.xlane.xlu0 %3234
        %v3236 = vsel %vm3013, %v3163, 0.0
        %3237 = vadd.xlane.f32.xlu0 %v3236
        %v3238 = vpop.xlane.xlu0 %3237
        %v3239 = vsel %vm3013, %v3165, 0.0
        %3240 = vadd.xlane.f32.xlu0 %v3239
        %v3241 = vpop.xlane.xlu0 %3240
        %v3242 = vsel %vm3013, %v3167, 0.0
        %3243 = vadd.xlane.f32.xlu0 %v3242
        %v3244 = vpop.xlane.xlu0 %3243
        %v3245 = vsel %vm3013, %v3169, 0.0
        %3246 = vadd.xlane.f32.xlu0 %v3245
        %v3247 = vpop.xlane.xlu0 %3246
        %v3248 = vsel %vm3013, %v3171, 0.0
        %3249 = vadd.xlane.f32.xlu0 %v3248
        %v3250 = vpop.xlane.xlu0 %3249
        %v3251 = vsel %vm3013, %v3173, 0.0
        %3252 = vadd.xlane.f32.xlu0 %v3251
        %v3253 = vpop.xlane.xlu0 %3252
        %v3254 = vsel %vm3013, %v3175, 0.0
        %3255 = vadd.xlane.f32.xlu0 %v3254
        %v3256 = vpop.xlane.xlu0 %3255
        %v3257 = vsel %vm3013, %v3177, 0.0
        %3258 = vadd.xlane.f32.xlu0 %v3257
        %v3259 = vpop.xlane.xlu0 %3258
        %v3260 = vsel %vm3013, %v3179, 0.0
        %3261 = vadd.xlane.f32.xlu0 %v3260
        %v3262 = vpop.xlane.xlu0 %3261
        %v3263 = vsel %vm3013, %v3181, 0.0
        %3264 = vadd.xlane.f32.xlu0 %v3263
        %v3265 = vpop.xlane.xlu0 %3264
        %v3266 = vsel %vm3013, %v3183, 0.0
        %3267 = vadd.xlane.f32.xlu0 %v3266
        %v3268 = vpop.xlane.xlu0 %3267
        %v3269 = vsel %vm3013, %v3185, 0.0
        %3270 = vadd.xlane.f32.xlu0 %v3269
        %v3271 = vpop.xlane.xlu0 %3270
        %v3272 = vsel %vm3013, %v3187, 0.0
        %3273 = vadd.xlane.f32.xlu0 %v3272
        %v3274 = vpop.xlane.xlu0 %3273
        %v3275 = vsel %vm3013, %v3189, 0.0
        %3276 = vadd.xlane.f32.xlu0 %v3275
        %v3277 = vpop.xlane.xlu0 %3276
        %v3278 = vsel %vm3013, %v3191, 0.0
        %3279 = vadd.xlane.f32.xlu0 %v3278
        %v3280 = vpop.xlane.xlu0 %3279
        %v3281 = vsel %vm3013, %v3193, 0.0
        %3282 = vadd.xlane.f32.xlu0 %v3281
        %v3283 = vpop.xlane.xlu0 %3282
        %v3284 = vsel %vm3013, %v3195, 0.0
        %3285 = vadd.xlane.f32.xlu0 %v3284
        %v3286 = vpop.xlane.xlu0 %3285
        %v3287 = vsel %vm3013, %v3197, 0.0
        %3288 = vadd.xlane.f32.xlu0 %v3287
        %v3289 = vpop.xlane.xlu0 %3288
        %v3290 = vsel %vm3013, %v3199, 0.0
        %3291 = vadd.xlane.f32.xlu0 %v3290
        %v3292 = vpop.xlane.xlu0 %3291
        %v3293 = vsel %vm3013, %v3201, 0.0
        %3294 = vadd.xlane.f32.xlu0 %v3293
        %v3295 = vpop.xlane.xlu0 %3294
        %v3296 = vsel %vm3013, %v3203, 0.0
        %3297 = vadd.xlane.f32.xlu0 %v3296
        %v3298 = vpop.xlane.xlu0 %3297
        %v3299 = vsel %vm3013, %v3205, 0.0
        %3300 = vadd.xlane.f32.xlu0 %v3299
        %v3301 = vpop.xlane.xlu0 %3300
        %v3302 = vrcp.pop %v3208
        %v3303 = vrcp.pop %v3211
        %v3304 = vrcp.pop %v3214
        %v3305 = vrcp.pop %v3217
        %v3306 = vrcp.pop %v3220
        %v3307 = vrcp.pop %v3223
        %v3308 = vrcp.pop %v3226
        %v3309 = vrcp.pop %v3229
        %v3310 = vrcp.pop %v3232
        %v3311 = vrcp.pop %v3235
        %v3312 = vrcp.pop %v3238
        %v3313 = vrcp.pop %v3241
        %v3314 = vrcp.pop %v3244
        %v3315 = vrcp.pop %v3247
        %v3316 = vrcp.pop %v3250
        %v3317 = vrcp.pop %v3253
        %v3318 = vrcp.pop %v3256
        %v3319 = vrcp.pop %v3259
        %v3320 = vrcp.pop %v3262
        %v3321 = vrcp.pop %v3265
        %v3322 = vrcp.pop %v3268
        %v3323 = vrcp.pop %v3271
        %v3324 = vrcp.pop %v3274
        %v3325 = vrcp.pop %v3277
        %v3326 = vrcp.pop %v3280
        %v3327 = vrcp.pop %v3283
        %v3328 = vrcp.pop %v3286
        %v3329 = vrcp.pop %v3289
        %v3330 = vrcp.pop %v3292
        %v3331 = vrcp.pop %v3295
        %v3332 = vrcp.pop %v3298
        %v3333 = vrcp.pop %v3301
        %v3334 = vmul.f32 %v3143, %v3302
        %v3335 = vmul.f32 %v3145, %v3303
        %v3336 = vmul.f32 %v3147, %v3304
        %v3337 = vmul.f32 %v3149, %v3305
        %v3338 = vmul.f32 %v3151, %v3306
        %v3339 = vmul.f32 %v3153, %v3307
        %v3340 = vmul.f32 %v3155, %v3308
        %v3341 = vmul.f32 %v3157, %v3309
        %v3342 = vmul.f32 %v3159, %v3310
        %v3343 = vmul.f32 %v3161, %v3311
        %v3344 = vmul.f32 %v3163, %v3312
        %v3345 = vmul.f32 %v3165, %v3313
        %v3346 = vmul.f32 %v3167, %v3314
        %v3347 = vmul.f32 %v3169, %v3315
        %v3348 = vmul.f32 %v3171, %v3316
        %v3349 = vmul.f32 %v3173, %v3317
        %v3350 = vmul.f32 %v3175, %v3318
        %v3351 = vmul.f32 %v3177, %v3319
        %v3352 = vmul.f32 %v3179, %v3320
        %v3353 = vmul.f32 %v3181, %v3321
        %v3354 = vmul.f32 %v3183, %v3322
        %v3355 = vmul.f32 %v3185, %v3323
        %v3356 = vmul.f32 %v3187, %v3324
        %v3357 = vmul.f32 %v3189, %v3325
        %v3358 = vmul.f32 %v3191, %v3326
        %v3359 = vmul.f32 %v3193, %v3327
        %v3360 = vmul.f32 %v3195, %v3328
        %v3361 = vmul.f32 %v3197, %v3329
        %v3362 = vmul.f32 %v3199, %v3330
        %v3363 = vmul.f32 %v3201, %v3331
        %v3364 = vmul.f32 %v3203, %v3332
        %v3365 = vmul.f32 %v3205, %v3333
        %v3366 = vpack.c.bf16 %v3335, %v3334
        %v3367 = vpack.c.bf16 %v3337, %v3336
        %v3368 = vpack.c.bf16 %v3339, %v3338
        %v3369 = vpack.c.bf16 %v3341, %v3340
        %v3370 = vpack.c.bf16 %v3343, %v3342
        %v3371 = vpack.c.bf16 %v3345, %v3344
        %v3372 = vpack.c.bf16 %v3347, %v3346
        %v3373 = vpack.c.bf16 %v3349, %v3348
        %v3374 = vpack.c.bf16 %v3351, %v3350
        %v3375 = vpack.c.bf16 %v3353, %v3352
        %v3376 = vpack.c.bf16 %v3355, %v3354
        %v3377 = vpack.c.bf16 %v3357, %v3356
        %v3378 = vpack.c.bf16 %v3359, %v3358
        %v3379 = vpack.c.bf16 %v3361, %v3360
        %v3380 = vpack.c.bf16 %v3363, %v3362
        %v3381 = vpack.c.bf16 %v3365, %v3364
        %3383 = vrot.lane.b32.xlu0 %v855, 96
        %v3384 = vpop.permute.xlu0 %3383
        %v3387 = vsel %vm3013, %v3366, 0
        %3389 = vmatprep.subr.bf16.mxu0 0
        %3390 = vmatpush1.bf16.msra.mxu0 0
        %3391 = vmatprep.subr.bf16.mxu0 0
        %3392 = vmatpush1.bf16.msra.mxu0 0
        %3393 = vmatprep.subr.bf16.mxu0 0
        %3394 = vmatpush1.bf16.msra.mxu0 0
        %3395 = vmatprep.subr.bf16.mxu0 0
        %3396 = vmatpush1.bf16.msra.mxu0 0
        %3397 = vmatprep.subr.bf16.mxu0 0
        %3398 = vmatpush1.bf16.msra.mxu0 0
        %3399 = vmatprep.subr.bf16.mxu0 0
        %3400 = vmatpush1.bf16.msra.mxu0 0
        %3401 = vmatprep.subr.bf16.mxu0 0
        %3402 = vmatpush1.bf16.msra.mxu0 0
        %3403 = vmatprep.subr.bf16.mxu0 0
        %3404 = vmatpush1.bf16.msra.mxu0 %v3384
        %3405 = vmatprep.subr.bf16.mxu0 0
        %3406 = vmatpush2.bf16.msra.mxu0 0
        %3407 = vmatprep.subr.bf16.mxu0 0
        %3408 = vmatpush2.bf16.msra.mxu0 0
        %3409 = vmatprep.subr.bf16.mxu0 0
        %3410 = vmatpush2.bf16.msra.mxu0 0
        %3411 = vmatprep.subr.bf16.mxu0 0
        %3412 = vmatpush2.bf16.msra.mxu0 0
        %3413 = vmatprep.subr.bf16.mxu0 0
        %3414 = vmatpush2.bf16.msra.mxu0 0
        %3415 = vmatprep.subr.bf16.mxu0 0
        %3416 = vmatpush2.bf16.msra.mxu0 0
        %3417 = vmatprep.subr.bf16.mxu0 0
        %3418 = vmatpush2.bf16.msra.mxu0 0
        %3419 = vmatprep.subr.bf16.mxu0 0
        %3420 = vmatpush2.bf16.msra.mxu0 0
        %3421 = vmatprep.mubr.bf16.mxu0 0
        %3422 = vmatmul.mubr.bf16.gmra.mxu0 %v3387
        %v3423 = vpop.f32.mrf.mxu0
        %v3424 = vadd.f32 0.0, %v3423
        %v3425 = vpop.f32.mrf.mxu0
        %v3426 = vpop.f32.mrf.mxu0
        %v3427 = vadd.f32 0.0, %v3426
        %v3428 = vpop.f32.mrf.mxu0
        %3429 = vdwg.mxu0
        %3431 = vrot.lane.b32.xlu0 %v856, 96
        %v3432 = vpop.permute.xlu0 %3431
        %v3435 = vsel %vm3013, %v3367, 0
        %3437 = vmatprep.subr.bf16.mxu0 0
        %3438 = vmatpush1.bf16.msra.mxu0 0
        %3439 = vmatprep.subr.bf16.mxu0 0
        %3440 = vmatpush1.bf16.msra.mxu0 0
        %3441 = vmatprep.subr.bf16.mxu0 0
        %3442 = vmatpush1.bf16.msra.mxu0 0
        %3443 = vmatprep.subr.bf16.mxu0 0
        %3444 = vmatpush1.bf16.msra.mxu0 0
        %3445 = vmatprep.subr.bf16.mxu0 0
        %3446 = vmatpush1.bf16.msra.mxu0 0
        %3447 = vmatprep.subr.bf16.mxu0 0
        %3448 = vmatpush1.bf16.msra.mxu0 0
        %3449 = vmatprep.subr.bf16.mxu0 0
        %3450 = vmatpush1.bf16.msra.mxu0 0
        %3451 = vmatprep.subr.bf16.mxu0 0
        %3452 = vmatpush1.bf16.msra.mxu0 %v3432
        %3453 = vmatprep.subr.bf16.mxu0 0
        %3454 = vmatpush2.bf16.msra.mxu0 0
        %3455 = vmatprep.subr.bf16.mxu0 0
        %3456 = vmatpush2.bf16.msra.mxu0 0
        %3457 = vmatprep.subr.bf16.mxu0 0
        %3458 = vmatpush2.bf16.msra.mxu0 0
        %3459 = vmatprep.subr.bf16.mxu0 0
        %3460 = vmatpush2.bf16.msra.mxu0 0
        %3461 = vmatprep.subr.bf16.mxu0 0
        %3462 = vmatpush2.bf16.msra.mxu0 0
        %3463 = vmatprep.subr.bf16.mxu0 0
        %3464 = vmatpush2.bf16.msra.mxu0 0
        %3465 = vmatprep.subr.bf16.mxu0 0
        %3466 = vmatpush2.bf16.msra.mxu0 0
        %3467 = vmatprep.subr.bf16.mxu0 0
        %3468 = vmatpush2.bf16.msra.mxu0 0
        %3469 = vmatprep.mubr.bf16.mxu0 0
        %3470 = vmatmul.mubr.bf16.gmra.mxu0 %v3435
        %v3471 = vpop.f32.mrf.mxu0
        %v3472 = vadd.f32 0.0, %v3471
        %v3473 = vpop.f32.mrf.mxu0
        %v3474 = vpop.f32.mrf.mxu0
        %v3475 = vadd.f32 0.0, %v3474
        %v3476 = vpop.f32.mrf.mxu0
        %3477 = vdwg.mxu0
        %3479 = vrot.lane.b32.xlu0 %v857, 96
        %v3480 = vpop.permute.xlu0 %3479
        %v3483 = vsel %vm3013, %v3368, 0
        %3485 = vmatprep.subr.bf16.mxu0 0
        %3486 = vmatpush1.bf16.msra.mxu0 0
        %3487 = vmatprep.subr.bf16.mxu0 0
        %3488 = vmatpush1.bf16.msra.mxu0 0
        %3489 = vmatprep.subr.bf16.mxu0 0
        %3490 = vmatpush1.bf16.msra.mxu0 0
        %3491 = vmatprep.subr.bf16.mxu0 0
        %3492 = vmatpush1.bf16.msra.mxu0 0
        %3493 = vmatprep.subr.bf16.mxu0 0
        %3494 = vmatpush1.bf16.msra.mxu0 0
        %3495 = vmatprep.subr.bf16.mxu0 0
        %3496 = vmatpush1.bf16.msra.mxu0 0
        %3497 = vmatprep.subr.bf16.mxu0 0
        %3498 = vmatpush1.bf16.msra.mxu0 0
        %3499 = vmatprep.subr.bf16.mxu0 0
        %3500 = vmatpush1.bf16.msra.mxu0 %v3480
        %3501 = vmatprep.subr.bf16.mxu0 0
        %3502 = vmatpush2.bf16.msra.mxu0 0
        %3503 = vmatprep.subr.bf16.mxu0 0
        %3504 = vmatpush2.bf16.msra.mxu0 0
        %3505 = vmatprep.subr.bf16.mxu0 0
        %3506 = vmatpush2.bf16.msra.mxu0 0
        %3507 = vmatprep.subr.bf16.mxu0 0
        %3508 = vmatpush2.bf16.msra.mxu0 0
        %3509 = vmatprep.subr.bf16.mxu0 0
        %3510 = vmatpush2.bf16.msra.mxu0 0
        %3511 = vmatprep.subr.bf16.mxu0 0
        %3512 = vmatpush2.bf16.msra.mxu0 0
        %3513 = vmatprep.subr.bf16.mxu0 0
        %3514 = vmatpush2.bf16.msra.mxu0 0
        %3515 = vmatprep.subr.bf16.mxu0 0
        %3516 = vmatpush2.bf16.msra.mxu0 0
        %3517 = vmatprep.mubr.bf16.mxu0 0
        %3518 = vmatmul.mubr.bf16.gmra.mxu0 %v3483
        %v3519 = vpop.f32.mrf.mxu0
        %v3520 = vadd.f32 0.0, %v3519
        %v3521 = vpop.f32.mrf.mxu0
        %v3522 = vpop.f32.mrf.mxu0
        %v3523 = vadd.f32 0.0, %v3522
        %v3524 = vpop.f32.mrf.mxu0
        %3525 = vdwg.mxu0
        %3527 = vrot.lane.b32.xlu0 %v858, 96
        %v3528 = vpop.permute.xlu0 %3527
        %v3531 = vsel %vm3013, %v3369, 0
        %3533 = vmatprep.subr.bf16.mxu0 0
        %3534 = vmatpush1.bf16.msra.mxu0 0
        %3535 = vmatprep.subr.bf16.mxu0 0
        %3536 = vmatpush1.bf16.msra.mxu0 0
        %3537 = vmatprep.subr.bf16.mxu0 0
        %3538 = vmatpush1.bf16.msra.mxu0 0
        %3539 = vmatprep.subr.bf16.mxu0 0
        %3540 = vmatpush1.bf16.msra.mxu0 0
        %3541 = vmatprep.subr.bf16.mxu0 0
        %3542 = vmatpush1.bf16.msra.mxu0 0
        %3543 = vmatprep.subr.bf16.mxu0 0
        %3544 = vmatpush1.bf16.msra.mxu0 0
        %3545 = vmatprep.subr.bf16.mxu0 0
        %3546 = vmatpush1.bf16.msra.mxu0 0
        %3547 = vmatprep.subr.bf16.mxu0 0
        %3548 = vmatpush1.bf16.msra.mxu0 %v3528
        %3549 = vmatprep.subr.bf16.mxu0 0
        %3550 = vmatpush2.bf16.msra.mxu0 0
        %3551 = vmatprep.subr.bf16.mxu0 0
        %3552 = vmatpush2.bf16.msra.mxu0 0
        %3553 = vmatprep.subr.bf16.mxu0 0
        %3554 = vmatpush2.bf16.msra.mxu0 0
        %3555 = vmatprep.subr.bf16.mxu0 0
        %3556 = vmatpush2.bf16.msra.mxu0 0
        %3557 = vmatprep.subr.bf16.mxu0 0
        %3558 = vmatpush2.bf16.msra.mxu0 0
        %3559 = vmatprep.subr.bf16.mxu0 0
        %3560 = vmatpush2.bf16.msra.mxu0 0
        %3561 = vmatprep.subr.bf16.mxu0 0
        %3562 = vmatpush2.bf16.msra.mxu0 0
        %3563 = vmatprep.subr.bf16.mxu0 0
        %3564 = vmatpush2.bf16.msra.mxu0 0
        %3565 = vmatprep.mubr.bf16.mxu0 0
        %3566 = vmatmul.mubr.bf16.gmra.mxu0 %v3531
        %v3567 = vpop.f32.mrf.mxu0
        %v3568 = vadd.f32 0.0, %v3567
        %v3569 = vpop.f32.mrf.mxu0
        %v3570 = vpop.f32.mrf.mxu0
        %v3571 = vadd.f32 0.0, %v3570
        %v3572 = vpop.f32.mrf.mxu0
        %3573 = vdwg.mxu0
        %3575 = vrot.lane.b32.xlu0 %v859, 96
        %v3576 = vpop.permute.xlu0 %3575
        %v3579 = vsel %vm3013, %v3370, 0
        %3581 = vmatprep.subr.bf16.mxu0 0
        %3582 = vmatpush1.bf16.msra.mxu0 0
        %3583 = vmatprep.subr.bf16.mxu0 0
        %3584 = vmatpush1.bf16.msra.mxu0 0
        %3585 = vmatprep.subr.bf16.mxu0 0
        %3586 = vmatpush1.bf16.msra.mxu0 0
        %3587 = vmatprep.subr.bf16.mxu0 0
        %3588 = vmatpush1.bf16.msra.mxu0 0
        %3589 = vmatprep.subr.bf16.mxu0 0
        %3590 = vmatpush1.bf16.msra.mxu0 0
        %3591 = vmatprep.subr.bf16.mxu0 0
        %3592 = vmatpush1.bf16.msra.mxu0 0
        %3593 = vmatprep.subr.bf16.mxu0 0
        %3594 = vmatpush1.bf16.msra.mxu0 0
        %3595 = vmatprep.subr.bf16.mxu0 0
        %3596 = vmatpush1.bf16.msra.mxu0 %v3576
        %3597 = vmatprep.subr.bf16.mxu0 0
        %3598 = vmatpush2.bf16.msra.mxu0 0
        %3599 = vmatprep.subr.bf16.mxu0 0
        %3600 = vmatpush2.bf16.msra.mxu0 0
        %3601 = vmatprep.subr.bf16.mxu0 0
        %3602 = vmatpush2.bf16.msra.mxu0 0
        %3603 = vmatprep.subr.bf16.mxu0 0
        %3604 = vmatpush2.bf16.msra.mxu0 0
        %3605 = vmatprep.subr.bf16.mxu0 0
        %3606 = vmatpush2.bf16.msra.mxu0 0
        %3607 = vmatprep.subr.bf16.mxu0 0
        %3608 = vmatpush2.bf16.msra.mxu0 0
        %3609 = vmatprep.subr.bf16.mxu0 0
        %3610 = vmatpush2.bf16.msra.mxu0 0
        %3611 = vmatprep.subr.bf16.mxu0 0
        %3612 = vmatpush2.bf16.msra.mxu0 0
        %3613 = vmatprep.mubr.bf16.mxu0 0
        %3614 = vmatmul.mubr.bf16.gmra.mxu0 %v3579
        %v3615 = vpop.f32.mrf.mxu0
        %v3616 = vadd.f32 0.0, %v3615
        %v3617 = vpop.f32.mrf.mxu0
        %v3618 = vpop.f32.mrf.mxu0
        %v3619 = vadd.f32 0.0, %v3618
        %v3620 = vpop.f32.mrf.mxu0
        %3621 = vdwg.mxu0
        %3623 = vrot.lane.b32.xlu0 %v860, 96
        %v3624 = vpop.permute.xlu0 %3623
        %v3627 = vsel %vm3013, %v3371, 0
        %3629 = vmatprep.subr.bf16.mxu0 0
        %3630 = vmatpush1.bf16.msra.mxu0 0
        %3631 = vmatprep.subr.bf16.mxu0 0
        %3632 = vmatpush1.bf16.msra.mxu0 0
        %3633 = vmatprep.subr.bf16.mxu0 0
        %3634 = vmatpush1.bf16.msra.mxu0 0
        %3635 = vmatprep.subr.bf16.mxu0 0
        %3636 = vmatpush1.bf16.msra.mxu0 0
        %3637 = vmatprep.subr.bf16.mxu0 0
        %3638 = vmatpush1.bf16.msra.mxu0 0
        %3639 = vmatprep.subr.bf16.mxu0 0
        %3640 = vmatpush1.bf16.msra.mxu0 0
        %3641 = vmatprep.subr.bf16.mxu0 0
        %3642 = vmatpush1.bf16.msra.mxu0 0
        %3643 = vmatprep.subr.bf16.mxu0 0
        %3644 = vmatpush1.bf16.msra.mxu0 %v3624
        %3645 = vmatprep.subr.bf16.mxu0 0
        %3646 = vmatpush2.bf16.msra.mxu0 0
        %3647 = vmatprep.subr.bf16.mxu0 0
        %3648 = vmatpush2.bf16.msra.mxu0 0
        %3649 = vmatprep.subr.bf16.mxu0 0
        %3650 = vmatpush2.bf16.msra.mxu0 0
        %3651 = vmatprep.subr.bf16.mxu0 0
        %3652 = vmatpush2.bf16.msra.mxu0 0
        %3653 = vmatprep.subr.bf16.mxu0 0
        %3654 = vmatpush2.bf16.msra.mxu0 0
        %3655 = vmatprep.subr.bf16.mxu0 0
        %3656 = vmatpush2.bf16.msra.mxu0 0
        %3657 = vmatprep.subr.bf16.mxu0 0
        %3658 = vmatpush2.bf16.msra.mxu0 0
        %3659 = vmatprep.subr.bf16.mxu0 0
        %3660 = vmatpush2.bf16.msra.mxu0 0
        %3661 = vmatprep.mubr.bf16.mxu0 0
        %3662 = vmatmul.mubr.bf16.gmra.mxu0 %v3627
        %v3663 = vpop.f32.mrf.mxu0
        %v3664 = vadd.f32 0.0, %v3663
        %v3665 = vpop.f32.mrf.mxu0
        %v3666 = vpop.f32.mrf.mxu0
        %v3667 = vadd.f32 0.0, %v3666
        %v3668 = vpop.f32.mrf.mxu0
        %3669 = vdwg.mxu0
        %3671 = vrot.lane.b32.xlu0 %v861, 96
        %v3672 = vpop.permute.xlu0 %3671
        %v3675 = vsel %vm3013, %v3372, 0
        %3677 = vmatprep.subr.bf16.mxu0 0
        %3678 = vmatpush1.bf16.msra.mxu0 0
        %3679 = vmatprep.subr.bf16.mxu0 0
        %3680 = vmatpush1.bf16.msra.mxu0 0
        %3681 = vmatprep.subr.bf16.mxu0 0
        %3682 = vmatpush1.bf16.msra.mxu0 0
        %3683 = vmatprep.subr.bf16.mxu0 0
        %3684 = vmatpush1.bf16.msra.mxu0 0
        %3685 = vmatprep.subr.bf16.mxu0 0
        %3686 = vmatpush1.bf16.msra.mxu0 0
        %3687 = vmatprep.subr.bf16.mxu0 0
        %3688 = vmatpush1.bf16.msra.mxu0 0
        %3689 = vmatprep.subr.bf16.mxu0 0
        %3690 = vmatpush1.bf16.msra.mxu0 0
        %3691 = vmatprep.subr.bf16.mxu0 0
        %3692 = vmatpush1.bf16.msra.mxu0 %v3672
        %3693 = vmatprep.subr.bf16.mxu0 0
        %3694 = vmatpush2.bf16.msra.mxu0 0
        %3695 = vmatprep.subr.bf16.mxu0 0
        %3696 = vmatpush2.bf16.msra.mxu0 0
        %3697 = vmatprep.subr.bf16.mxu0 0
        %3698 = vmatpush2.bf16.msra.mxu0 0
        %3699 = vmatprep.subr.bf16.mxu0 0
        %3700 = vmatpush2.bf16.msra.mxu0 0
        %3701 = vmatprep.subr.bf16.mxu0 0
        %3702 = vmatpush2.bf16.msra.mxu0 0
        %3703 = vmatprep.subr.bf16.mxu0 0
        %3704 = vmatpush2.bf16.msra.mxu0 0
        %3705 = vmatprep.subr.bf16.mxu0 0
        %3706 = vmatpush2.bf16.msra.mxu0 0
        %3707 = vmatprep.subr.bf16.mxu0 0
        %3708 = vmatpush2.bf16.msra.mxu0 0
        %3709 = vmatprep.mubr.bf16.mxu0 0
        %3710 = vmatmul.mubr.bf16.gmra.mxu0 %v3675
        %v3711 = vpop.f32.mrf.mxu0
        %v3712 = vadd.f32 0.0, %v3711
        %v3713 = vpop.f32.mrf.mxu0
        %v3714 = vpop.f32.mrf.mxu0
        %v3715 = vadd.f32 0.0, %v3714
        %v3716 = vpop.f32.mrf.mxu0
        %3717 = vdwg.mxu0
        %3719 = vrot.lane.b32.xlu0 %v862, 96
        %v3720 = vpop.permute.xlu0 %3719
        %v3723 = vsel %vm3013, %v3373, 0
        %3725 = vmatprep.subr.bf16.mxu0 0
        %3726 = vmatpush1.bf16.msra.mxu0 0
        %3727 = vmatprep.subr.bf16.mxu0 0
        %3728 = vmatpush1.bf16.msra.mxu0 0
        %3729 = vmatprep.subr.bf16.mxu0 0
        %3730 = vmatpush1.bf16.msra.mxu0 0
        %3731 = vmatprep.subr.bf16.mxu0 0
        %3732 = vmatpush1.bf16.msra.mxu0 0
        %3733 = vmatprep.subr.bf16.mxu0 0
        %3734 = vmatpush1.bf16.msra.mxu0 0
        %3735 = vmatprep.subr.bf16.mxu0 0
        %3736 = vmatpush1.bf16.msra.mxu0 0
        %3737 = vmatprep.subr.bf16.mxu0 0
        %3738 = vmatpush1.bf16.msra.mxu0 0
        %3739 = vmatprep.subr.bf16.mxu0 0
        %3740 = vmatpush1.bf16.msra.mxu0 %v3720
        %3741 = vmatprep.subr.bf16.mxu0 0
        %3742 = vmatpush2.bf16.msra.mxu0 0
        %3743 = vmatprep.subr.bf16.mxu0 0
        %3744 = vmatpush2.bf16.msra.mxu0 0
        %3745 = vmatprep.subr.bf16.mxu0 0
        %3746 = vmatpush2.bf16.msra.mxu0 0
        %3747 = vmatprep.subr.bf16.mxu0 0
        %3748 = vmatpush2.bf16.msra.mxu0 0
        %3749 = vmatprep.subr.bf16.mxu0 0
        %3750 = vmatpush2.bf16.msra.mxu0 0
        %3751 = vmatprep.subr.bf16.mxu0 0
        %3752 = vmatpush2.bf16.msra.mxu0 0
        %3753 = vmatprep.subr.bf16.mxu0 0
        %3754 = vmatpush2.bf16.msra.mxu0 0
        %3755 = vmatprep.subr.bf16.mxu0 0
        %3756 = vmatpush2.bf16.msra.mxu0 0
        %3757 = vmatprep.mubr.bf16.mxu0 0
        %3758 = vmatmul.mubr.bf16.gmra.mxu0 %v3723
        %v3759 = vpop.f32.mrf.mxu0
        %v3760 = vadd.f32 0.0, %v3759
        %v3761 = vpop.f32.mrf.mxu0
        %v3762 = vpop.f32.mrf.mxu0
        %v3763 = vadd.f32 0.0, %v3762
        %v3764 = vpop.f32.mrf.mxu0
        %3765 = vdwg.mxu0
        %3767 = vrot.lane.b32.xlu0 %v863, 96
        %v3768 = vpop.permute.xlu0 %3767
        %v3771 = vsel %vm3013, %v3374, 0
        %3773 = vmatprep.subr.bf16.mxu0 0
        %3774 = vmatpush1.bf16.msra.mxu0 0
        %3775 = vmatprep.subr.bf16.mxu0 0
        %3776 = vmatpush1.bf16.msra.mxu0 0
        %3777 = vmatprep.subr.bf16.mxu0 0
        %3778 = vmatpush1.bf16.msra.mxu0 0
        %3779 = vmatprep.subr.bf16.mxu0 0
        %3780 = vmatpush1.bf16.msra.mxu0 0
        %3781 = vmatprep.subr.bf16.mxu0 0
        %3782 = vmatpush1.bf16.msra.mxu0 0
        %3783 = vmatprep.subr.bf16.mxu0 0
        %3784 = vmatpush1.bf16.msra.mxu0 0
        %3785 = vmatprep.subr.bf16.mxu0 0
        %3786 = vmatpush1.bf16.msra.mxu0 0
        %3787 = vmatprep.subr.bf16.mxu0 0
        %3788 = vmatpush1.bf16.msra.mxu0 %v3768
        %3789 = vmatprep.subr.bf16.mxu0 0
        %3790 = vmatpush2.bf16.msra.mxu0 0
        %3791 = vmatprep.subr.bf16.mxu0 0
        %3792 = vmatpush2.bf16.msra.mxu0 0
        %3793 = vmatprep.subr.bf16.mxu0 0
        %3794 = vmatpush2.bf16.msra.mxu0 0
        %3795 = vmatprep.subr.bf16.mxu0 0
        %3796 = vmatpush2.bf16.msra.mxu0 0
        %3797 = vmatprep.subr.bf16.mxu0 0
        %3798 = vmatpush2.bf16.msra.mxu0 0
        %3799 = vmatprep.subr.bf16.mxu0 0
        %3800 = vmatpush2.bf16.msra.mxu0 0
        %3801 = vmatprep.subr.bf16.mxu0 0
        %3802 = vmatpush2.bf16.msra.mxu0 0
        %3803 = vmatprep.subr.bf16.mxu0 0
        %3804 = vmatpush2.bf16.msra.mxu0 0
        %3805 = vmatprep.mubr.bf16.mxu0 0
        %3806 = vmatmul.mubr.bf16.gmra.mxu0 %v3771
        %v3807 = vpop.f32.mrf.mxu0
        %v3808 = vadd.f32 0.0, %v3807
        %v3809 = vpop.f32.mrf.mxu0
        %v3810 = vpop.f32.mrf.mxu0
        %v3811 = vadd.f32 0.0, %v3810
        %v3812 = vpop.f32.mrf.mxu0
        %3813 = vdwg.mxu0
        %3815 = vrot.lane.b32.xlu0 %v864, 96
        %v3816 = vpop.permute.xlu0 %3815
        %v3819 = vsel %vm3013, %v3375, 0
        %3821 = vmatprep.subr.bf16.mxu0 0
        %3822 = vmatpush1.bf16.msra.mxu0 0
        %3823 = vmatprep.subr.bf16.mxu0 0
        %3824 = vmatpush1.bf16.msra.mxu0 0
        %3825 = vmatprep.subr.bf16.mxu0 0
        %3826 = vmatpush1.bf16.msra.mxu0 0
        %3827 = vmatprep.subr.bf16.mxu0 0
        %3828 = vmatpush1.bf16.msra.mxu0 0
        %3829 = vmatprep.subr.bf16.mxu0 0
        %3830 = vmatpush1.bf16.msra.mxu0 0
        %3831 = vmatprep.subr.bf16.mxu0 0
        %3832 = vmatpush1.bf16.msra.mxu0 0
        %3833 = vmatprep.subr.bf16.mxu0 0
        %3834 = vmatpush1.bf16.msra.mxu0 0
        %3835 = vmatprep.subr.bf16.mxu0 0
        %3836 = vmatpush1.bf16.msra.mxu0 %v3816
        %3837 = vmatprep.subr.bf16.mxu0 0
        %3838 = vmatpush2.bf16.msra.mxu0 0
        %3839 = vmatprep.subr.bf16.mxu0 0
        %3840 = vmatpush2.bf16.msra.mxu0 0
        %3841 = vmatprep.subr.bf16.mxu0 0
        %3842 = vmatpush2.bf16.msra.mxu0 0
        %3843 = vmatprep.subr.bf16.mxu0 0
        %3844 = vmatpush2.bf16.msra.mxu0 0
        %3845 = vmatprep.subr.bf16.mxu0 0
        %3846 = vmatpush2.bf16.msra.mxu0 0
        %3847 = vmatprep.subr.bf16.mxu0 0
        %3848 = vmatpush2.bf16.msra.mxu0 0
        %3849 = vmatprep.subr.bf16.mxu0 0
        %3850 = vmatpush2.bf16.msra.mxu0 0
        %3851 = vmatprep.subr.bf16.mxu0 0
        %3852 = vmatpush2.bf16.msra.mxu0 0
        %3853 = vmatprep.mubr.bf16.mxu0 0
        %3854 = vmatmul.mubr.bf16.gmra.mxu0 %v3819
        %v3855 = vpop.f32.mrf.mxu0
        %v3856 = vadd.f32 0.0, %v3855
        %v3857 = vpop.f32.mrf.mxu0
        %v3858 = vpop.f32.mrf.mxu0
        %v3859 = vadd.f32 0.0, %v3858
        %v3860 = vpop.f32.mrf.mxu0
        %3861 = vdwg.mxu0
        %3863 = vrot.lane.b32.xlu0 %v865, 96
        %v3864 = vpop.permute.xlu0 %3863
        %v3867 = vsel %vm3013, %v3376, 0
        %3869 = vmatprep.subr.bf16.mxu0 0
        %3870 = vmatpush1.bf16.msra.mxu0 0
        %3871 = vmatprep.subr.bf16.mxu0 0
        %3872 = vmatpush1.bf16.msra.mxu0 0
        %3873 = vmatprep.subr.bf16.mxu0 0
        %3874 = vmatpush1.bf16.msra.mxu0 0
        %3875 = vmatprep.subr.bf16.mxu0 0
        %3876 = vmatpush1.bf16.msra.mxu0 0
        %3877 = vmatprep.subr.bf16.mxu0 0
        %3878 = vmatpush1.bf16.msra.mxu0 0
        %3879 = vmatprep.subr.bf16.mxu0 0
        %3880 = vmatpush1.bf16.msra.mxu0 0
        %3881 = vmatprep.subr.bf16.mxu0 0
        %3882 = vmatpush1.bf16.msra.mxu0 0
        %3883 = vmatprep.subr.bf16.mxu0 0
        %3884 = vmatpush1.bf16.msra.mxu0 %v3864
        %3885 = vmatprep.subr.bf16.mxu0 0
        %3886 = vmatpush2.bf16.msra.mxu0 0
        %3887 = vmatprep.subr.bf16.mxu0 0
        %3888 = vmatpush2.bf16.msra.mxu0 0
        %3889 = vmatprep.subr.bf16.mxu0 0
        %3890 = vmatpush2.bf16.msra.mxu0 0
        %3891 = vmatprep.subr.bf16.mxu0 0
        %3892 = vmatpush2.bf16.msra.mxu0 0
        %3893 = vmatprep.subr.bf16.mxu0 0
        %3894 = vmatpush2.bf16.msra.mxu0 0
        %3895 = vmatprep.subr.bf16.mxu0 0
        %3896 = vmatpush2.bf16.msra.mxu0 0
        %3897 = vmatprep.subr.bf16.mxu0 0
        %3898 = vmatpush2.bf16.msra.mxu0 0
        %3899 = vmatprep.subr.bf16.mxu0 0
        %3900 = vmatpush2.bf16.msra.mxu0 0
        %3901 = vmatprep.mubr.bf16.mxu0 0
        %3902 = vmatmul.mubr.bf16.gmra.mxu0 %v3867
        %v3903 = vpop.f32.mrf.mxu0
        %v3904 = vadd.f32 0.0, %v3903
        %v3905 = vpop.f32.mrf.mxu0
        %v3906 = vpop.f32.mrf.mxu0
        %v3907 = vadd.f32 0.0, %v3906
        %v3908 = vpop.f32.mrf.mxu0
        %3909 = vdwg.mxu0
        %3911 = vrot.lane.b32.xlu0 %v866, 96
        %v3912 = vpop.permute.xlu0 %3911
        %v3915 = vsel %vm3013, %v3377, 0
        %3917 = vmatprep.subr.bf16.mxu0 0
        %3918 = vmatpush1.bf16.msra.mxu0 0
        %3919 = vmatprep.subr.bf16.mxu0 0
        %3920 = vmatpush1.bf16.msra.mxu0 0
        %3921 = vmatprep.subr.bf16.mxu0 0
        %3922 = vmatpush1.bf16.msra.mxu0 0
        %3923 = vmatprep.subr.bf16.mxu0 0
        %3924 = vmatpush1.bf16.msra.mxu0 0
        %3925 = vmatprep.subr.bf16.mxu0 0
        %3926 = vmatpush1.bf16.msra.mxu0 0
        %3927 = vmatprep.subr.bf16.mxu0 0
        %3928 = vmatpush1.bf16.msra.mxu0 0
        %3929 = vmatprep.subr.bf16.mxu0 0
        %3930 = vmatpush1.bf16.msra.mxu0 0
        %3931 = vmatprep.subr.bf16.mxu0 0
        %3932 = vmatpush1.bf16.msra.mxu0 %v3912
        %3933 = vmatprep.subr.bf16.mxu0 0
        %3934 = vmatpush2.bf16.msra.mxu0 0
        %3935 = vmatprep.subr.bf16.mxu0 0
        %3936 = vmatpush2.bf16.msra.mxu0 0
        %3937 = vmatprep.subr.bf16.mxu0 0
        %3938 = vmatpush2.bf16.msra.mxu0 0
        %3939 = vmatprep.subr.bf16.mxu0 0
        %3940 = vmatpush2.bf16.msra.mxu0 0
        %3941 = vmatprep.subr.bf16.mxu0 0
        %3942 = vmatpush2.bf16.msra.mxu0 0
        %3943 = vmatprep.subr.bf16.mxu0 0
        %3944 = vmatpush2.bf16.msra.mxu0 0
        %3945 = vmatprep.subr.bf16.mxu0 0
        %3946 = vmatpush2.bf16.msra.mxu0 0
        %3947 = vmatprep.subr.bf16.mxu0 0
        %3948 = vmatpush2.bf16.msra.mxu0 0
        %3949 = vmatprep.mubr.bf16.mxu0 0
        %3950 = vmatmul.mubr.bf16.gmra.mxu0 %v3915
        %v3951 = vpop.f32.mrf.mxu0
        %v3952 = vadd.f32 0.0, %v3951
        %v3953 = vpop.f32.mrf.mxu0
        %v3954 = vpop.f32.mrf.mxu0
        %v3955 = vadd.f32 0.0, %v3954
        %v3956 = vpop.f32.mrf.mxu0
        %3957 = vdwg.mxu0
        %3959 = vrot.lane.b32.xlu0 %v867, 96
        %v3960 = vpop.permute.xlu0 %3959
        %v3963 = vsel %vm3013, %v3378, 0
        %3965 = vmatprep.subr.bf16.mxu0 0
        %3966 = vmatpush1.bf16.msra.mxu0 0
        %3967 = vmatprep.subr.bf16.mxu0 0
        %3968 = vmatpush1.bf16.msra.mxu0 0
        %3969 = vmatprep.subr.bf16.mxu0 0
        %3970 = vmatpush1.bf16.msra.mxu0 0
        %3971 = vmatprep.subr.bf16.mxu0 0
        %3972 = vmatpush1.bf16.msra.mxu0 0
        %3973 = vmatprep.subr.bf16.mxu0 0
        %3974 = vmatpush1.bf16.msra.mxu0 0
        %3975 = vmatprep.subr.bf16.mxu0 0
        %3976 = vmatpush1.bf16.msra.mxu0 0
        %3977 = vmatprep.subr.bf16.mxu0 0
        %3978 = vmatpush1.bf16.msra.mxu0 0
        %3979 = vmatprep.subr.bf16.mxu0 0
        %3980 = vmatpush1.bf16.msra.mxu0 %v3960
        %3981 = vmatprep.subr.bf16.mxu0 0
        %3982 = vmatpush2.bf16.msra.mxu0 0
        %3983 = vmatprep.subr.bf16.mxu0 0
        %3984 = vmatpush2.bf16.msra.mxu0 0
        %3985 = vmatprep.subr.bf16.mxu0 0
        %3986 = vmatpush2.bf16.msra.mxu0 0
        %3987 = vmatprep.subr.bf16.mxu0 0
        %3988 = vmatpush2.bf16.msra.mxu0 0
        %3989 = vmatprep.subr.bf16.mxu0 0
        %3990 = vmatpush2.bf16.msra.mxu0 0
        %3991 = vmatprep.subr.bf16.mxu0 0
        %3992 = vmatpush2.bf16.msra.mxu0 0
        %3993 = vmatprep.subr.bf16.mxu0 0
        %3994 = vmatpush2.bf16.msra.mxu0 0
        %3995 = vmatprep.subr.bf16.mxu0 0
        %3996 = vmatpush2.bf16.msra.mxu0 0
        %3997 = vmatprep.mubr.bf16.mxu0 0
        %3998 = vmatmul.mubr.bf16.gmra.mxu0 %v3963
        %v3999 = vpop.f32.mrf.mxu0
        %v4000 = vadd.f32 0.0, %v3999
        %v4001 = vpop.f32.mrf.mxu0
        %v4002 = vpop.f32.mrf.mxu0
        %v4003 = vadd.f32 0.0, %v4002
        %v4004 = vpop.f32.mrf.mxu0
        %4005 = vdwg.mxu0
        %4007 = vrot.lane.b32.xlu0 %v868, 96
        %v4008 = vpop.permute.xlu0 %4007
        %v4011 = vsel %vm3013, %v3379, 0
        %4013 = vmatprep.subr.bf16.mxu0 0
        %4014 = vmatpush1.bf16.msra.mxu0 0
        %4015 = vmatprep.subr.bf16.mxu0 0
        %4016 = vmatpush1.bf16.msra.mxu0 0
        %4017 = vmatprep.subr.bf16.mxu0 0
        %4018 = vmatpush1.bf16.msra.mxu0 0
        %4019 = vmatprep.subr.bf16.mxu0 0
        %4020 = vmatpush1.bf16.msra.mxu0 0
        %4021 = vmatprep.subr.bf16.mxu0 0
        %4022 = vmatpush1.bf16.msra.mxu0 0
        %4023 = vmatprep.subr.bf16.mxu0 0
        %4024 = vmatpush1.bf16.msra.mxu0 0
        %4025 = vmatprep.subr.bf16.mxu0 0
        %4026 = vmatpush1.bf16.msra.mxu0 0
        %4027 = vmatprep.subr.bf16.mxu0 0
        %4028 = vmatpush1.bf16.msra.mxu0 %v4008
        %4029 = vmatprep.subr.bf16.mxu0 0
        %4030 = vmatpush2.bf16.msra.mxu0 0
        %4031 = vmatprep.subr.bf16.mxu0 0
        %4032 = vmatpush2.bf16.msra.mxu0 0
        %4033 = vmatprep.subr.bf16.mxu0 0
        %4034 = vmatpush2.bf16.msra.mxu0 0
        %4035 = vmatprep.subr.bf16.mxu0 0
        %4036 = vmatpush2.bf16.msra.mxu0 0
        %4037 = vmatprep.subr.bf16.mxu0 0
        %4038 = vmatpush2.bf16.msra.mxu0 0
        %4039 = vmatprep.subr.bf16.mxu0 0
        %4040 = vmatpush2.bf16.msra.mxu0 0
        %4041 = vmatprep.subr.bf16.mxu0 0
        %4042 = vmatpush2.bf16.msra.mxu0 0
        %4043 = vmatprep.subr.bf16.mxu0 0
        %4044 = vmatpush2.bf16.msra.mxu0 0
        %4045 = vmatprep.mubr.bf16.mxu0 0
        %4046 = vmatmul.mubr.bf16.gmra.mxu0 %v4011
        %v4047 = vpop.f32.mrf.mxu0
        %v4048 = vadd.f32 0.0, %v4047
        %v4049 = vpop.f32.mrf.mxu0
        %v4050 = vpop.f32.mrf.mxu0
        %v4051 = vadd.f32 0.0, %v4050
        %v4052 = vpop.f32.mrf.mxu0
        %4053 = vdwg.mxu0
        %4055 = vrot.lane.b32.xlu0 %v869, 96
        %v4056 = vpop.permute.xlu0 %4055
        %v4059 = vsel %vm3013, %v3380, 0
        %4061 = vmatprep.subr.bf16.mxu0 0
        %4062 = vmatpush1.bf16.msra.mxu0 0
        %4063 = vmatprep.subr.bf16.mxu0 0
        %4064 = vmatpush1.bf16.msra.mxu0 0
        %4065 = vmatprep.subr.bf16.mxu0 0
        %4066 = vmatpush1.bf16.msra.mxu0 0
        %4067 = vmatprep.subr.bf16.mxu0 0
        %4068 = vmatpush1.bf16.msra.mxu0 0
        %4069 = vmatprep.subr.bf16.mxu0 0
        %4070 = vmatpush1.bf16.msra.mxu0 0
        %4071 = vmatprep.subr.bf16.mxu0 0
        %4072 = vmatpush1.bf16.msra.mxu0 0
        %4073 = vmatprep.subr.bf16.mxu0 0
        %4074 = vmatpush1.bf16.msra.mxu0 0
        %4075 = vmatprep.subr.bf16.mxu0 0
        %4076 = vmatpush1.bf16.msra.mxu0 %v4056
        %4077 = vmatprep.subr.bf16.mxu0 0
        %4078 = vmatpush2.bf16.msra.mxu0 0
        %4079 = vmatprep.subr.bf16.mxu0 0
        %4080 = vmatpush2.bf16.msra.mxu0 0
        %4081 = vmatprep.subr.bf16.mxu0 0
        %4082 = vmatpush2.bf16.msra.mxu0 0
        %4083 = vmatprep.subr.bf16.mxu0 0
        %4084 = vmatpush2.bf16.msra.mxu0 0
        %4085 = vmatprep.subr.bf16.mxu0 0
        %4086 = vmatpush2.bf16.msra.mxu0 0
        %4087 = vmatprep.subr.bf16.mxu0 0
        %4088 = vmatpush2.bf16.msra.mxu0 0
        %4089 = vmatprep.subr.bf16.mxu0 0
        %4090 = vmatpush2.bf16.msra.mxu0 0
        %4091 = vmatprep.subr.bf16.mxu0 0
        %4092 = vmatpush2.bf16.msra.mxu0 0
        %4093 = vmatprep.mubr.bf16.mxu0 0
        %4094 = vmatmul.mubr.bf16.gmra.mxu0 %v4059
        %v4095 = vpop.f32.mrf.mxu0
        %v4096 = vadd.f32 0.0, %v4095
        %v4097 = vpop.f32.mrf.mxu0
        %v4098 = vpop.f32.mrf.mxu0
        %v4099 = vadd.f32 0.0, %v4098
        %v4100 = vpop.f32.mrf.mxu0
        %4101 = vdwg.mxu0
        %4103 = vrot.lane.b32.xlu0 %v870, 96
        %v4104 = vpop.permute.xlu0 %4103
        %v4107 = vsel %vm3013, %v3381, 0
        %4109 = vmatprep.subr.bf16.mxu0 0
        %4110 = vmatpush1.bf16.msra.mxu0 0
        %4111 = vmatprep.subr.bf16.mxu0 0
        %4112 = vmatpush1.bf16.msra.mxu0 0
        %4113 = vmatprep.subr.bf16.mxu0 0
        %4114 = vmatpush1.bf16.msra.mxu0 0
        %4115 = vmatprep.subr.bf16.mxu0 0
        %4116 = vmatpush1.bf16.msra.mxu0 0
        %4117 = vmatprep.subr.bf16.mxu0 0
        %4118 = vmatpush1.bf16.msra.mxu0 0
        %4119 = vmatprep.subr.bf16.mxu0 0
        %4120 = vmatpush1.bf16.msra.mxu0 0
        %4121 = vmatprep.subr.bf16.mxu0 0
        %4122 = vmatpush1.bf16.msra.mxu0 0
        %4123 = vmatprep.subr.bf16.mxu0 0
        %4124 = vmatpush1.bf16.msra.mxu0 %v4104
        %4125 = vmatprep.subr.bf16.mxu0 0
        %4126 = vmatpush2.bf16.msra.mxu0 0
        %4127 = vmatprep.subr.bf16.mxu0 0
        %4128 = vmatpush2.bf16.msra.mxu0 0
        %4129 = vmatprep.subr.bf16.mxu0 0
        %4130 = vmatpush2.bf16.msra.mxu0 0
        %4131 = vmatprep.subr.bf16.mxu0 0
        %4132 = vmatpush2.bf16.msra.mxu0 0
        %4133 = vmatprep.subr.bf16.mxu0 0
        %4134 = vmatpush2.bf16.msra.mxu0 0
        %4135 = vmatprep.subr.bf16.mxu0 0
        %4136 = vmatpush2.bf16.msra.mxu0 0
        %4137 = vmatprep.subr.bf16.mxu0 0
        %4138 = vmatpush2.bf16.msra.mxu0 0
        %4139 = vmatprep.subr.bf16.mxu0 0
        %4140 = vmatpush2.bf16.msra.mxu0 0
        %4141 = vmatprep.mubr.bf16.mxu0 0
        %4142 = vmatmul.mubr.bf16.gmra.mxu0 %v4107
        %v4143 = vpop.f32.mrf.mxu0
        %v4144 = vadd.f32 0.0, %v4143
        %v4145 = vpop.f32.mrf.mxu0
        %v4146 = vpop.f32.mrf.mxu0
        %v4147 = vadd.f32 0.0, %v4146
        %v4148 = vpop.f32.mrf.mxu0
        %4149 = vdwg.mxu0
        %v4150 = vpack.c.bf16 %v3427, %v3424
        %v4151 = vpack.c.bf16 %v3475, %v3472
        %v4152 = vpack.c.bf16 %v3523, %v3520
        %v4153 = vpack.c.bf16 %v3571, %v3568
        %v4154 = vld [vmem:[%s10] sm:$0xf]
        %v4155 = vpack.c.bf16 %v3619, %v3616
        %v4156 = vpack.c.bf16 %v3667, %v3664
        %v4157 = vpack.c.bf16 %v3715, %v3712
        %v4158 = vpack.c.bf16 %v3763, %v3760
        %s4159 = scalar_lea.vmem %s10, 4
        %v4160 = vld [vmem:[%s4159] sm:$0xf]
        %v4162 = vsel %vm955, %v4155, 0
        %v4165 = vsel %vm955, %v4156, 0
        %v4168 = vsel %vm955, %v4157, 0
        %v4171 = vsel %vm955, %v4158, 0
        %vm4173 = vcmask 1043456
        %v4175 = vsel %vm4173, %v4160, 0
        %4177 = vmatprep.subr.bf16.mxu0 0
        %4178 = vmatpush1.bf16.msra.mxu0 0
        %4179 = vmatprep.subr.bf16.mxu0 0
        %4180 = vmatpush1.bf16.msra.mxu0 0
        %4181 = vmatprep.subr.bf16.mxu0 0
        %4182 = vmatpush1.bf16.msra.mxu0 0
        %4183 = vmatprep.subr.bf16.mxu0 0
        %4184 = vmatpush1.bf16.msra.mxu0 0
        %4185 = vmatprep.subr.bf16.mxu0 0
        %4186 = vmatpush1.bf16.msra.mxu0 0
        %4187 = vmatprep.subr.bf16.mxu0 0
        %4188 = vmatpush1.bf16.msra.mxu0 0
        %4189 = vmatprep.subr.bf16.mxu0 0
        %4190 = vmatpush1.bf16.msra.mxu0 0
        %4191 = vmatprep.subr.bf16.mxu0 0
        %4192 = vmatpush1.bf16.msra.mxu0 %v4175
        %4193 = vmatprep.subr.bf16.mxu0 0
        %4194 = vmatpush2.bf16.msra.mxu0 0
        %4195 = vmatprep.subr.bf16.mxu0 0
        %4196 = vmatpush2.bf16.msra.mxu0 0
        %4197 = vmatprep.subr.bf16.mxu0 0
        %4198 = vmatpush2.bf16.msra.mxu0 0
        %4199 = vmatprep.subr.bf16.mxu0 0
        %4200 = vmatpush2.bf16.msra.mxu0 0
        %4201 = vmatprep.subr.bf16.mxu0 0
        %4202 = vmatpush2.bf16.msra.mxu0 0
        %4203 = vmatprep.subr.bf16.mxu0 0
        %4204 = vmatpush2.bf16.msra.mxu0 0
        %4205 = vmatprep.subr.bf16.mxu0 0
        %4206 = vmatpush2.bf16.msra.mxu0 0
        %4207 = vmatprep.subr.bf16.mxu0 0
        %4208 = vmatpush2.bf16.msra.mxu0 0
        %4209 = vmatprep.mubr.bf16.mxu0 0
        %4210 = vmatmul.mubr.bf16.gmra.mxu0 %v4162
        %v4211 = vpop.f32.mrf.mxu0
        %v4212 = vadd.f32 0.0, %v4211
        %v4213 = vpop.f32.mrf.mxu0
        %v4214 = vpop.f32.mrf.mxu0
        %v4215 = vadd.f32 0.0, %v4214
        %v4216 = vpop.f32.mrf.mxu0
        %4217 = vmatprep.mubr.bf16.mxu0 0
        %4218 = vmatmul.mubr.bf16.gmra.mxu0 %v4165
        %v4219 = vpop.f32.mrf.mxu0
        %v4220 = vadd.f32 0.0, %v4219
        %v4221 = vpop.f32.mrf.mxu0
        %v4222 = vpop.f32.mrf.mxu0
        %v4223 = vadd.f32 0.0, %v4222
        %v4224 = vpop.f32.mrf.mxu0
        %4225 = vmatprep.mubr.bf16.mxu0 0
        %4226 = vmatmul.mubr.bf16.gmra.mxu0 %v4168
        %v4227 = vpop.f32.mrf.mxu0
        %v4228 = vadd.f32 0.0, %v4227
        %v4229 = vpop.f32.mrf.mxu0
        %v4230 = vpop.f32.mrf.mxu0
        %v4231 = vadd.f32 0.0, %v4230
        %v4232 = vpop.f32.mrf.mxu0
        %4233 = vmatprep.mubr.bf16.mxu0 0
        %4234 = vmatmul.mubr.bf16.gmra.mxu0 %v4171
        %v4235 = vpop.f32.mrf.mxu0
        %v4236 = vadd.f32 0.0, %v4235
        %v4237 = vpop.f32.mrf.mxu0
        %v4238 = vpop.f32.mrf.mxu0
        %v4239 = vadd.f32 0.0, %v4238
        %v4240 = vpop.f32.mrf.mxu0
        %4241 = vdwg.mxu0
        %v4243 = vsel %vm955, %v4150, 0
        %v4246 = vsel %vm955, %v4151, 0
        %v4249 = vsel %vm955, %v4152, 0
        %v4252 = vsel %vm955, %v4153, 0
        %v4255 = vsel %vm4173, %v4154, 0
        %4257 = vmatprep.subr.bf16.mxu0 0
        %4258 = vmatpush1.bf16.msra.mxu0 0
        %4259 = vmatprep.subr.bf16.mxu0 0
        %4260 = vmatpush1.bf16.msra.mxu0 0
        %4261 = vmatprep.subr.bf16.mxu0 0
        %4262 = vmatpush1.bf16.msra.mxu0 0
        %4263 = vmatprep.subr.bf16.mxu0 0
        %4264 = vmatpush1.bf16.msra.mxu0 0
        %4265 = vmatprep.subr.bf16.mxu0 0
        %4266 = vmatpush1.bf16.msra.mxu0 0
        %4267 = vmatprep.subr.bf16.mxu0 0
        %4268 = vmatpush1.bf16.msra.mxu0 0
        %4269 = vmatprep.subr.bf16.mxu0 0
        %4270 = vmatpush1.bf16.msra.mxu0 0
        %4271 = vmatprep.subr.bf16.mxu0 0
        %4272 = vmatpush1.bf16.msra.mxu0 %v4255
        %4273 = vmatprep.subr.bf16.mxu0 0
        %4274 = vmatpush2.bf16.msra.mxu0 0
        %4275 = vmatprep.subr.bf16.mxu0 0
        %4276 = vmatpush2.bf16.msra.mxu0 0
        %4277 = vmatprep.subr.bf16.mxu0 0
        %4278 = vmatpush2.bf16.msra.mxu0 0
        %4279 = vmatprep.subr.bf16.mxu0 0
        %4280 = vmatpush2.bf16.msra.mxu0 0
        %4281 = vmatprep.subr.bf16.mxu0 0
        %4282 = vmatpush2.bf16.msra.mxu0 0
        %4283 = vmatprep.subr.bf16.mxu0 0
        %4284 = vmatpush2.bf16.msra.mxu0 0
        %4285 = vmatprep.subr.bf16.mxu0 0
        %4286 = vmatpush2.bf16.msra.mxu0 0
        %4287 = vmatprep.subr.bf16.mxu0 0
        %4288 = vmatpush2.bf16.msra.mxu0 0
        %4289 = vmatprep.mubr.bf16.mxu0 0
        %4290 = vmatmul.mubr.bf16.gmra.mxu0 %v4243
        %v4291 = vpop.f32.mrf.mxu0
        %v4292 = vadd.f32 %v4212, %v4291
        %v4293 = vpop.f32.mrf.mxu0
        %v4294 = vpop.f32.mrf.mxu0
        %v4295 = vadd.f32 %v4215, %v4294
        %v4296 = vpop.f32.mrf.mxu0
        %4297 = vmatprep.mubr.bf16.mxu0 0
        %4298 = vmatmul.mubr.bf16.gmra.mxu0 %v4246
        %v4299 = vpop.f32.mrf.mxu0
        %v4300 = vadd.f32 %v4220, %v4299
        %v4301 = vpop.f32.mrf.mxu0
        %v4302 = vpop.f32.mrf.mxu0
        %v4303 = vadd.f32 %v4223, %v4302
        %v4304 = vpop.f32.mrf.mxu0
        %4305 = vmatprep.mubr.bf16.mxu0 0
        %4306 = vmatmul.mubr.bf16.gmra.mxu0 %v4249
        %v4307 = vpop.f32.mrf.mxu0
        %v4308 = vadd.f32 %v4228, %v4307
        %v4309 = vpop.f32.mrf.mxu0
        %v4310 = vpop.f32.mrf.mxu0
        %v4311 = vadd.f32 %v4231, %v4310
        %v4312 = vpop.f32.mrf.mxu0
        %4313 = vmatprep.mubr.bf16.mxu0 0
        %4314 = vmatmul.mubr.bf16.gmra.mxu0 %v4252
        %v4315 = vpop.f32.mrf.mxu0
        %v4316 = vadd.f32 %v4236, %v4315
        %v4317 = vpop.f32.mrf.mxu0
        %v4318 = vpop.f32.mrf.mxu0
        %v4319 = vadd.f32 %v4239, %v4318
        %v4320 = vpop.f32.mrf.mxu0
        %4321 = vdwg.mxu0
        %v4322 = vpack.c.bf16 %v3811, %v3808
        %v4323 = vpack.c.bf16 %v3859, %v3856
        %v4324 = vpack.c.bf16 %v3907, %v3904
        %v4325 = vpack.c.bf16 %v3955, %v3952
        %s4326 = scalar_lea.vmem %s10, 8
        %v4327 = vld [vmem:[%s4326] sm:$0xf]
        %v4329 = vsel %vm955, %v4322, 0
        %v4332 = vsel %vm955, %v4323, 0
        %v4335 = vsel %vm955, %v4324, 0
        %v4338 = vsel %vm955, %v4325, 0
        %v4341 = vsel %vm4173, %v4327, 0
        %4343 = vmatprep.subr.bf16.mxu0 0
        %4344 = vmatpush1.bf16.msra.mxu0 0
        %4345 = vmatprep.subr.bf16.mxu0 0
        %4346 = vmatpush1.bf16.msra.mxu0 0
        %4347 = vmatprep.subr.bf16.mxu0 0
        %4348 = vmatpush1.bf16.msra.mxu0 0
        %4349 = vmatprep.subr.bf16.mxu0 0
        %4350 = vmatpush1.bf16.msra.mxu0 0
        %4351 = vmatprep.subr.bf16.mxu0 0
        %4352 = vmatpush1.bf16.msra.mxu0 0
        %4353 = vmatprep.subr.bf16.mxu0 0
        %4354 = vmatpush1.bf16.msra.mxu0 0
        %4355 = vmatprep.subr.bf16.mxu0 0
        %4356 = vmatpush1.bf16.msra.mxu0 0
        %4357 = vmatprep.subr.bf16.mxu0 0
        %4358 = vmatpush1.bf16.msra.mxu0 %v4341
        %4359 = vmatprep.subr.bf16.mxu0 0
        %4360 = vmatpush2.bf16.msra.mxu0 0
        %4361 = vmatprep.subr.bf16.mxu0 0
        %4362 = vmatpush2.bf16.msra.mxu0 0
        %4363 = vmatprep.subr.bf16.mxu0 0
        %4364 = vmatpush2.bf16.msra.mxu0 0
        %4365 = vmatprep.subr.bf16.mxu0 0
        %4366 = vmatpush2.bf16.msra.mxu0 0
        %4367 = vmatprep.subr.bf16.mxu0 0
        %4368 = vmatpush2.bf16.msra.mxu0 0
        %4369 = vmatprep.subr.bf16.mxu0 0
        %4370 = vmatpush2.bf16.msra.mxu0 0
        %4371 = vmatprep.subr.bf16.mxu0 0
        %4372 = vmatpush2.bf16.msra.mxu0 0
        %4373 = vmatprep.subr.bf16.mxu0 0
        %4374 = vmatpush2.bf16.msra.mxu0 0
        %4375 = vmatprep.mubr.bf16.mxu0 0
        %4376 = vmatmul.mubr.bf16.gmra.mxu0 %v4329
        %v4377 = vpop.f32.mrf.mxu0
        %v4378 = vadd.f32 0.0, %v4377
        %v4379 = vpop.f32.mrf.mxu0
        %v4380 = vpop.f32.mrf.mxu0
        %v4381 = vadd.f32 0.0, %v4380
        %v4382 = vpop.f32.mrf.mxu0
        %4383 = vmatprep.mubr.bf16.mxu0 0
        %4384 = vmatmul.mubr.bf16.gmra.mxu0 %v4332
        %v4385 = vpop.f32.mrf.mxu0
        %v4386 = vadd.f32 0.0, %v4385
        %v4387 = vpop.f32.mrf.mxu0
        %v4388 = vpop.f32.mrf.mxu0
        %v4389 = vadd.f32 0.0, %v4388
        %v4390 = vpop.f32.mrf.mxu0
        %4391 = vmatprep.mubr.bf16.mxu0 0
        %4392 = vmatmul.mubr.bf16.gmra.mxu0 %v4335
        %v4393 = vpop.f32.mrf.mxu0
        %v4394 = vadd.f32 0.0, %v4393
        %v4395 = vpop.f32.mrf.mxu0
        %v4396 = vpop.f32.mrf.mxu0
        %v4397 = vadd.f32 0.0, %v4396
        %v4398 = vpop.f32.mrf.mxu0
        %4399 = vmatprep.mubr.bf16.mxu0 0
        %4400 = vmatmul.mubr.bf16.gmra.mxu0 %v4338
        %v4401 = vpop.f32.mrf.mxu0
        %v4402 = vadd.f32 0.0, %v4401
        %v4403 = vpop.f32.mrf.mxu0
        %v4404 = vpop.f32.mrf.mxu0
        %v4405 = vadd.f32 0.0, %v4404
        %v4406 = vpop.f32.mrf.mxu0
        %4407 = vdwg.mxu0
        %v4408 = vadd.f32 %v4292, %v4378
        %v4409 = vadd.f32 %v4295, %v4381
        %v4410 = vadd.f32 %v4300, %v4386
        %v4411 = vadd.f32 %v4303, %v4389
        %v4412 = vadd.f32 %v4308, %v4394
        %v4413 = vadd.f32 %v4311, %v4397
        %v4414 = vadd.f32 %v4316, %v4402
        %v4415 = vadd.f32 %v4319, %v4405
        %v4416 = vpack.c.bf16 %v4003, %v4000
        %v4417 = vpack.c.bf16 %v4051, %v4048
        %v4418 = vpack.c.bf16 %v4099, %v4096
        %v4419 = vpack.c.bf16 %v4147, %v4144
        %s4420 = scalar_lea.vmem %s10, 12
        %v4421 = vld [vmem:[%s4420] sm:$0xf]
        %v4423 = vsel %vm955, %v4416, 0
        %v4426 = vsel %vm955, %v4417, 0
        %v4429 = vsel %vm955, %v4418, 0
        %v4432 = vsel %vm955, %v4419, 0
        %v4435 = vsel %vm4173, %v4421, 0
        %4437 = vmatprep.subr.bf16.mxu0 0
        %4438 = vmatpush1.bf16.msra.mxu0 0
        %4439 = vmatprep.subr.bf16.mxu0 0
        %4440 = vmatpush1.bf16.msra.mxu0 0
        %4441 = vmatprep.subr.bf16.mxu0 0
        %4442 = vmatpush1.bf16.msra.mxu0 0
        %4443 = vmatprep.subr.bf16.mxu0 0
        %4444 = vmatpush1.bf16.msra.mxu0 0
        %4445 = vmatprep.subr.bf16.mxu0 0
        %4446 = vmatpush1.bf16.msra.mxu0 0
        %4447 = vmatprep.subr.bf16.mxu0 0
        %4448 = vmatpush1.bf16.msra.mxu0 0
        %4449 = vmatprep.subr.bf16.mxu0 0
        %4450 = vmatpush1.bf16.msra.mxu0 0
        %4451 = vmatprep.subr.bf16.mxu0 0
        %4452 = vmatpush1.bf16.msra.mxu0 %v4435
        %4453 = vmatprep.subr.bf16.mxu0 0
        %4454 = vmatpush2.bf16.msra.mxu0 0
        %4455 = vmatprep.subr.bf16.mxu0 0
        %4456 = vmatpush2.bf16.msra.mxu0 0
        %4457 = vmatprep.subr.bf16.mxu0 0
        %4458 = vmatpush2.bf16.msra.mxu0 0
        %4459 = vmatprep.subr.bf16.mxu0 0
        %4460 = vmatpush2.bf16.msra.mxu0 0
        %4461 = vmatprep.subr.bf16.mxu0 0
        %4462 = vmatpush2.bf16.msra.mxu0 0
        %4463 = vmatprep.subr.bf16.mxu0 0
        %4464 = vmatpush2.bf16.msra.mxu0 0
        %4465 = vmatprep.subr.bf16.mxu0 0
        %4466 = vmatpush2.bf16.msra.mxu0 0
        %4467 = vmatprep.subr.bf16.mxu0 0
        %4468 = vmatpush2.bf16.msra.mxu0 0
        %4469 = vmatprep.mubr.bf16.mxu0 0
        %4470 = vmatmul.mubr.bf16.gmra.mxu0 %v4423
        %v4471 = vpop.f32.mrf.mxu0
        %v4472 = vadd.f32 0.0, %v4471
        %v4473 = vpop.f32.mrf.mxu0
        %v4474 = vpop.f32.mrf.mxu0
        %v4475 = vadd.f32 0.0, %v4474
        %v4476 = vpop.f32.mrf.mxu0
        %4477 = vmatprep.mubr.bf16.mxu0 0
        %4478 = vmatmul.mubr.bf16.gmra.mxu0 %v4426
        %v4479 = vpop.f32.mrf.mxu0
        %v4480 = vadd.f32 0.0, %v4479
        %v4481 = vpop.f32.mrf.mxu0
        %v4482 = vpop.f32.mrf.mxu0
        %v4483 = vadd.f32 0.0, %v4482
        %v4484 = vpop.f32.mrf.mxu0
        %4485 = vmatprep.mubr.bf16.mxu0 0
        %4486 = vmatmul.mubr.bf16.gmra.mxu0 %v4429
        %v4487 = vpop.f32.mrf.mxu0
        %v4488 = vadd.f32 0.0, %v4487
        %v4489 = vpop.f32.mrf.mxu0
        %v4490 = vpop.f32.mrf.mxu0
        %v4491 = vadd.f32 0.0, %v4490
        %v4492 = vpop.f32.mrf.mxu0
        %4493 = vmatprep.mubr.bf16.mxu0 0
        %4494 = vmatmul.mubr.bf16.gmra.mxu0 %v4432
        %v4495 = vpop.f32.mrf.mxu0
        %v4496 = vadd.f32 0.0, %v4495
        %v4497 = vpop.f32.mrf.mxu0
        %v4498 = vpop.f32.mrf.mxu0
        %v4499 = vadd.f32 0.0, %v4498
        %v4500 = vpop.f32.mrf.mxu0
        %4501 = vdwg.mxu0
        %v4502 = vadd.f32 %v4408, %v4472
        %v4503 = vadd.f32 %v4409, %v4475
        %v4504 = vadd.f32 %v4410, %v4480
        %v4505 = vadd.f32 %v4411, %v4483
        %v4506 = vadd.f32 %v4412, %v4488
        %v4507 = vadd.f32 %v4413, %v4491
        %v4508 = vadd.f32 %v4414, %v4496
        %v4509 = vadd.f32 %v4415, %v4499
        %v4510 = vld [vmem:[%s11] sm:$0x1]
        %v4512 = vlaneseq
        %v4513 = vshrl.u32 %v4512, 7
        %v4514 = vsub.s32 0, %v4513
        %v4515 = vrot.slane %v4510, %v4514
        %v4517 = vadd.f32 %v4502, %v4515
        %v4518 = vadd.f32 %v4503, %v4515
        %v4519 = vadd.f32 %v4504, %v4515
        %v4520 = vadd.f32 %v4505, %v4515
        %v4521 = vadd.f32 %v4506, %v4515
        %v4522 = vadd.f32 %v4507, %v4515
        %v4523 = vadd.f32 %v4508, %v4515
        %v4524 = vadd.f32 %v4509, %v4515
        %4525 = vst.msk [vmem:[%s423] sm:$0xff] %vm489, %v4517
        %4526 = vst.msk [vmem:[%s423 + $0x8] sm:$0xff] %vm489, %v4518
        %4527 = vst.msk [vmem:[%s423 + $0x10] sm:$0xff] %vm489, %v4519
        %4528 = vst.msk [vmem:[%s423 + $0x18] sm:$0xff] %vm489, %v4520
        %4529 = vst.msk [vmem:[%s423 + $0x20] sm:$0xff] %vm489, %v4521
        %4530 = vst.msk [vmem:[%s423 + $0x28] sm:$0xff] %vm489, %v4522
        %4531 = vst.msk [vmem:[%s423 + $0x30] sm:$0xff] %vm489, %v4523
        %4532 = vst.msk [vmem:[%s423 + $0x38] sm:$0xff] %vm489, %v4524
        %s4533 = sand.u32 %s296, 1
        %s4534 = scalar_lea.sflag [#allocation3], %s4533
        %s4535 = sand.u32 %s296, 1
        %s4536 = smul.addr %s4535, 64
        %s4537 = scalar_lea.vmem [#allocation2], %s4536
        // Predicated region
        $region69: #{window_context_attention.1} parent=67 // pred_check
          %p4538 = pneg %p306
        $region70: #{window_context_attention.1} parent=67 // pred_check_branch
          %4540 = sbr.rel (%p4538) target = $region72
        $region71: #{window_context_attention.1} parent=67 // pred_region
          %s4541 = smul.u32 8, %s26
          %s4543 = ssub.s32 1024, 1024
          %4544 = vsyncadd %s4534, %s4543
          %s4545 = smul.addr %s4541, 128
          %s4546 = scalar_lea.hbm %s12, %s4545
          %s4547 = sshll.u32 %s4537, 4
          %s4548 = int_to_ptr.vmem [resolvable:$true] %s4547
          %4553 = dma.vmem_to_hbm [thread:$0]  %s4548, 1024, %s4546, %s4534, 128, 128, 8
        $region72: #{window_context_attention.1} parent=67 // pred_fallthru
          _
      $region68: #{window_context_attention.1} parent=5 // pred_fallthru
        _
      %p4554 = scmp.le.s32.totalorder 2, %s21
      // Predicated region
      $region73: #{window_context_attention.1} parent=5 // pred_check
        %p4555 = pneg %p4554
      $region74: #{window_context_attention.1} parent=5 // pred_check_branch
        %4557 = sbr.rel (%p4555) target = $region76
      $region75: #{window_context_attention.1} parent=5 // pred_region
        %s4558 = ssub.s32 %s21, 2
        // Predicated region
        $region77: #{window_context_attention.1} parent=75 // pred_check
          %p4559 = pneg %p312
        $region78: #{window_context_attention.1} parent=75 // pred_check_branch
          %4561 = sbr.rel (%p4559) target = $region80
        $region79: #{window_context_attention.1} parent=75 // pred_region
          %s4562 = sand.u32 %s297, 1
          %s4563 = scalar_lea.sflag [#allocation3], %s4562
          %s4564 = sand.u32 %s297, 1
          %s4565 = smul.addr %s4564, 64
          %s4566 = scalar_lea.vmem [#allocation2], %s4565
          %4567 = dma.done %s4563, 1024
        $region80: #{window_context_attention.1} parent=75 // pred_fallthru
          _
      $region76: #{window_context_attention.1} parent=5 // pred_fallthru
        _
    $region6: #{window_context_attention.1} parent=1 // loop_footer
      %s25 = sadd.s32 1, %s21
    $region7: #{window_context_attention.1} parent=1 // loop_footer_branch
      %20 = sbr.rel target = $region3
    $region8: #{window_context_attention.1} parent=1 // loop_exit
      _
    %4568 = vsyncpa [#allocation3], 1
    %s4569 = scalar_lea.sflag [#allocation3], 1
    %4570 = vsyncpa %s4569, 1

</llo_original>
